<compile_context>
chip_gen: v7x
topology: tpu7x:2x2x1
jax: 0.10.0
libtpu: 0.0.40
codegen_flags: <defaults>
</compile_context>

<pallas_src>
import functools

import jax
import jax.numpy as jnp
from jax.experimental import pallas as pl
from jax.experimental.pallas import tpu as pltpu

LEAKY_SLOPE = 0.01          # nn.LeakyReLU default
BN_EPS = 1e-5               # nn.BatchNorm2d default
_NEG_BIG = -1e30            # "-inf" substitute that is bf16-representable
MIN_PALLAS_M = 256          # below this a pallas_call is under the overhead floor


def _round_up(x, m):
    return (x + m - 1) // m * m


# ----------------------------------------------------------------------------
# Fused GEMM + BatchNorm(eval) + (optional residual) + activation kernel
# ----------------------------------------------------------------------------
def _gemm_bn_act_kernel(x_ref, w_ref, scale_ref, shift_ref, *rest, act, has_res):
    if has_res:
        res_ref, o_ref, acc_ref = rest
    else:
        o_ref, acc_ref = rest

    @pl.when(pl.program_id(2) == 0)
    def _():
        acc_ref[...] = jnp.zeros_like(acc_ref)

    acc_ref[...] += jnp.dot(x_ref[...], w_ref[...],
                            preferred_element_type=jnp.float32)

    @pl.when(pl.program_id(2) == pl.num_programs(2) - 1)
    def _():
        y = acc_ref[...] * scale_ref[...] + shift_ref[...]
        if has_res:
            y = y + res_ref[...].astype(jnp.float32)
        if act == "relu":
            y = jnp.maximum(y, 0.0)
        elif act == "leaky_relu":
            y = jnp.where(y >= 0.0, y, LEAKY_SLOPE * y)
        o_ref[...] = y.astype(o_ref.dtype)


def _pick_tm(M, n_parallel_other):
    """Largest M-tile (<=512) that divides M; keep >=2 parallel grid blocks
    (v7x shards 'parallel' axes over its 2 TensorCores) when M allows."""
    candidates = (512, 256, 128, 64, 32, 16, 8)
    divisors = [t for t in candidates if M % t == 0]
    if divisors and divisors[0] >= 128:
        for t in divisors:
            if t >= 256 and (M // t) * n_parallel_other >= 2:
                return M, t
        return M, divisors[0]
    tm = 256
    return _round_up(M, tm), tm


def _choose_k_tiling(k_true):
    """(Kp, tk): padded contraction size and K-tile.  Single k-step for small
    K; otherwise 256/512-wide tiles (v6e/v7x MXUs are 256 wide in K)."""
    kp = _round_up(k_true, 128)
    if kp <= 512:
        return kp, kp
    kp = _round_up(k_true, 256)
    return kp, (512 if kp % 512 == 0 else 256)


def matmul_bn_act_pallas(cols, w, scale, shift, tk, residual, act,
                         out_dtype=jnp.bfloat16):
    """out = act((cols @ w) * scale + shift [+ residual]).

    cols:(M,Kp) bf16, w:(Kp,Np) bf16 (pre-padded at init), scale/shift:(1,Np)
    f32, residual:(M,Np) bf16 or None.  Tiled, pipelined, f32 VMEM accumulator.
    """
    M, Kp = cols.shape
    Kp2, Np = w.shape
    assert Kp == Kp2 and Kp % tk == 0 and Np % 128 == 0
    tn = 256 if Np % 256 == 0 else 128
    Mp, tm = _pick_tm(M, Np // tn)
    if Mp != M:                      # rare: only when no nice divisor of M
        cols = jnp.pad(cols, ((0, Mp - M), (0, 0)))
        if residual is not None:
            residual = jnp.pad(residual, ((0, Mp - M), (0, 0)))

    inputs = [cols, w, scale, shift]
    in_specs = [
        pl.BlockSpec((tm, tk), lambda i, j, k: (i, k)),
        pl.BlockSpec((tk, tn), lambda i, j, k: (k, j)),
        pl.BlockSpec((1, tn), lambda i, j, k: (0, j)),
        pl.BlockSpec((1, tn), lambda i, j, k: (0, j)),
    ]
    has_res = residual is not None
    if has_res:
        inputs.append(residual)
        in_specs.append(pl.BlockSpec((tm, tn), lambda i, j, k: (i, j)))

    kern = functools.partial(_gemm_bn_act_kernel, act=act, has_res=has_res)
    out = pl.pallas_call(
        kern,
        out_shape=jax.ShapeDtypeStruct((Mp, Np), out_dtype),
        grid=(Mp // tm, Np // tn, Kp // tk),
        in_specs=in_specs,
        out_specs=pl.BlockSpec((tm, tn), lambda i, j, k: (i, j)),
        scratch_shapes=[pltpu.VMEM((tm, tn), jnp.float32)],
        compiler_params=pltpu.CompilerParams(
            dimension_semantics=("parallel", "parallel", "arbitrary")),
    )(*inputs)
    return out[:M] if Mp != M else out


def matmul_bn_act_small(cols, w, scale, shift, residual, act):
    """Tiny-M fallback: same math via plain XLA dot (below Pallas overhead)."""
    y = jnp.dot(cols, w, preferred_element_type=jnp.float32)
    y = y * scale + shift
    if residual is not None:
        y = y + residual.astype(jnp.float32)
    if act == "relu":
        y = jnp.maximum(y, 0.0)
    elif act == "leaky_relu":
        y = jnp.where(y >= 0.0, y, LEAKY_SLOPE * y)
    return y.astype(jnp.bfloat16)


# ----------------------------------------------------------------------------
# Patch extraction: cols built directly at the padded K (no extra pad copy)
# ----------------------------------------------------------------------------
def build_cols(x, kh, kw, stride, pad, cin_cols, kp):
    """x:(N,H,W,C_phys) NHWC -> (N*Ho*Wo, kp) im2col matrix, tap-major /
    channel-minor, with the K axis zero-padded to kp inside the concat."""
    N, H, W, _ = x.shape
    Ho = (H + 2 * pad - kh) // stride + 1
    Wo = (W + 2 * pad - kw) // stride + 1
    if kh == 1 and kw == 1 and pad == 0:
        cols = x[:, ::stride, ::stride, :cin_cols]
        if kp != cin_cols:
            cols = jnp.concatenate(
                [cols, jnp.zeros((N, Ho, Wo, kp - cin_cols), x.dtype)], axis=-1)
        return cols.reshape(N * Ho * Wo, kp), Ho, Wo
    xpad = jnp.pad(x[..., :cin_cols],
                   ((0, 0), (pad, pad), (pad, pad), (0, 0)))
    taps = []
    for i in range(kh):
        for j in range(kw):
            taps.append(xpad[:, i:i + stride * Ho:stride,
                             j:j + stride * Wo:stride, :])
    k_true = kh * kw * cin_cols
    if kp != k_true:
        taps.append(jnp.zeros((N, Ho, Wo, kp - k_true), x.dtype))
    cols = jnp.concatenate(taps, axis=-1)          # (N, Ho, Wo, kp)
    return cols.reshape(N * Ho * Wo, kp), Ho, Wo


# ----------------------------------------------------------------------------
# Layer wrappers (consume pre-transformed params)
# ----------------------------------------------------------------------------
def conv_bn_act(x, cp, residual=None):
    """Conv2d + BatchNorm(eval) + optional fused residual add + activation.
    NHWC activations with the channel dim physically padded to >=128 (padded
    channels are always exactly zero)."""
    N = x.shape[0]
    cols, Ho, Wo = build_cols(x, cp["kh"], cp["kw"], cp["stride"], cp["pad"],
                              cp["cin_cols"], cp["kp"])
    M = cols.shape[0]
    res2d = None
    if residual is not None:
        res2d = residual.reshape(M, cp["cout_phys"]).astype(jnp.bfloat16)
    if M >= MIN_PALLAS_M:
        y = matmul_bn_act_pallas(cols, cp["w"], cp["scale"], cp["shift"],
                                 cp["tk"], res2d, cp["act"])
    else:
        y = matmul_bn_act_small(cols, cp["w"], cp["scale"], cp["shift"],
                                res2d, cp["act"])
    return y.reshape(N, Ho, Wo, cp["cout_phys"])


def maxpool_3x3_s2_p1(x):
    """MaxPool2d(3,2,1) as a jnp.maximum tree over the 9 strided window taps
    (XLA fuses it; no 9x HBM tap stack, no extra kernel launch)."""
    N, H, W, C = x.shape
    Ho = (H + 2 - 3) // 2 + 1
    Wo = (W + 2 - 3) // 2 + 1
    xpad = jnp.pad(x, ((0, 0), (1, 1), (1, 1), (0, 0)),
                   constant_values=_NEG_BIG)
    out = None
    for i in range(3):
        for j in range(3):
            tap = xpad[:, i:i + 2 * Ho:2, j:j + 2 * Wo:2, :]
            out = tap if out is None else jnp.maximum(out, tap)
    return out


def basic_block(x, bp):
    """BasicBlock: conv-BN-ReLU -> conv-BN -> (+downsample(x)) -> ReLU.
    The residual add + final ReLU are fused into conv2's GEMM epilogue."""
    out1 = conv_bn_act(x, bp["conv1"])
    residual = conv_bn_act(x, bp["ds"]) if "ds" in bp else x
    return conv_bn_act(out1, bp["conv2"], residual=residual)


def resnet_forward(prepped, x_nchw):
    # NCHW (PyTorch) -> NHWC (kernel layout); bf16 activations on the MXU.
    x = jnp.transpose(x_nchw, (0, 2, 3, 1)).astype(jnp.bfloat16)

    # stem: Conv2d(in,64,k7,s2,p3,bias=False) + BN + LeakyReLU
    x = conv_bn_act(x, prepped["stem"])

    # MaxPool2d(k3, s2, p1)
    x = maxpool_3x3_s2_p1(x)

    # layer0..layer3
    for layer in prepped["layers"]:
        for bp in layer:
            x = basic_block(x, bp)

    # AdaptiveAvgPool2d(1) -> flatten -> Linear (tiny -> plain XLA ops)
    pooled = jnp.mean(x.astype(jnp.float32), axis=(1, 2))     # (N, C_phys)
    pooled = pooled[:, :prepped["final_c"]]
    fc = prepped["fc"]
    return pooled @ fc["w"].T + fc["b"]


# ----------------------------------------------------------------------------
# One-time parameter preparation (weight transforms done once, not per forward)
# ----------------------------------------------------------------------------
def _prep_conv(p, cin, cin_phys, stride, pad, act):
    cout, cin_w, kh, kw = p["w"].shape
    assert cin_w == cin
    cout_phys = _round_up(cout, 128)
    w2d = jnp.transpose(p["w"], (2, 3, 1, 0)).reshape(kh * kw * cin, cout)
    if kh == 1 and kw == 1:
        # 1x1 conv consumes the full physical channel width of the activation
        # (no channel slice / no im2col copy); padded weight rows are zero.
        w2d = jnp.pad(w2d, ((0, cin_phys - cin), (0, 0)))
        cin_cols = cin_phys
        k_true = cin_phys
    else:
        cin_cols = cin
        k_true = kh * kw * cin
    kp, tk = _choose_k_tiling(k_true)
    w2d = jnp.pad(w2d, ((0, kp - k_true), (0, cout_phys - cout)))
    # BatchNorm folded in eval mode (running_mean=0, running_var=1).
    scale = p["g"] / jnp.sqrt(1.0 + BN_EPS)
    bias = p["b"] if p["b"] is not None else jnp.zeros((cout,), jnp.float32)
    shift = scale * bias + p["beta"]
    scale = jnp.pad(scale, (0, cout_phys - cout)).reshape(1, cout_phys)
    shift = jnp.pad(shift, (0, cout_phys - cout)).reshape(1, cout_phys)
    return {"w": w2d.astype(jnp.bfloat16),
            "scale": scale.astype(jnp.float32),
            "shift": shift.astype(jnp.float32),
            "kh": kh, "kw": kw, "stride": stride, "pad": pad,
            "cin_cols": cin_cols, "kp": kp, "tk": tk,
            "cout_phys": cout_phys, "act": act}


def prepare_resnet_params(raw, in_channels):
    prepped = {"stem": _prep_conv(raw["stem"], in_channels, in_channels,
                                  stride=2, pad=3, act="leaky_relu")}
    cin, cin_phys = 64, 128
    layers = []
    for layer_raw in raw["layers"]:
        blocks = []
        for bp in layer_raw:
            stride = bp["stride"]
            cout = bp["conv1"]["w"].shape[0]
            cout_phys = _round_up(cout, 128)
            b = {"conv1": _prep_conv(bp["conv1"], cin, cin_phys, stride, 1, "relu"),
                 "conv2": _prep_conv(bp["conv2"], cout, cout_phys, 1, 1, "relu")}
            if "ds" in bp:
                b["ds"] = _prep_conv(bp["ds"], cin, cin_phys, stride, 0, "none")
            blocks.append(b)
            cin, cin_phys = cout, cout_phys
        layers.append(blocks)
    prepped["layers"] = layers
    prepped["final_c"] = cin
    prepped["fc"] = {"w": raw["fc"]["w"].astype(jnp.float32),
                     "b": raw["fc"]["b"].astype(jnp.float32)}
    return prepped


# ----------------------------------------------------------------------------
# Deterministic raw parameter initialization (matches PyTorch module shapes)
# ----------------------------------------------------------------------------
def _conv_bn_params(keys, cout, cin, k, with_bias):
    return {
        "w": 0.05 * jax.random.normal(next(keys), (cout, cin, k, k), jnp.float32),
        "b": (0.05 * jax.random.normal(next(keys), (cout,), jnp.float32)
              if with_bias else None),
        "g": 1.0 + 0.05 * jax.random.normal(next(keys), (cout,), jnp.float32),
        "beta": 0.05 * jax.random.normal(next(keys), (cout,), jnp.float32),
    }


def _block_params(keys, cin, cout, stride):
    # tutorial BasicBlock: conv1/conv2 have bias=False (BN follows);
    # the downsample 1x1 conv in _make_layer uses nn.Conv2d default bias=True.
    p = {
        "stride": stride,
        "conv1": _conv_bn_params(keys, cout, cin, 3, False),
        "conv2": _conv_bn_params(keys, cout, cout, 3, False),
    }
    if stride != 1 or cin != cout:
        p["ds"] = _conv_bn_params(keys, cout, cin, 1, True)   # 1x1 conv + BN
    return p


def init_resnet_params(key, in_channels=3, num_classes=10, layers=(1, 1, 1, 1)):
    keys = iter(jax.random.split(key, 256))
    params = {"stem": _conv_bn_params(keys, 64, in_channels, 7, False)}
    inplanes = 64
    layer_list = []
    for planes, nblocks, stride in zip((64, 128, 256, 512), layers, (1, 2, 2, 2)):
        blocks = [_block_params(keys, inplanes, planes, stride)]
        inplanes = planes
        for _ in range(1, nblocks):
            blocks.append(_block_params(keys, inplanes, planes, 1))
        layer_list.append(blocks)
    params["layers"] = layer_list
    params["fc"] = {
        "w": 0.05 * jax.random.normal(next(keys), (num_classes, inplanes), jnp.float32),
        "b": 0.05 * jax.random.normal(next(keys), (num_classes,), jnp.float32),
    }
    return params


# ----------------------------------------------------------------------------
if __name__ == "__main__":
    key = jax.random.PRNGKey(0)
    pkey, xkey = jax.random.split(key)

    in_channels, num_classes = 3, 10
    raw = init_resnet_params(pkey, in_channels=in_channels,
                             num_classes=num_classes, layers=(1, 1, 1, 1))
    prepped = prepare_resnet_params(raw, in_channels)   # one-time weight prep

    # small input consistent with the module: NCHW
    x = jax.random.normal(xkey, (2, in_channels, 64, 64), jnp.float32)

    # prepped params (arrays + static tiling metadata) are closed over so the
    # metadata stays static under jit.
    fwd = jax.jit(functools.partial(resnet_forward, prepped))
    out = jax.block_until_ready(fwd(x))

    assert out.shape == (2, num_classes), out.shape
    assert bool(jnp.all(jnp.isfinite(out)))
    print("KERNEL_OK")
</pallas_src>

<mosaic_0001>
module attributes {stable_mosaic.version = 11 : i64} {
  func.func @_gemm_bn_act_kernel(%arg0: i32, %arg1: i32, %arg2: i32, %arg3: memref<512x256xbf16, #tpu.memory_space<vmem>>, %arg4: memref<256x128xbf16, #tpu.memory_space<vmem>>, %arg5: memref<1x128xf32, #tpu.memory_space<vmem>>, %arg6: memref<1x128xf32, #tpu.memory_space<vmem>>, %arg7: memref<512x128xbf16, #tpu.memory_space<vmem>>, %arg8: memref<512x128xf32, #tpu.memory_space<vmem>>) attributes {dimension_semantics = [#tpu.dimension_semantics<parallel>, #tpu.dimension_semantics<parallel>, #tpu.dimension_semantics<arbitrary>], iteration_bounds = array<i64: 4, 1, 1>, scalar_prefetch = 0 : i64, scratch_operands = 1 : i64, tpu.core_type = #tpu.core_type<tc>, window_params = [{transform_indices = @transform_0, window_bounds = array<i64: 512, 256>}, {transform_indices = @transform_1, window_bounds = array<i64: 256, 128>}, {transform_indices = @transform_2, window_bounds = array<i64: 1, 128>}, {transform_indices = @transform_3, window_bounds = array<i64: 1, 128>}, {transform_indices = @transform_4, window_bounds = array<i64: 512, 128>}]} {
    %c0_i32 = arith.constant 0 : i32
    %0 = arith.cmpi eq, %arg2, %c0_i32 : i32
    %1 = arith.extui %0 : i1 to i32
    %c0_i32_0 = arith.constant 0 : i32
    %2 = arith.cmpi ne, %1, %c0_i32_0 : i32
    scf.if %2 {
      %cst_10 = arith.constant 0.000000e+00 : f32
      %12 = vector.broadcast %cst_10 : f32 to vector<512x128xf32>
      %c0_11 = arith.constant 0 : index
      %c0_12 = arith.constant 0 : index
      %13 = vector.load %arg8[%c0_11, %c0_12] : memref<512x128xf32, #tpu.memory_space<vmem>>, vector<512x128xf32>
      tpu.vector_store %arg8[%c0_11, %c0_12], %12 {strides = array<i32>} : memref<512x128xf32, #tpu.memory_space<vmem>>, vector<512x128xf32>,
    } else {
    }
    %c0 = arith.constant 0 : index
    %c0_1 = arith.constant 0 : index
    %3 = vector.load %arg8[%c0, %c0_1] : memref<512x128xf32, #tpu.memory_space<vmem>>, vector<512x128xf32>
    %c0_2 = arith.constant 0 : index
    %c0_3 = arith.constant 0 : index
    %4 = vector.load %arg3[%c0_2, %c0_3] : memref<512x256xbf16, #tpu.memory_space<vmem>>, vector<512x256xbf16>
    %c0_4 = arith.constant 0 : index
    %c0_5 = arith.constant 0 : index
    %5 = vector.load %arg4[%c0_4, %c0_5] : memref<256x128xbf16, #tpu.memory_space<vmem>>, vector<256x128xbf16>
    %cst = arith.constant dense<0.000000e+00> : vector<512x128xf32>
    %6 = tpu.matmul %4, %5, %cst {dimension_numbers = #tpu.dot_dimension_numbers<[1], [0], [0], [1], [0, 0, 1, 1], [], []>} : vector<512x256xbf16>, vector<256x128xbf16>, vector<512x128xf32> -> vector<512x128xf32>
    %7 = arith.addf %3, %6 : vector<512x128xf32>
    %c0_6 = arith.constant 0 : index
    %c0_7 = arith.constant 0 : index
    %8 = vector.load %arg8[%c0_6, %c0_7] : memref<512x128xf32, #tpu.memory_space<vmem>>, vector<512x128xf32>
    tpu.vector_store %arg8[%c0_6, %c0_7], %7 {strides = array<i32>} : memref<512x128xf32, #tpu.memory_space<vmem>>, vector<512x128xf32>,
    %c0_i32_8 = arith.constant 0 : i32
    %9 = arith.cmpi eq, %arg2, %c0_i32_8 : i32
    %10 = arith.extui %9 : i1 to i32
    %c0_i32_9 = arith.constant 0 : i32
    %11 = arith.cmpi ne, %10, %c0_i32_9 : i32
    scf.if %11 {
      %c0_10 = arith.constant 0 : index
      %c0_11 = arith.constant 0 : index
      %12 = vector.load %arg8[%c0_10, %c0_11] : memref<512x128xf32, #tpu.memory_space<vmem>>, vector<512x128xf32>
      %c0_12 = arith.constant 0 : index
      %c0_13 = arith.constant 0 : index
      %13 = vector.load %arg5[%c0_12, %c0_13] : memref<1x128xf32, #tpu.memory_space<vmem>>, vector<1x128xf32>
      %14 = vector.broadcast %13 : vector<1x128xf32> to vector<512x128xf32>
      %15 = arith.mulf %12, %14 : vector<512x128xf32>
      %c0_14 = arith.constant 0 : index
      %c0_15 = arith.constant 0 : index
      %16 = vector.load %arg6[%c0_14, %c0_15] : memref<1x128xf32, #tpu.memory_space<vmem>>, vector<1x128xf32>
      %17 = vector.broadcast %16 : vector<1x128xf32> to vector<512x128xf32>
      %18 = arith.addf %15, %17 : vector<512x128xf32>
      %cst_16 = arith.constant 0.000000e+00 : f32
      %19 = vector.broadcast %cst_16 : f32 to vector<512x128xf32>
      %20 = arith.cmpf oge, %18, %19 : vector<512x128xf32>
      %cst_17 = arith.constant 0.00999999977 : f32
      %21 = vector.broadcast %cst_17 : f32 to vector<512x128xf32>
      %22 = arith.mulf %21, %18 : vector<512x128xf32>
      %23 = arith.select %20, %18, %22 : vector<512x128xi1>, vector<512x128xf32>
      %24 = arith.truncf %23 : vector<512x128xf32> to vector<512x128xbf16>
      %c0_18 = arith.constant 0 : index
      %c0_19 = arith.constant 0 : index
      %25 = vector.load %arg7[%c0_18, %c0_19] : memref<512x128xbf16, #tpu.memory_space<vmem>>, vector<512x128xbf16>
      tpu.vector_store %arg7[%c0_18, %c0_19], %24 {strides = array<i32>} : memref<512x128xbf16, #tpu.memory_space<vmem>>, vector<512x128xbf16>,
    } else {
    }
    return
  }
  func.func @transform_0(%arg0: i32, %arg1: i32, %arg2: i32) -> (i32, i32) {
    %c0_i32 = arith.constant 0 : i32
    return %arg0, %arg2 : i32, i32
  }
  func.func @transform_1(%arg0: i32, %arg1: i32, %arg2: i32) -> (i32, i32) {
    %c0_i32 = arith.constant 0 : i32
    return %arg2, %arg1 : i32, i32
  }
  func.func @transform_2(%arg0: i32, %arg1: i32, %arg2: i32) -> (i32, i32) {
    %c0_i32 = arith.constant 0 : i32
    %c0_i32_0 = arith.constant 0 : i32
    return %c0_i32, %arg1 : i32, i32
  }
  func.func @transform_3(%arg0: i32, %arg1: i32, %arg2: i32) -> (i32, i32) {
    %c0_i32 = arith.constant 0 : i32
    %c0_i32_0 = arith.constant 0 : i32
    return %c0_i32, %arg1 : i32, i32
  }
  func.func @transform_4(%arg0: i32, %arg1: i32, %arg2: i32) -> (i32, i32) {
    %c0_i32 = arith.constant 0 : i32
    return %arg0, %arg1 : i32, i32
  }
}

module attributes {stable_mosaic.version = 11 : i64} {
  func.func @_gemm_bn_act_kernel(%arg0: i32, %arg1: i32, %arg2: i32, %arg3: memref<256x256xbf16, #tpu.memory_space<vmem>>, %arg4: memref<256x128xbf16, #tpu.memory_space<vmem>>, %arg5: memref<1x128xf32, #tpu.memory_space<vmem>>, %arg6: memref<1x128xf32, #tpu.memory_space<vmem>>, %arg7: memref<256x128xbf16, #tpu.memory_space<vmem>>, %arg8: memref<256x128xf32, #tpu.memory_space<vmem>>) attributes {dimension_semantics = [#tpu.dimension_semantics<parallel>, #tpu.dimension_semantics<parallel>, #tpu.dimension_semantics<arbitrary>], iteration_bounds = array<i64: 2, 1, 3>, scalar_prefetch = 0 : i64, scratch_operands = 1 : i64, tpu.core_type = #tpu.core_type<tc>, window_params = [{transform_indices = @transform_0, window_bounds = array<i64: 256, 256>}, {transform_indices = @transform_1, window_bounds = array<i64: 256, 128>}, {transform_indices = @transform_2, window_bounds = array<i64: 1, 128>}, {transform_indices = @transform_3, window_bounds = array<i64: 1, 128>}, {transform_indices = @transform_4, window_bounds = array<i64: 256, 128>}]} {
    %c0_i32 = arith.constant 0 : i32
    %0 = arith.cmpi eq, %arg2, %c0_i32 : i32
    %1 = arith.extui %0 : i1 to i32
    %c0_i32_0 = arith.constant 0 : i32
    %2 = arith.cmpi ne, %1, %c0_i32_0 : i32
    scf.if %2 {
      %cst_9 = arith.constant 0.000000e+00 : f32
      %12 = vector.broadcast %cst_9 : f32 to vector<256x128xf32>
      %c0_10 = arith.constant 0 : index
      %c0_11 = arith.constant 0 : index
      %13 = vector.load %arg8[%c0_10, %c0_11] : memref<256x128xf32, #tpu.memory_space<vmem>>, vector<256x128xf32>
      tpu.vector_store %arg8[%c0_10, %c0_11], %12 {strides = array<i32>} : memref<256x128xf32, #tpu.memory_space<vmem>>, vector<256x128xf32>,
    } else {
    }
    %c0 = arith.constant 0 : index
    %c0_1 = arith.constant 0 : index
    %3 = vector.load %arg8[%c0, %c0_1] : memref<256x128xf32, #tpu.memory_space<vmem>>, vector<256x128xf32>
    %c0_2 = arith.constant 0 : index
    %c0_3 = arith.constant 0 : index
    %4 = vector.load %arg3[%c0_2, %c0_3] : memref<256x256xbf16, #tpu.memory_space<vmem>>, vector<256x256xbf16>
    %c0_4 = arith.constant 0 : index
    %c0_5 = arith.constant 0 : index
    %5 = vector.load %arg4[%c0_4, %c0_5] : memref<256x128xbf16, #tpu.memory_space<vmem>>, vector<256x128xbf16>
    %cst = arith.constant dense<0.000000e+00> : vector<256x128xf32>
    %6 = tpu.matmul %4, %5, %cst {dimension_numbers = #tpu.dot_dimension_numbers<[1], [0], [0], [1], [0, 0, 1, 1], [], []>} : vector<256x256xbf16>, vector<256x128xbf16>, vector<256x128xf32> -> vector<256x128xf32>
    %7 = arith.addf %3, %6 : vector<256x128xf32>
    %c0_6 = arith.constant 0 : index
    %c0_7 = arith.constant 0 : index
    %8 = vector.load %arg8[%c0_6, %c0_7] : memref<256x128xf32, #tpu.memory_space<vmem>>, vector<256x128xf32>
    tpu.vector_store %arg8[%c0_6, %c0_7], %7 {strides = array<i32>} : memref<256x128xf32, #tpu.memory_space<vmem>>, vector<256x128xf32>,
    %c2_i32 = arith.constant 2 : i32
    %9 = arith.cmpi eq, %arg2, %c2_i32 : i32
    %10 = arith.extui %9 : i1 to i32
    %c0_i32_8 = arith.constant 0 : i32
    %11 = arith.cmpi ne, %10, %c0_i32_8 : i32
    scf.if %11 {
      %c0_9 = arith.constant 0 : index
      %c0_10 = arith.constant 0 : index
      %12 = vector.load %arg8[%c0_9, %c0_10] : memref<256x128xf32, #tpu.memory_space<vmem>>, vector<256x128xf32>
      %c0_11 = arith.constant 0 : index
      %c0_12 = arith.constant 0 : index
      %13 = vector.load %arg5[%c0_11, %c0_12] : memref<1x128xf32, #tpu.memory_space<vmem>>, vector<1x128xf32>
      %14 = vector.broadcast %13 : vector<1x128xf32> to vector<256x128xf32>
      %15 = arith.mulf %12, %14 : vector<256x128xf32>
      %c0_13 = arith.constant 0 : index
      %c0_14 = arith.constant 0 : index
      %16 = vector.load %arg6[%c0_13, %c0_14] : memref<1x128xf32, #tpu.memory_space<vmem>>, vector<1x128xf32>
      %17 = vector.broadcast %16 : vector<1x128xf32> to vector<256x128xf32>
      %18 = arith.addf %15, %17 : vector<256x128xf32>
      %cst_15 = arith.constant 0.000000e+00 : f32
      %19 = vector.broadcast %cst_15 : f32 to vector<256x128xf32>
      %20 = arith.maximumf %18, %19 : vector<256x128xf32>
      %21 = arith.truncf %20 : vector<256x128xf32> to vector<256x128xbf16>
      %c0_16 = arith.constant 0 : index
      %c0_17 = arith.constant 0 : index
      %22 = vector.load %arg7[%c0_16, %c0_17] : memref<256x128xbf16, #tpu.memory_space<vmem>>, vector<256x128xbf16>
      tpu.vector_store %arg7[%c0_16, %c0_17], %21 {strides = array<i32>} : memref<256x128xbf16, #tpu.memory_space<vmem>>, vector<256x128xbf16>,
    } else {
    }
    return
  }
  func.func @transform_0(%arg0: i32, %arg1: i32, %arg2: i32) -> (i32, i32) {
    %c0_i32 = arith.constant 0 : i32
    return %arg0, %arg2 : i32, i32
  }
  func.func @transform_1(%arg0: i32, %arg1: i32, %arg2: i32) -> (i32, i32) {
    %c0_i32 = arith.constant 0 : i32
    return %arg2, %arg1 : i32, i32
  }
  func.func @transform_2(%arg0: i32, %arg1: i32, %arg2: i32) -> (i32, i32) {
    %c0_i32 = arith.constant 0 : i32
    %c0_i32_0 = arith.constant 0 : i32
    return %c0_i32, %arg1 : i32, i32
  }
  func.func @transform_3(%arg0: i32, %arg1: i32, %arg2: i32) -> (i32, i32) {
    %c0_i32 = arith.constant 0 : i32
    %c0_i32_0 = arith.constant 0 : i32
    return %c0_i32, %arg1 : i32, i32
  }
  func.func @transform_4(%arg0: i32, %arg1: i32, %arg2: i32) -> (i32, i32) {
    %c0_i32 = arith.constant 0 : i32
    return %arg0, %arg1 : i32, i32
  }
}

module attributes {stable_mosaic.version = 11 : i64} {
  func.func @_gemm_bn_act_kernel(%arg0: i32, %arg1: i32, %arg2: i32, %arg3: memref<256x256xbf16, #tpu.memory_space<vmem>>, %arg4: memref<256x128xbf16, #tpu.memory_space<vmem>>, %arg5: memref<1x128xf32, #tpu.memory_space<vmem>>, %arg6: memref<1x128xf32, #tpu.memory_space<vmem>>, %arg7: memref<256x128xbf16, #tpu.memory_space<vmem>>, %arg8: memref<256x128xbf16, #tpu.memory_space<vmem>>, %arg9: memref<256x128xf32, #tpu.memory_space<vmem>>) attributes {dimension_semantics = [#tpu.dimension_semantics<parallel>, #tpu.dimension_semantics<parallel>, #tpu.dimension_semantics<arbitrary>], iteration_bounds = array<i64: 2, 1, 3>, scalar_prefetch = 0 : i64, scratch_operands = 1 : i64, tpu.core_type = #tpu.core_type<tc>, window_params = [{transform_indices = @transform_0, window_bounds = array<i64: 256, 256>}, {transform_indices = @transform_1, window_bounds = array<i64: 256, 128>}, {transform_indices = @transform_2, window_bounds = array<i64: 1, 128>}, {transform_indices = @transform_3, window_bounds = array<i64: 1, 128>}, {transform_indices = @transform_4, window_bounds = array<i64: 256, 128>}, {transform_indices = @transform_5, window_bounds = array<i64: 256, 128>}]} {
    %c0_i32 = arith.constant 0 : i32
    %0 = arith.cmpi eq, %arg2, %c0_i32 : i32
    %1 = arith.extui %0 : i1 to i32
    %c0_i32_0 = arith.constant 0 : i32
    %2 = arith.cmpi ne, %1, %c0_i32_0 : i32
    scf.if %2 {
      %cst_9 = arith.constant 0.000000e+00 : f32
      %12 = vector.broadcast %cst_9 : f32 to vector<256x128xf32>
      %c0_10 = arith.constant 0 : index
      %c0_11 = arith.constant 0 : index
      %13 = vector.load %arg9[%c0_10, %c0_11] : memref<256x128xf32, #tpu.memory_space<vmem>>, vector<256x128xf32>
      tpu.vector_store %arg9[%c0_10, %c0_11], %12 {strides = array<i32>} : memref<256x128xf32, #tpu.memory_space<vmem>>, vector<256x128xf32>,
    } else {
    }
    %c0 = arith.constant 0 : index
    %c0_1 = arith.constant 0 : index
    %3 = vector.load %arg9[%c0, %c0_1] : memref<256x128xf32, #tpu.memory_space<vmem>>, vector<256x128xf32>
    %c0_2 = arith.constant 0 : index
    %c0_3 = arith.constant 0 : index
    %4 = vector.load %arg3[%c0_2, %c0_3] : memref<256x256xbf16, #tpu.memory_space<vmem>>, vector<256x256xbf16>
    %c0_4 = arith.constant 0 : index
    %c0_5 = arith.constant 0 : index
    %5 = vector.load %arg4[%c0_4, %c0_5] : memref<256x128xbf16, #tpu.memory_space<vmem>>, vector<256x128xbf16>
    %cst = arith.constant dense<0.000000e+00> : vector<256x128xf32>
    %6 = tpu.matmul %4, %5, %cst {dimension_numbers = #tpu.dot_dimension_numbers<[1], [0], [0], [1], [0, 0, 1, 1], [], []>} : vector<256x256xbf16>, vector<256x128xbf16>, vector<256x128xf32> -> vector<256x128xf32>
    %7 = arith.addf %3, %6 : vector<256x128xf32>
    %c0_6 = arith.constant 0 : index
    %c0_7 = arith.constant 0 : index
    %8 = vector.load %arg9[%c0_6, %c0_7] : memref<256x128xf32, #tpu.memory_space<vmem>>, vector<256x128xf32>
    tpu.vector_store %arg9[%c0_6, %c0_7], %7 {strides = array<i32>} : memref<256x128xf32, #tpu.memory_space<vmem>>, vector<256x128xf32>,
    %c2_i32 = arith.constant 2 : i32
    %9 = arith.cmpi eq, %arg2, %c2_i32 : i32
    %10 = arith.extui %9 : i1 to i32
    %c0_i32_8 = arith.constant 0 : i32
    %11 = arith.cmpi ne, %10, %c0_i32_8 : i32
    scf.if %11 {
      %c0_9 = arith.constant 0 : index
      %c0_10 = arith.constant 0 : index
      %12 = vector.load %arg9[%c0_9, %c0_10] : memref<256x128xf32, #tpu.memory_space<vmem>>, vector<256x128xf32>
      %c0_11 = arith.constant 0 : index
      %c0_12 = arith.constant 0 : index
      %13 = vector.load %arg5[%c0_11, %c0_12] : memref<1x128xf32, #tpu.memory_space<vmem>>, vector<1x128xf32>
      %14 = vector.broadcast %13 : vector<1x128xf32> to vector<256x128xf32>
      %15 = arith.mulf %12, %14 : vector<256x128xf32>
      %c0_13 = arith.constant 0 : index
      %c0_14 = arith.constant 0 : index
      %16 = vector.load %arg6[%c0_13, %c0_14] : memref<1x128xf32, #tpu.memory_space<vmem>>, vector<1x128xf32>
      %17 = vector.broadcast %16 : vector<1x128xf32> to vector<256x128xf32>
      %18 = arith.addf %15, %17 : vector<256x128xf32>
      %c0_15 = arith.constant 0 : index
      %c0_16 = arith.constant 0 : index
      %19 = vector.load %arg7[%c0_15, %c0_16] : memref<256x128xbf16, #tpu.memory_space<vmem>>, vector<256x128xbf16>
      %20 = arith.extf %19 : vector<256x128xbf16> to vector<256x128xf32>
      %21 = arith.addf %18, %20 : vector<256x128xf32>
      %cst_17 = arith.constant 0.000000e+00 : f32
      %22 = vector.broadcast %cst_17 : f32 to vector<256x128xf32>
      %23 = arith.maximumf %21, %22 : vector<256x128xf32>
      %24 = arith.truncf %23 : vector<256x128xf32> to vector<256x128xbf16>
      %c0_18 = arith.constant 0 : index
      %c0_19 = arith.constant 0 : index
      %25 = vector.load %arg8[%c0_18, %c0_19] : memref<256x128xbf16, #tpu.memory_space<vmem>>, vector<256x128xbf16>
      tpu.vector_store %arg8[%c0_18, %c0_19], %24 {strides = array<i32>} : memref<256x128xbf16, #tpu.memory_space<vmem>>, vector<256x128xbf16>,
    } else {
    }
    return
  }
  func.func @transform_0(%arg0: i32, %arg1: i32, %arg2: i32) -> (i32, i32) {
    %c0_i32 = arith.constant 0 : i32
    return %arg0, %arg2 : i32, i32
  }
  func.func @transform_1(%arg0: i32, %arg1: i32, %arg2: i32) -> (i32, i32) {
    %c0_i32 = arith.constant 0 : i32
    return %arg2, %arg1 : i32, i32
  }
  func.func @transform_2(%arg0: i32, %arg1: i32, %arg2: i32) -> (i32, i32) {
    %c0_i32 = arith.constant 0 : i32
    %c0_i32_0 = arith.constant 0 : i32
    return %c0_i32, %arg1 : i32, i32
  }
  func.func @transform_3(%arg0: i32, %arg1: i32, %arg2: i32) -> (i32, i32) {
    %c0_i32 = arith.constant 0 : i32
    %c0_i32_0 = arith.constant 0 : i32
    return %c0_i32, %arg1 : i32, i32
  }
  func.func @transform_4(%arg0: i32, %arg1: i32, %arg2: i32) -> (i32, i32) {
    %c0_i32 = arith.constant 0 : i32
    return %arg0, %arg1 : i32, i32
  }
  func.func @transform_5(%arg0: i32, %arg1: i32, %arg2: i32) -> (i32, i32) {
    %c0_i32 = arith.constant 0 : i32
    return %arg0, %arg1 : i32, i32
  }
}

</mosaic_0001>

<llo_original>
// kernel: resnet_forward.3
$region0: #{resnet_forward.3}
  #allocation0 [shape = 'u32[]', space=smem, size = 0x4, offset = 0x4, fixed_abs, tag = 'smem constant byte address 0x4 - core index']
  #allocation1 [shape = 'u32[144,128]{1,0:T(1,128)}', space=vmem, size = 0x12000, scoped, tag = 'internal scratch']
  #allocation2 [shape = 'f32[512,128]{1,0:T(8,128)}', space=vmem, size = 0x40000, scoped, tag = 'scratch operand']
  %s0 = inlined_call_operand.vmem [shape: bf16[2048,256], index: 0, kind: input, shape index: {}]
  %s1 = inlined_call_operand.vmem [shape: bf16[256,128], index: 1, kind: input, shape index: {}]
  %s2 = inlined_call_operand.vmem [shape: f32[1,128], index: 2, kind: input, shape index: {}]
  %s3 = inlined_call_operand.vmem [shape: f32[1,128], index: 3, kind: input, shape index: {}]
  %s4 = inlined_call_operand.vmem [shape: bf16[2048,128], index: 4, kind: output, shape index: {}]
  %s5 = sld [smem:[#allocation0]]
  $region57: #{resnet_forward.3} parent=0
    _
  %s7 = ssub.s32 1, %s5
  %s8 = scalar_select 0, %s7, %s5
  loop: start=0, step=1, limit=6
  $region2: #{resnet_forward.3} parent=0 // loop_pre_header
    _
  $region3: #{resnet_forward.3} parent=0 // loop_header
    %s10 = sphi 0, %s14
    %p11 = scmp.ge.s32.totalorder %s10, 6
    %s17 = sphi 0, %s36
    %s18 = sphi 0, %s32
    %s19 = sphi 0, %s28
    %s20 = sphi 0, %s17
    %s21 = sphi 0, %s18
    %s22 = sphi 0, %s19
    %s23 = sphi 0, %s20
    %s24 = sphi 0, %s21
    %s25 = sphi 0, %s22
    %s41 = sphi 0, %s43
    %s44 = sphi 0, %s41
    %s45 = sphi 0, %s44
    %s61 = sphi 0, %s45
    %s69 = sphi 0, %s71
    %s72 = sphi 0, %s69
    %s73 = sphi 0, %s72
    %s89 = sphi 0, %s73
    %s95 = sphi 0, %s97
    %s98 = sphi 0, %s95
    %s99 = sphi 0, %s98
    %s115 = sphi 0, %s99
    %s121 = sphi 0, %s123
    %s124 = sphi 0, %s121
    %s125 = sphi 0, %s124
    %s141 = sphi 0, %s125
    %s149 = sphi 0, %s151
    %s152 = sphi 0, %s149
    %s153 = sphi 0, %s152
    %s169 = sphi 0, %s153
  $region4: #{resnet_forward.3} parent=0 // loop_header_branch
    %13 = sbr.rel (%p11) target = $region8
  $region5: #{resnet_forward.3} parent=0 // loop_body
    %s15 = ssub.s32 %s10, 1
    %s16 = ssub.s32 %s10, 2
    %s26 = sadd.s32 1, %s19
    %p27 = scmp.ge.s32.totalorder %s26, 1
    %s28 = scalar_select %p27, 0, %s26
    %s29 = sadd.s32 1, %s18
    %s30 = scalar_select %p27, %s29, %s18
    %p31 = scmp.ge.s32.totalorder %s30, 1
    %s32 = scalar_select %p31, 0, %s30
    %s33 = sadd.s32 1, %s17
    %s34 = scalar_select %p31, %s33, %s17
    %p35 = scmp.ge.s32.totalorder %s34, 4
    %s36 = scalar_select %p35, 0, %s34
    %s37 = ssub.s32 %s17, %s36
    %s38 = ssub.s32 %s19, %s28
    %s39 = sor.u32 %s37, %s38
    %p40 = scmp.eq.s32.totalorder %s39, 0
    %s42 = sadd.s32 %s41, 1
    %s43 = scalar_select %p40, %s41, %s42
    %p46 = pneg %p40
    %p47 = scmp.eq.s32.totalorder %s10, 3
    %p48 = por %p46, %p47
    %p49 = scmp.ne.s32.totalorder %s41, %s44
    %p50 = scmp.eq.s32.totalorder %s10, 0
    %p51 = por %p49, %p50
    %p52 = scmp.ne.s32.totalorder %s41, %s44
    %p53 = scmp.eq.s32.totalorder %s15, 3
    %p54 = por %p52, %p53
    %p55 = scmp.ne.s32.totalorder %s44, %s45
    %p56 = scmp.eq.s32.totalorder %s15, 0
    %p57 = por %p55, %p56
    %p58 = scmp.ne.s32.totalorder %s44, %s45
    %p59 = scmp.eq.s32.totalorder %s16, 3
    %p60 = por %p58, %p59
    %p62 = scmp.ne.s32.totalorder %s45, %s61
    %p63 = scmp.eq.s32.totalorder %s16, 0
    %p64 = por %p62, %p63
    %s65 = ssub.s32 %s19, %s28
    %s66 = ssub.s32 %s18, %s32
    %s67 = sor.u32 %s65, %s66
    %p68 = scmp.eq.s32.totalorder %s67, 0
    %s70 = sadd.s32 %s69, 1
    %s71 = scalar_select %p68, %s69, %s70
    %p74 = pneg %p68
    %p75 = scmp.eq.s32.totalorder %s10, 3
    %p76 = por %p74, %p75
    %p77 = scmp.ne.s32.totalorder %s69, %s72
    %p78 = scmp.eq.s32.totalorder %s10, 0
    %p79 = por %p77, %p78
    %p80 = scmp.ne.s32.totalorder %s69, %s72
    %p81 = scmp.eq.s32.totalorder %s15, 3
    %p82 = por %p80, %p81
    %p83 = scmp.ne.s32.totalorder %s72, %s73
    %p84 = scmp.eq.s32.totalorder %s15, 0
    %p85 = por %p83, %p84
    %p86 = scmp.ne.s32.totalorder %s72, %s73
    %p87 = scmp.eq.s32.totalorder %s16, 3
    %p88 = por %p86, %p87
    %p90 = scmp.ne.s32.totalorder %s73, %s89
    %p91 = scmp.eq.s32.totalorder %s16, 0
    %p92 = por %p90, %p91
    %s93 = ssub.s32 %s18, %s32
    %p94 = scmp.eq.s32.totalorder %s93, 0
    %s96 = sadd.s32 %s95, 1
    %s97 = scalar_select %p94, %s95, %s96
    %p100 = pneg %p94
    %p101 = scmp.eq.s32.totalorder %s10, 3
    %p102 = por %p100, %p101
    %p103 = scmp.ne.s32.totalorder %s95, %s98
    %p104 = scmp.eq.s32.totalorder %s10, 0
    %p105 = por %p103, %p104
    %p106 = scmp.ne.s32.totalorder %s95, %s98
    %p107 = scmp.eq.s32.totalorder %s15, 3
    %p108 = por %p106, %p107
    %p109 = scmp.ne.s32.totalorder %s98, %s99
    %p110 = scmp.eq.s32.totalorder %s15, 0
    %p111 = por %p109, %p110
    %p112 = scmp.ne.s32.totalorder %s98, %s99
    %p113 = scmp.eq.s32.totalorder %s16, 3
    %p114 = por %p112, %p113
    %p116 = scmp.ne.s32.totalorder %s99, %s115
    %p117 = scmp.eq.s32.totalorder %s16, 0
    %p118 = por %p116, %p117
    %s119 = ssub.s32 %s18, %s32
    %p120 = scmp.eq.s32.totalorder %s119, 0
    %s122 = sadd.s32 %s121, 1
    %s123 = scalar_select %p120, %s121, %s122
    %p126 = pneg %p120
    %p127 = scmp.eq.s32.totalorder %s10, 3
    %p128 = por %p126, %p127
    %p129 = scmp.ne.s32.totalorder %s121, %s124
    %p130 = scmp.eq.s32.totalorder %s10, 0
    %p131 = por %p129, %p130
    %p132 = scmp.ne.s32.totalorder %s121, %s124
    %p133 = scmp.eq.s32.totalorder %s15, 3
    %p134 = por %p132, %p133
    %p135 = scmp.ne.s32.totalorder %s124, %s125
    %p136 = scmp.eq.s32.totalorder %s15, 0
    %p137 = por %p135, %p136
    %p138 = scmp.ne.s32.totalorder %s124, %s125
    %p139 = scmp.eq.s32.totalorder %s16, 3
    %p140 = por %p138, %p139
    %p142 = scmp.ne.s32.totalorder %s125, %s141
    %p143 = scmp.eq.s32.totalorder %s16, 0
    %p144 = por %p142, %p143
    %s145 = ssub.s32 %s17, %s36
    %s146 = ssub.s32 %s18, %s32
    %s147 = sor.u32 %s145, %s146
    %p148 = scmp.eq.s32.totalorder %s147, 0
    %s150 = sadd.s32 %s149, 1
    %s151 = scalar_select %p148, %s149, %s150
    %p154 = pneg %p148
    %p155 = scmp.eq.s32.totalorder %s10, 3
    %p156 = por %p154, %p155
    %p157 = scmp.ne.s32.totalorder %s149, %s152
    %p158 = scmp.eq.s32.totalorder %s10, 0
    %p159 = por %p157, %p158
    %p160 = scmp.ne.s32.totalorder %s149, %s152
    %p161 = scmp.eq.s32.totalorder %s15, 3
    %p162 = por %p160, %p161
    %p163 = scmp.ne.s32.totalorder %s152, %s153
    %p164 = scmp.eq.s32.totalorder %s15, 0
    %p165 = por %p163, %p164
    %p166 = scmp.ne.s32.totalorder %s152, %s153
    %p167 = scmp.eq.s32.totalorder %s16, 3
    %p168 = por %p166, %p167
    %p170 = scmp.ne.s32.totalorder %s153, %s169
    %p171 = scmp.eq.s32.totalorder %s16, 0
    %p172 = por %p170, %p171
    %p173 = scmp.le.s32.totalorder 1, %s10
    %p174 = scmp.lt.s32.totalorder %s10, 5
    %p175 = pnand %p173, %p174
    %p176 = pneg %p175
    // Predicated region
    $region9: #{resnet_forward.3} parent=5 // pred_check
      _
    $region10: #{resnet_forward.3} parent=5 // pred_check_branch
      %178 = sbr.rel (%p175) target = $region12
    $region11: #{resnet_forward.3} parent=5 // pred_region
      %s179 = ssub.s32 %s10, 1
      // Predicated region
      $region13: #{resnet_forward.3} parent=11 // pred_check
        %p180 = pneg %p85
      $region14: #{resnet_forward.3} parent=11 // pred_check_branch
        %182 = sbr.rel (%p180) target = $region16
      $region15: #{resnet_forward.3} parent=11 // pred_region
        %s183 = smul.u32 32, %s22
        %p184 = scmp.lt.s32.totalorder %s183, 31
        %s185 = scalar_select %p184, %s183, 31
        %p186 = scmp.lt.s32.totalorder %s21, 0
        %s187 = scalar_select %p186, %s21, 0
        %s188 = sadd.s32 %s187, %s185
        %s189 = smul.addr %s188, 4
        %s190 = scalar_lea.vmem %s1, %s189
        %s191 = smul.u32 32, %s22
      $region16: #{resnet_forward.3} parent=11 // pred_fallthru
        _
      // Predicated region
      $region17: #{resnet_forward.3} parent=11 // pred_check
        %p192 = pneg %p111
      $region18: #{resnet_forward.3} parent=11 // pred_check_branch
        %194 = sbr.rel (%p192) target = $region20
      $region19: #{resnet_forward.3} parent=11 // pred_region
        %p195 = scmp.lt.s32.totalorder %s21, 0
        %s196 = scalar_select %p195, %s21, 0
        %s197 = scalar_lea.vmem %s2, %s196
      $region20: #{resnet_forward.3} parent=11 // pred_fallthru
        _
      // Predicated region
      $region21: #{resnet_forward.3} parent=11 // pred_check
        %p198 = pneg %p137
      $region22: #{resnet_forward.3} parent=11 // pred_check_branch
        %200 = sbr.rel (%p198) target = $region24
      $region23: #{resnet_forward.3} parent=11 // pred_region
        %p201 = scmp.lt.s32.totalorder %s21, 0
        %s202 = scalar_select %p201, %s21, 0
        %s203 = scalar_lea.vmem %s3, %s202
      $region24: #{resnet_forward.3} parent=11 // pred_fallthru
        _
    $region12: #{resnet_forward.3} parent=5 // pred_fallthru
      _
    %p204 = scmp.lt.s32.totalorder %s10, 4
    // Predicated region
    $region25: #{resnet_forward.3} parent=5 // pred_check
      %p205 = pneg %p204
    $region26: #{resnet_forward.3} parent=5 // pred_check_branch
      %207 = sbr.rel (%p205) target = $region28
    $region27: #{resnet_forward.3} parent=5 // pred_region
      // Predicated region
      $region29: #{resnet_forward.3} parent=27 // pred_check
        %p208 = pneg %p51
      $region30: #{resnet_forward.3} parent=27 // pred_check_branch
        %210 = sbr.rel (%p208) target = $region32
      $region31: #{resnet_forward.3} parent=27 // pred_region
        %s211 = smul.u32 64, %s17
        %s212 = smul.u32 2, %s19
        %p213 = scmp.lt.s32.totalorder %s211, 255
        %s214 = scalar_select %p213, %s211, 255
        %p215 = scmp.lt.s32.totalorder %s212, 1
        %s216 = scalar_select %p215, %s212, 1
        %s217 = smul.addr %s214, 2
        %s218 = sadd.s32 %s216, %s217
        %s219 = smul.addr %s218, 4
        %s220 = scalar_lea.vmem %s0, %s219
        %s221 = smul.u32 64, %s17
        %s222 = smul.u32 2, %s19
      $region32: #{resnet_forward.3} parent=27 // pred_fallthru
        _
    $region28: #{resnet_forward.3} parent=5 // pred_fallthru
      _
    %p223 = scmp.le.s32.totalorder 1, %s10
    %p224 = scmp.lt.s32.totalorder %s10, 5
    %p225 = pnand %p223, %p224
    %p226 = pneg %p225
    // Predicated region
    $region33: #{resnet_forward.3} parent=5 // pred_check
      _
    $region34: #{resnet_forward.3} parent=5 // pred_check_branch
      %228 = sbr.rel (%p225) target = $region36
    $region35: #{resnet_forward.3} parent=5 // pred_region
      %s229 = ssub.s32 %s10, 1
      %s230 = smul.u32 64, %s20
      %s231 = smul.u32 2, %s22
      %p232 = scmp.lt.s32.totalorder %s230, 255
      %s233 = scalar_select %p232, %s230, 255
      %p234 = scmp.lt.s32.totalorder %s231, 1
      %s235 = scalar_select %p234, %s231, 1
      %s236 = smul.addr %s233, 2
      %s237 = sadd.s32 %s235, %s236
      %s238 = smul.addr %s237, 4
      %s239 = scalar_lea.vmem %s0, %s238
      %p240 = pneg %p57
      %p241 = pneg %p54
      %s242 = smul.u32 32, %s22
      %p243 = scmp.lt.s32.totalorder %s242, 31
      %s244 = scalar_select %p243, %s242, 31
      %p245 = scmp.lt.s32.totalorder %s21, 0
      %s246 = scalar_select %p245, %s21, 0
      %s247 = sadd.s32 %s246, %s244
      %s248 = smul.addr %s247, 4
      %s249 = scalar_lea.vmem %s1, %s248
      %p250 = pneg %p85
      %p251 = pneg %p82
      %p252 = scmp.lt.s32.totalorder %s21, 0
      %s253 = scalar_select %p252, %s21, 0
      %s254 = scalar_lea.vmem %s2, %s253
      %p255 = pneg %p111
      %p256 = pneg %p108
      %p257 = scmp.lt.s32.totalorder %s21, 0
      %s258 = scalar_select %p257, %s21, 0
      %s259 = scalar_lea.vmem %s3, %s258
      %p260 = pneg %p137
      %p261 = pneg %p134
      %p262 = pneg %p165
      %p263 = pneg %p162
      %s264 = smul.u32 64, %s20
      %p265 = scmp.lt.s32.totalorder %s264, 255
      %s266 = scalar_select %p265, %s264, 255
      %p267 = scmp.lt.s32.totalorder %s21, 0
      %s268 = scalar_select %p267, %s21, 0
      %s269 = sadd.s32 %s268, %s266
      %s270 = smul.addr %s269, 4
      %s271 = scalar_lea.vmem %s4, %s270
      %s272 = smul.u32 64, %s20
      %s273 = smul.u32 2, %s22
      %p274 = scmp.lt.s32.totalorder %s272, 255
      %s275 = scalar_select %p274, %s272, 255
      %p276 = scmp.lt.s32.totalorder %s273, 1
      %s277 = scalar_select %p276, %s273, 1
      %s278 = smul.addr %s275, 2
      %s279 = sadd.s32 %s277, %s278
      %s280 = smul.addr %s279, 4
      %s281 = scalar_lea.vmem %s0, %s280
      %s282 = smul.u32 64, %s20
      %s283 = smul.u32 2, %s22
      %s284 = smul.u32 32, %s22
      %p285 = scmp.lt.s32.totalorder %s284, 31
      %s286 = scalar_select %p285, %s284, 31
      %p287 = scmp.lt.s32.totalorder %s21, 0
      %s288 = scalar_select %p287, %s21, 0
      %s289 = sadd.s32 %s288, %s286
      %s290 = smul.addr %s289, 4
      %s291 = scalar_lea.vmem %s1, %s290
      %s292 = smul.u32 32, %s22
      %p293 = scmp.lt.s32.totalorder %s21, 0
      %s294 = scalar_select %p293, %s21, 0
      %s295 = scalar_lea.vmem %s2, %s294
      %p296 = scmp.lt.s32.totalorder %s21, 0
      %s297 = scalar_select %p296, %s21, 0
      %s298 = scalar_lea.vmem %s3, %s297
      %s299 = smul.u32 64, %s20
      %p300 = scmp.lt.s32.totalorder %s299, 255
      %s301 = scalar_select %p300, %s299, 255
      %p302 = scmp.lt.s32.totalorder %s21, 0
      %s303 = scalar_select %p302, %s21, 0
      %s304 = sadd.s32 %s303, %s301
      %s305 = smul.addr %s304, 4
      %s306 = scalar_lea.vmem %s4, %s305
      %s307 = smul.u32 64, %s20
      %p309 = scmp.eq.s32.totalorder %s22, 0
      // Predicated region
      $region37: #{resnet_forward.3} parent=35 // pred_check
        %p310 = pneg %p309
      $region38: #{resnet_forward.3} parent=35 // pred_check_branch
        %312 = sbr.rel (%p310) target = $region40
      $region39: #{resnet_forward.3} parent=35 // pred_region
        %313 = vst [vmem:[#allocation2] sm:$0xff] 0.0
        %314 = vst [vmem:[#allocation2 + $0x8] sm:$0xff] 0.0
        %315 = vst [vmem:[#allocation2 + $0x10] sm:$0xff] 0.0
        %316 = vst [vmem:[#allocation2 + $0x18] sm:$0xff] 0.0
        %317 = vst [vmem:[#allocation2 + $0x20] sm:$0xff] 0.0
        %318 = vst [vmem:[#allocation2 + $0x28] sm:$0xff] 0.0
        %319 = vst [vmem:[#allocation2 + $0x30] sm:$0xff] 0.0
        %320 = vst [vmem:[#allocation2 + $0x38] sm:$0xff] 0.0
        %321 = vst [vmem:[#allocation2 + $0x40] sm:$0xff] 0.0
        %322 = vst [vmem:[#allocation2 + $0x48] sm:$0xff] 0.0
        %323 = vst [vmem:[#allocation2 + $0x50] sm:$0xff] 0.0
        %324 = vst [vmem:[#allocation2 + $0x58] sm:$0xff] 0.0
        %325 = vst [vmem:[#allocation2 + $0x60] sm:$0xff] 0.0
        %326 = vst [vmem:[#allocation2 + $0x68] sm:$0xff] 0.0
        %327 = vst [vmem:[#allocation2 + $0x70] sm:$0xff] 0.0
        %328 = vst [vmem:[#allocation2 + $0x78] sm:$0xff] 0.0
        %329 = vst [vmem:[#allocation2 + $0x80] sm:$0xff] 0.0
        %330 = vst [vmem:[#allocation2 + $0x88] sm:$0xff] 0.0
        %331 = vst [vmem:[#allocation2 + $0x90] sm:$0xff] 0.0
        %332 = vst [vmem:[#allocation2 + $0x98] sm:$0xff] 0.0
        %333 = vst [vmem:[#allocation2 + $0xa0] sm:$0xff] 0.0
        %334 = vst [vmem:[#allocation2 + $0xa8] sm:$0xff] 0.0
        %335 = vst [vmem:[#allocation2 + $0xb0] sm:$0xff] 0.0
        %336 = vst [vmem:[#allocation2 + $0xb8] sm:$0xff] 0.0
        %337 = vst [vmem:[#allocation2 + $0xc0] sm:$0xff] 0.0
        %338 = vst [vmem:[#allocation2 + $0xc8] sm:$0xff] 0.0
        %339 = vst [vmem:[#allocation2 + $0xd0] sm:$0xff] 0.0
        %340 = vst [vmem:[#allocation2 + $0xd8] sm:$0xff] 0.0
        %341 = vst [vmem:[#allocation2 + $0xe0] sm:$0xff] 0.0
        %342 = vst [vmem:[#allocation2 + $0xe8] sm:$0xff] 0.0
        %343 = vst [vmem:[#allocation2 + $0xf0] sm:$0xff] 0.0
        %344 = vst [vmem:[#allocation2 + $0xf8] sm:$0xff] 0.0
        %345 = vst [vmem:[#allocation2 + $0x100] sm:$0xff] 0.0
        %346 = vst [vmem:[#allocation2 + $0x108] sm:$0xff] 0.0
        %347 = vst [vmem:[#allocation2 + $0x110] sm:$0xff] 0.0
        %348 = vst [vmem:[#allocation2 + $0x118] sm:$0xff] 0.0
        %349 = vst [vmem:[#allocation2 + $0x120] sm:$0xff] 0.0
        %350 = vst [vmem:[#allocation2 + $0x128] sm:$0xff] 0.0
        %351 = vst [vmem:[#allocation2 + $0x130] sm:$0xff] 0.0
        %352 = vst [vmem:[#allocation2 + $0x138] sm:$0xff] 0.0
        %353 = vst [vmem:[#allocation2 + $0x140] sm:$0xff] 0.0
        %354 = vst [vmem:[#allocation2 + $0x148] sm:$0xff] 0.0
        %355 = vst [vmem:[#allocation2 + $0x150] sm:$0xff] 0.0
        %356 = vst [vmem:[#allocation2 + $0x158] sm:$0xff] 0.0
        %357 = vst [vmem:[#allocation2 + $0x160] sm:$0xff] 0.0
        %358 = vst [vmem:[#allocation2 + $0x168] sm:$0xff] 0.0
        %359 = vst [vmem:[#allocation2 + $0x170] sm:$0xff] 0.0
        %360 = vst [vmem:[#allocation2 + $0x178] sm:$0xff] 0.0
        %361 = vst [vmem:[#allocation2 + $0x180] sm:$0xff] 0.0
        %362 = vst [vmem:[#allocation2 + $0x188] sm:$0xff] 0.0
        %363 = vst [vmem:[#allocation2 + $0x190] sm:$0xff] 0.0
        %364 = vst [vmem:[#allocation2 + $0x198] sm:$0xff] 0.0
        %365 = vst [vmem:[#allocation2 + $0x1a0] sm:$0xff] 0.0
        %366 = vst [vmem:[#allocation2 + $0x1a8] sm:$0xff] 0.0
        %367 = vst [vmem:[#allocation2 + $0x1b0] sm:$0xff] 0.0
        %368 = vst [vmem:[#allocation2 + $0x1b8] sm:$0xff] 0.0
        %369 = vst [vmem:[#allocation2 + $0x1c0] sm:$0xff] 0.0
        %370 = vst [vmem:[#allocation2 + $0x1c8] sm:$0xff] 0.0
        %371 = vst [vmem:[#allocation2 + $0x1d0] sm:$0xff] 0.0
        %372 = vst [vmem:[#allocation2 + $0x1d8] sm:$0xff] 0.0
        %373 = vst [vmem:[#allocation2 + $0x1e0] sm:$0xff] 0.0
        %374 = vst [vmem:[#allocation2 + $0x1e8] sm:$0xff] 0.0
        %375 = vst [vmem:[#allocation2 + $0x1f0] sm:$0xff] 0.0
        %376 = vst [vmem:[#allocation2 + $0x1f8] sm:$0xff] 0.0
      $region40: #{resnet_forward.3} parent=35 // pred_fallthru
        _
      %v377 = vld [vmem:[#allocation2] sm:$0xff]
      %v378 = vld [vmem:[#allocation2 + $0x8] sm:$0xff]
      %v379 = vld [vmem:[#allocation2 + $0x10] sm:$0xff]
      %v380 = vld [vmem:[#allocation2 + $0x18] sm:$0xff]
      %v381 = vld [vmem:[#allocation2 + $0x20] sm:$0xff]
      %v382 = vld [vmem:[#allocation2 + $0x28] sm:$0xff]
      %v383 = vld [vmem:[#allocation2 + $0x30] sm:$0xff]
      %v384 = vld [vmem:[#allocation2 + $0x38] sm:$0xff]
      %v385 = vld [vmem:[#allocation2 + $0x40] sm:$0xff]
      %v386 = vld [vmem:[#allocation2 + $0x48] sm:$0xff]
      %v387 = vld [vmem:[#allocation2 + $0x50] sm:$0xff]
      %v388 = vld [vmem:[#allocation2 + $0x58] sm:$0xff]
      %v389 = vld [vmem:[#allocation2 + $0x60] sm:$0xff]
      %v390 = vld [vmem:[#allocation2 + $0x68] sm:$0xff]
      %v391 = vld [vmem:[#allocation2 + $0x70] sm:$0xff]
      %v392 = vld [vmem:[#allocation2 + $0x78] sm:$0xff]
      %v393 = vld [vmem:[#allocation2 + $0x80] sm:$0xff]
      %v394 = vld [vmem:[#allocation2 + $0x88] sm:$0xff]
      %v395 = vld [vmem:[#allocation2 + $0x90] sm:$0xff]
      %v396 = vld [vmem:[#allocation2 + $0x98] sm:$0xff]
      %v397 = vld [vmem:[#allocation2 + $0xa0] sm:$0xff]
      %v398 = vld [vmem:[#allocation2 + $0xa8] sm:$0xff]
      %v399 = vld [vmem:[#allocation2 + $0xb0] sm:$0xff]
      %v400 = vld [vmem:[#allocation2 + $0xb8] sm:$0xff]
      %v401 = vld [vmem:[#allocation2 + $0xc0] sm:$0xff]
      %v402 = vld [vmem:[#allocation2 + $0xc8] sm:$0xff]
      %v403 = vld [vmem:[#allocation2 + $0xd0] sm:$0xff]
      %v404 = vld [vmem:[#allocation2 + $0xd8] sm:$0xff]
      %v405 = vld [vmem:[#allocation2 + $0xe0] sm:$0xff]
      %v406 = vld [vmem:[#allocation2 + $0xe8] sm:$0xff]
      %v407 = vld [vmem:[#allocation2 + $0xf0] sm:$0xff]
      %v408 = vld [vmem:[#allocation2 + $0xf8] sm:$0xff]
      %v409 = vld [vmem:[#allocation2 + $0x100] sm:$0xff]
      %v410 = vld [vmem:[#allocation2 + $0x108] sm:$0xff]
      %v411 = vld [vmem:[#allocation2 + $0x110] sm:$0xff]
      %v412 = vld [vmem:[#allocation2 + $0x118] sm:$0xff]
      %v413 = vld [vmem:[#allocation2 + $0x120] sm:$0xff]
      %v414 = vld [vmem:[#allocation2 + $0x128] sm:$0xff]
      %v415 = vld [vmem:[#allocation2 + $0x130] sm:$0xff]
      %v416 = vld [vmem:[#allocation2 + $0x138] sm:$0xff]
      %v417 = vld [vmem:[#allocation2 + $0x140] sm:$0xff]
      %v418 = vld [vmem:[#allocation2 + $0x148] sm:$0xff]
      %v419 = vld [vmem:[#allocation2 + $0x150] sm:$0xff]
      %v420 = vld [vmem:[#allocation2 + $0x158] sm:$0xff]
      %v421 = vld [vmem:[#allocation2 + $0x160] sm:$0xff]
      %v422 = vld [vmem:[#allocation2 + $0x168] sm:$0xff]
      %v423 = vld [vmem:[#allocation2 + $0x170] sm:$0xff]
      %v424 = vld [vmem:[#allocation2 + $0x178] sm:$0xff]
      %v425 = vld [vmem:[#allocation2 + $0x180] sm:$0xff]
      %v426 = vld [vmem:[#allocation2 + $0x188] sm:$0xff]
      %v427 = vld [vmem:[#allocation2 + $0x190] sm:$0xff]
      %v428 = vld [vmem:[#allocation2 + $0x198] sm:$0xff]
      %v429 = vld [vmem:[#allocation2 + $0x1a0] sm:$0xff]
      %v430 = vld [vmem:[#allocation2 + $0x1a8] sm:$0xff]
      %v431 = vld [vmem:[#allocation2 + $0x1b0] sm:$0xff]
      %v432 = vld [vmem:[#allocation2 + $0x1b8] sm:$0xff]
      %v433 = vld [vmem:[#allocation2 + $0x1c0] sm:$0xff]
      %v434 = vld [vmem:[#allocation2 + $0x1c8] sm:$0xff]
      %v435 = vld [vmem:[#allocation2 + $0x1d0] sm:$0xff]
      %v436 = vld [vmem:[#allocation2 + $0x1d8] sm:$0xff]
      %v437 = vld [vmem:[#allocation2 + $0x1e0] sm:$0xff]
      %v438 = vld [vmem:[#allocation2 + $0x1e8] sm:$0xff]
      %v439 = vld [vmem:[#allocation2 + $0x1f0] sm:$0xff]
      %v440 = vld [vmem:[#allocation2 + $0x1f8] sm:$0xff]
      %v441 = vld [vmem:[%s281] sm:$0xff]
      %v442 = vld [vmem:[%s281 + $0x8] sm:$0xff]
      %v443 = vld [vmem:[%s281 + $0x10] sm:$0xff]
      %v444 = vld [vmem:[%s281 + $0x18] sm:$0xff]
      %v445 = vld [vmem:[%s281 + $0x20] sm:$0xff]
      %v446 = vld [vmem:[%s281 + $0x28] sm:$0xff]
      %v447 = vld [vmem:[%s281 + $0x30] sm:$0xff]
      %v448 = vld [vmem:[%s281 + $0x38] sm:$0xff]
      %v449 = vld [vmem:[%s281 + $0x40] sm:$0xff]
      %v450 = vld [vmem:[%s281 + $0x48] sm:$0xff]
      %v451 = vld [vmem:[%s281 + $0x50] sm:$0xff]
      %v452 = vld [vmem:[%s281 + $0x58] sm:$0xff]
      %v453 = vld [vmem:[%s281 + $0x60] sm:$0xff]
      %v454 = vld [vmem:[%s281 + $0x68] sm:$0xff]
      %v455 = vld [vmem:[%s281 + $0x70] sm:$0xff]
      %v456 = vld [vmem:[%s281 + $0x78] sm:$0xff]
      %v457 = vld [vmem:[%s281 + $0x80] sm:$0xff]
      %v458 = vld [vmem:[%s281 + $0x88] sm:$0xff]
      %v459 = vld [vmem:[%s281 + $0x90] sm:$0xff]
      %v460 = vld [vmem:[%s281 + $0x98] sm:$0xff]
      %v461 = vld [vmem:[%s281 + $0xa0] sm:$0xff]
      %v462 = vld [vmem:[%s281 + $0xa8] sm:$0xff]
      %v463 = vld [vmem:[%s281 + $0xb0] sm:$0xff]
      %v464 = vld [vmem:[%s281 + $0xb8] sm:$0xff]
      %v465 = vld [vmem:[%s281 + $0xc0] sm:$0xff]
      %v466 = vld [vmem:[%s281 + $0xc8] sm:$0xff]
      %v467 = vld [vmem:[%s281 + $0xd0] sm:$0xff]
      %v468 = vld [vmem:[%s281 + $0xd8] sm:$0xff]
      %v469 = vld [vmem:[%s281 + $0xe0] sm:$0xff]
      %v470 = vld [vmem:[%s281 + $0xe8] sm:$0xff]
      %v471 = vld [vmem:[%s281 + $0xf0] sm:$0xff]
      %v472 = vld [vmem:[%s281 + $0xf8] sm:$0xff]
      %v473 = vld [vmem:[%s281 + $0x100] sm:$0xff]
      %v474 = vld [vmem:[%s281 + $0x108] sm:$0xff]
      %v475 = vld [vmem:[%s281 + $0x110] sm:$0xff]
      %v476 = vld [vmem:[%s281 + $0x118] sm:$0xff]
      %v477 = vld [vmem:[%s281 + $0x120] sm:$0xff]
      %v478 = vld [vmem:[%s281 + $0x128] sm:$0xff]
      %v479 = vld [vmem:[%s281 + $0x130] sm:$0xff]
      %v480 = vld [vmem:[%s281 + $0x138] sm:$0xff]
      %v481 = vld [vmem:[%s281 + $0x140] sm:$0xff]
      %v482 = vld [vmem:[%s281 + $0x148] sm:$0xff]
      %v483 = vld [vmem:[%s281 + $0x150] sm:$0xff]
      %v484 = vld [vmem:[%s281 + $0x158] sm:$0xff]
      %v485 = vld [vmem:[%s281 + $0x160] sm:$0xff]
      %v486 = vld [vmem:[%s281 + $0x168] sm:$0xff]
      %v487 = vld [vmem:[%s281 + $0x170] sm:$0xff]
      %v488 = vld [vmem:[%s281 + $0x178] sm:$0xff]
      %v489 = vld [vmem:[%s281 + $0x180] sm:$0xff]
      %v490 = vld [vmem:[%s281 + $0x188] sm:$0xff]
      %v491 = vld [vmem:[%s281 + $0x190] sm:$0xff]
      %v492 = vld [vmem:[%s281 + $0x198] sm:$0xff]
      %v493 = vld [vmem:[%s281 + $0x1a0] sm:$0xff]
      %v494 = vld [vmem:[%s281 + $0x1a8] sm:$0xff]
      %v495 = vld [vmem:[%s281 + $0x1b0] sm:$0xff]
      %v496 = vld [vmem:[%s281 + $0x1b8] sm:$0xff]
      %v497 = vld [vmem:[%s281 + $0x1c0] sm:$0xff]
      %v498 = vld [vmem:[%s281 + $0x1c8] sm:$0xff]
      %v499 = vld [vmem:[%s281 + $0x1d0] sm:$0xff]
      %v500 = vld [vmem:[%s281 + $0x1d8] sm:$0xff]
      %v501 = vld [vmem:[%s281 + $0x1e0] sm:$0xff]
      %v502 = vld [vmem:[%s281 + $0x1e8] sm:$0xff]
      %v503 = vld [vmem:[%s281 + $0x1f0] sm:$0xff]
      %v504 = vld [vmem:[%s281 + $0x1f8] sm:$0xff]
      %v505 = vld [vmem:[%s291] sm:$0xf]
      %v506 = vld [vmem:[%s291 + $0x4] sm:$0xf]
      %v507 = vld [vmem:[%s291 + $0x8] sm:$0xf]
      %v508 = vld [vmem:[%s291 + $0xc] sm:$0xf]
      %v509 = vld [vmem:[%s291 + $0x10] sm:$0xf]
      %v510 = vld [vmem:[%s291 + $0x14] sm:$0xf]
      %v511 = vld [vmem:[%s291 + $0x18] sm:$0xf]
      %v512 = vld [vmem:[%s291 + $0x1c] sm:$0xf]
      %v513 = vld [vmem:[%s291 + $0x20] sm:$0xf]
      %v514 = vld [vmem:[%s291 + $0x24] sm:$0xf]
      %v515 = vld [vmem:[%s291 + $0x28] sm:$0xf]
      %v516 = vld [vmem:[%s291 + $0x2c] sm:$0xf]
      %v517 = vld [vmem:[%s291 + $0x30] sm:$0xf]
      %v518 = vld [vmem:[%s291 + $0x34] sm:$0xf]
      %v519 = vld [vmem:[%s291 + $0x38] sm:$0xf]
      %v520 = vld [vmem:[%s291 + $0x3c] sm:$0xf]
      %v521 = vld [vmem:[%s291 + $0x40] sm:$0xf]
      %v522 = vld [vmem:[%s291 + $0x44] sm:$0xf]
      %v523 = vld [vmem:[%s291 + $0x48] sm:$0xf]
      %v524 = vld [vmem:[%s291 + $0x4c] sm:$0xf]
      %v525 = vld [vmem:[%s291 + $0x50] sm:$0xf]
      %v526 = vld [vmem:[%s291 + $0x54] sm:$0xf]
      %v527 = vld [vmem:[%s291 + $0x58] sm:$0xf]
      %v528 = vld [vmem:[%s291 + $0x5c] sm:$0xf]
      %v529 = vld [vmem:[%s291 + $0x60] sm:$0xf]
      %v530 = vld [vmem:[%s291 + $0x64] sm:$0xf]
      %v531 = vld [vmem:[%s291 + $0x68] sm:$0xf]
      %v532 = vld [vmem:[%s291 + $0x6c] sm:$0xf]
      %v533 = vld [vmem:[%s291 + $0x70] sm:$0xf]
      %v534 = vld [vmem:[%s291 + $0x74] sm:$0xf]
      %v535 = vld [vmem:[%s291 + $0x78] sm:$0xf]
      %v536 = vld [vmem:[%s291 + $0x7c] sm:$0xf]
      %v601 = vunpack.c.l.b16 %v441
      %v602 = vunpack.c.h.b16 %v441
      %v603 = vunpack.c.l.b16 %v442
      %v604 = vunpack.c.h.b16 %v442
      %v605 = vunpack.c.l.b16 %v443
      %v606 = vunpack.c.h.b16 %v443
      %v607 = vunpack.c.l.b16 %v444
      %v608 = vunpack.c.h.b16 %v444
      %v609 = vunpack.c.l.b16 %v445
      %v610 = vunpack.c.h.b16 %v445
      %v611 = vunpack.c.l.b16 %v446
      %v612 = vunpack.c.h.b16 %v446
      %v613 = vunpack.c.l.b16 %v447
      %v614 = vunpack.c.h.b16 %v447
      %v615 = vunpack.c.l.b16 %v448
      %v616 = vunpack.c.h.b16 %v448
      %v617 = vunpack.c.l.b16 %v449
      %v618 = vunpack.c.h.b16 %v449
      %v619 = vunpack.c.l.b16 %v450
      %v620 = vunpack.c.h.b16 %v450
      %v621 = vunpack.c.l.b16 %v451
      %v622 = vunpack.c.h.b16 %v451
      %v623 = vunpack.c.l.b16 %v452
      %v624 = vunpack.c.h.b16 %v452
      %v625 = vunpack.c.l.b16 %v453
      %v626 = vunpack.c.h.b16 %v453
      %v627 = vunpack.c.l.b16 %v454
      %v628 = vunpack.c.h.b16 %v454
      %v629 = vunpack.c.l.b16 %v455
      %v630 = vunpack.c.h.b16 %v455
      %v631 = vunpack.c.l.b16 %v456
      %v632 = vunpack.c.h.b16 %v456
      %v633 = vunpack.c.l.b16 %v457
      %v634 = vunpack.c.h.b16 %v457
      %v635 = vunpack.c.l.b16 %v458
      %v636 = vunpack.c.h.b16 %v458
      %v637 = vunpack.c.l.b16 %v459
      %v638 = vunpack.c.h.b16 %v459
      %v639 = vunpack.c.l.b16 %v460
      %v640 = vunpack.c.h.b16 %v460
      %v641 = vunpack.c.l.b16 %v461
      %v642 = vunpack.c.h.b16 %v461
      %v643 = vunpack.c.l.b16 %v462
      %v644 = vunpack.c.h.b16 %v462
      %v645 = vunpack.c.l.b16 %v463
      %v646 = vunpack.c.h.b16 %v463
      %v647 = vunpack.c.l.b16 %v464
      %v648 = vunpack.c.h.b16 %v464
      %v649 = vunpack.c.l.b16 %v465
      %v650 = vunpack.c.h.b16 %v465
      %v651 = vunpack.c.l.b16 %v466
      %v652 = vunpack.c.h.b16 %v466
      %v653 = vunpack.c.l.b16 %v467
      %v654 = vunpack.c.h.b16 %v467
      %v655 = vunpack.c.l.b16 %v468
      %v656 = vunpack.c.h.b16 %v468
      %v657 = vunpack.c.l.b16 %v469
      %v658 = vunpack.c.h.b16 %v469
      %v659 = vunpack.c.l.b16 %v470
      %v660 = vunpack.c.h.b16 %v470
      %v661 = vunpack.c.l.b16 %v471
      %v662 = vunpack.c.h.b16 %v471
      %v663 = vunpack.c.l.b16 %v472
      %v664 = vunpack.c.h.b16 %v472
      %v665 = vunpack.c.l.b16 %v473
      %v666 = vunpack.c.h.b16 %v473
      %v667 = vunpack.c.l.b16 %v474
      %v668 = vunpack.c.h.b16 %v474
      %v669 = vunpack.c.l.b16 %v475
      %v670 = vunpack.c.h.b16 %v475
      %v671 = vunpack.c.l.b16 %v476
      %v672 = vunpack.c.h.b16 %v476
      %v673 = vunpack.c.l.b16 %v477
      %v674 = vunpack.c.h.b16 %v477
      %v675 = vunpack.c.l.b16 %v478
      %v676 = vunpack.c.h.b16 %v478
      %v677 = vunpack.c.l.b16 %v479
      %v678 = vunpack.c.h.b16 %v479
      %v679 = vunpack.c.l.b16 %v480
      %v680 = vunpack.c.h.b16 %v480
      %v681 = vunpack.c.l.b16 %v481
      %v682 = vunpack.c.h.b16 %v481
      %v683 = vunpack.c.l.b16 %v482
      %v684 = vunpack.c.h.b16 %v482
      %v685 = vunpack.c.l.b16 %v483
      %v686 = vunpack.c.h.b16 %v483
      %v687 = vunpack.c.l.b16 %v484
      %v688 = vunpack.c.h.b16 %v484
      %v689 = vunpack.c.l.b16 %v485
      %v690 = vunpack.c.h.b16 %v485
      %v691 = vunpack.c.l.b16 %v486
      %v692 = vunpack.c.h.b16 %v486
      %v693 = vunpack.c.l.b16 %v487
      %v694 = vunpack.c.h.b16 %v487
      %v695 = vunpack.c.l.b16 %v488
      %v696 = vunpack.c.h.b16 %v488
      %v697 = vunpack.c.l.b16 %v489
      %v698 = vunpack.c.h.b16 %v489
      %v699 = vunpack.c.l.b16 %v490
      %v700 = vunpack.c.h.b16 %v490
      %v701 = vunpack.c.l.b16 %v491
      %v702 = vunpack.c.h.b16 %v491
      %v703 = vunpack.c.l.b16 %v492
      %v704 = vunpack.c.h.b16 %v492
      %v705 = vunpack.c.l.b16 %v493
      %v706 = vunpack.c.h.b16 %v493
      %v707 = vunpack.c.l.b16 %v494
      %v708 = vunpack.c.h.b16 %v494
      %v709 = vunpack.c.l.b16 %v495
      %v710 = vunpack.c.h.b16 %v495
      %v711 = vunpack.c.l.b16 %v496
      %v712 = vunpack.c.h.b16 %v496
      %v713 = vunpack.c.l.b16 %v497
      %v714 = vunpack.c.h.b16 %v497
      %v715 = vunpack.c.l.b16 %v498
      %v716 = vunpack.c.h.b16 %v498
      %v717 = vunpack.c.l.b16 %v499
      %v718 = vunpack.c.h.b16 %v499
      %v719 = vunpack.c.l.b16 %v500
      %v720 = vunpack.c.h.b16 %v500
      %v721 = vunpack.c.l.b16 %v501
      %v722 = vunpack.c.h.b16 %v501
      %v723 = vunpack.c.l.b16 %v502
      %v724 = vunpack.c.h.b16 %v502
      %v725 = vunpack.c.l.b16 %v503
      %v726 = vunpack.c.h.b16 %v503
      %v727 = vunpack.c.l.b16 %v504
      %v728 = vunpack.c.h.b16 %v504
      %v729 = vpack.c.b16 %v603, %v601
      %v730 = vpack.c.b16 %v604, %v602
      %v731 = vpack.c.b16 %v607, %v605
      %v732 = vpack.c.b16 %v608, %v606
      %v733 = vpack.c.b16 %v611, %v609
      %v734 = vpack.c.b16 %v612, %v610
      %v735 = vpack.c.b16 %v615, %v613
      %v736 = vpack.c.b16 %v616, %v614
      %v737 = vpack.c.b16 %v619, %v617
      %v738 = vpack.c.b16 %v620, %v618
      %v739 = vpack.c.b16 %v623, %v621
      %v740 = vpack.c.b16 %v624, %v622
      %v741 = vpack.c.b16 %v627, %v625
      %v742 = vpack.c.b16 %v628, %v626
      %v743 = vpack.c.b16 %v631, %v629
      %v744 = vpack.c.b16 %v632, %v630
      %v745 = vpack.c.b16 %v635, %v633
      %v746 = vpack.c.b16 %v636, %v634
      %v747 = vpack.c.b16 %v639, %v637
      %v748 = vpack.c.b16 %v640, %v638
      %v749 = vpack.c.b16 %v643, %v641
      %v750 = vpack.c.b16 %v644, %v642
      %v751 = vpack.c.b16 %v647, %v645
      %v752 = vpack.c.b16 %v648, %v646
      %v753 = vpack.c.b16 %v651, %v649
      %v754 = vpack.c.b16 %v652, %v650
      %v755 = vpack.c.b16 %v655, %v653
      %v756 = vpack.c.b16 %v656, %v654
      %v757 = vpack.c.b16 %v659, %v657
      %v758 = vpack.c.b16 %v660, %v658
      %v759 = vpack.c.b16 %v663, %v661
      %v760 = vpack.c.b16 %v664, %v662
      %v761 = vpack.c.b16 %v667, %v665
      %v762 = vpack.c.b16 %v668, %v666
      %v763 = vpack.c.b16 %v671, %v669
      %v764 = vpack.c.b16 %v672, %v670
      %v765 = vpack.c.b16 %v675, %v673
      %v766 = vpack.c.b16 %v676, %v674
      %v767 = vpack.c.b16 %v679, %v677
      %v768 = vpack.c.b16 %v680, %v678
      %v769 = vpack.c.b16 %v683, %v681
      %v770 = vpack.c.b16 %v684, %v682
      %v771 = vpack.c.b16 %v687, %v685
      %v772 = vpack.c.b16 %v688, %v686
      %v773 = vpack.c.b16 %v691, %v689
      %v774 = vpack.c.b16 %v692, %v690
      %v775 = vpack.c.b16 %v695, %v693
      %v776 = vpack.c.b16 %v696, %v694
      %v777 = vpack.c.b16 %v699, %v697
      %v778 = vpack.c.b16 %v700, %v698
      %v779 = vpack.c.b16 %v703, %v701
      %v780 = vpack.c.b16 %v704, %v702
      %v781 = vpack.c.b16 %v707, %v705
      %v782 = vpack.c.b16 %v708, %v706
      %v783 = vpack.c.b16 %v711, %v709
      %v784 = vpack.c.b16 %v712, %v710
      %v785 = vpack.c.b16 %v715, %v713
      %v786 = vpack.c.b16 %v716, %v714
      %v787 = vpack.c.b16 %v719, %v717
      %v788 = vpack.c.b16 %v720, %v718
      %v789 = vpack.c.b16 %v723, %v721
      %v790 = vpack.c.b16 %v724, %v722
      %v791 = vpack.c.b16 %v727, %v725
      %v792 = vpack.c.b16 %v728, %v726
      %v889 = vunpack.c.l.b16 %v505
      %v890 = vunpack.c.l.b16 %v506
      %v891 = vunpack.c.l.b16 %v507
      %v892 = vunpack.c.l.b16 %v508
      %v893 = vunpack.c.l.b16 %v509
      %v894 = vunpack.c.l.b16 %v510
      %v895 = vunpack.c.l.b16 %v511
      %v896 = vunpack.c.l.b16 %v512
      %v897 = vunpack.c.l.b16 %v513
      %v898 = vunpack.c.l.b16 %v514
      %v899 = vunpack.c.l.b16 %v515
      %v900 = vunpack.c.l.b16 %v516
      %v901 = vunpack.c.l.b16 %v517
      %v902 = vunpack.c.l.b16 %v518
      %v903 = vunpack.c.l.b16 %v519
      %v904 = vunpack.c.l.b16 %v520
      %v905 = vunpack.c.l.b16 %v521
      %v906 = vunpack.c.l.b16 %v522
      %v907 = vunpack.c.l.b16 %v523
      %v908 = vunpack.c.l.b16 %v524
      %v909 = vunpack.c.l.b16 %v525
      %v910 = vunpack.c.l.b16 %v526
      %v911 = vunpack.c.l.b16 %v527
      %v912 = vunpack.c.l.b16 %v528
      %v913 = vunpack.c.l.b16 %v529
      %v914 = vunpack.c.l.b16 %v530
      %v915 = vunpack.c.l.b16 %v531
      %v916 = vunpack.c.l.b16 %v532
      %v917 = vunpack.c.l.b16 %v533
      %v918 = vunpack.c.l.b16 %v534
      %v919 = vunpack.c.l.b16 %v535
      %v920 = vunpack.c.l.b16 %v536
      %v921 = vpack.c.b16 %v890, %v889
      %v922 = vpack.c.b16 %v892, %v891
      %v923 = vpack.c.b16 %v894, %v893
      %v924 = vpack.c.b16 %v896, %v895
      %v925 = vpack.c.b16 %v898, %v897
      %v926 = vpack.c.b16 %v900, %v899
      %v927 = vpack.c.b16 %v902, %v901
      %v928 = vpack.c.b16 %v904, %v903
      %v929 = vpack.c.b16 %v906, %v905
      %v930 = vpack.c.b16 %v908, %v907
      %v931 = vpack.c.b16 %v910, %v909
      %v932 = vpack.c.b16 %v912, %v911
      %v933 = vpack.c.b16 %v914, %v913
      %v934 = vpack.c.b16 %v916, %v915
      %v935 = vpack.c.b16 %v918, %v917
      %v936 = vpack.c.b16 %v920, %v919
      %953 = vmatprep.subr.bf16.mxu0 0
      %954 = vmatpush1.bf16.msra.mxu0 %v921
      %955 = vmatprep.subr.bf16.mxu0 0
      %956 = vmatpush1.bf16.msra.mxu0 %v922
      %957 = vmatprep.subr.bf16.mxu0 0
      %958 = vmatpush1.bf16.msra.mxu0 %v923
      %959 = vmatprep.subr.bf16.mxu0 0
      %960 = vmatpush1.bf16.msra.mxu0 %v924
      %961 = vmatprep.subr.bf16.mxu0 0
      %962 = vmatpush1.bf16.msra.mxu0 %v925
      %963 = vmatprep.subr.bf16.mxu0 0
      %964 = vmatpush1.bf16.msra.mxu0 %v926
      %965 = vmatprep.subr.bf16.mxu0 0
      %966 = vmatpush1.bf16.msra.mxu0 %v927
      %967 = vmatprep.subr.bf16.mxu0 0
      %968 = vmatpush1.bf16.msra.mxu0 %v928
      %969 = vmatprep.subr.bf16.mxu0 0
      %970 = vmatpush1.bf16.msra.mxu0 %v929
      %971 = vmatprep.subr.bf16.mxu0 0
      %972 = vmatpush1.bf16.msra.mxu0 %v930
      %973 = vmatprep.subr.bf16.mxu0 0
      %974 = vmatpush1.bf16.msra.mxu0 %v931
      %975 = vmatprep.subr.bf16.mxu0 0
      %976 = vmatpush1.bf16.msra.mxu0 %v932
      %977 = vmatprep.subr.bf16.mxu0 0
      %978 = vmatpush1.bf16.msra.mxu0 %v933
      %979 = vmatprep.subr.bf16.mxu0 0
      %980 = vmatpush1.bf16.msra.mxu0 %v934
      %981 = vmatprep.subr.bf16.mxu0 0
      %982 = vmatpush1.bf16.msra.mxu0 %v935
      %983 = vmatprep.subr.bf16.mxu0 0
      %984 = vmatpush1.bf16.msra.mxu0 %v936
      %985 = vmatprep.mubr.bf16.mxu0 %v730
      %986 = vmatmul.mubr.bf16.gmra.mrb[0].mxu0 %v729
      %v987 = vpop.f32.mrb[0].mxu0
      %v988 = vadd.f32 0.0, %v987
      %v989 = vpop.f32.mrb[0].mxu0
      %v990 = vpop.f32.mrb[0].mxu0
      %v991 = vadd.f32 0.0, %v990
      %v992 = vpop.f32.mrb[0].mxu0
      %993 = vmatprep.mubr.bf16.mxu0 %v732
      %994 = vmatmul.mubr.bf16.gmra.mrb[0].mxu0 %v731
      %v995 = vpop.f32.mrb[0].mxu0
      %v996 = vadd.f32 0.0, %v995
      %v997 = vpop.f32.mrb[0].mxu0
      %v998 = vpop.f32.mrb[0].mxu0
      %v999 = vadd.f32 0.0, %v998
      %v1000 = vpop.f32.mrb[0].mxu0
      %1001 = vmatprep.mubr.bf16.mxu0 %v734
      %1002 = vmatmul.mubr.bf16.gmra.mrb[0].mxu0 %v733
      %v1003 = vpop.f32.mrb[0].mxu0
      %v1004 = vadd.f32 0.0, %v1003
      %v1005 = vpop.f32.mrb[0].mxu0
      %v1006 = vpop.f32.mrb[0].mxu0
      %v1007 = vadd.f32 0.0, %v1006
      %v1008 = vpop.f32.mrb[0].mxu0
      %1009 = vmatprep.mubr.bf16.mxu0 %v736
      %1010 = vmatmul.mubr.bf16.gmra.mrb[0].mxu0 %v735
      %v1011 = vpop.f32.mrb[0].mxu0
      %v1012 = vadd.f32 0.0, %v1011
      %v1013 = vpop.f32.mrb[0].mxu0
      %v1014 = vpop.f32.mrb[0].mxu0
      %v1015 = vadd.f32 0.0, %v1014
      %v1016 = vpop.f32.mrb[0].mxu0
      %1017 = vmatprep.mubr.bf16.mxu0 %v738
      %1018 = vmatmul.mubr.bf16.gmra.mrb[0].mxu0 %v737
      %v1019 = vpop.f32.mrb[0].mxu0
      %v1020 = vadd.f32 0.0, %v1019
      %v1021 = vpop.f32.mrb[0].mxu0
      %v1022 = vpop.f32.mrb[0].mxu0
      %v1023 = vadd.f32 0.0, %v1022
      %v1024 = vpop.f32.mrb[0].mxu0
      %1025 = vmatprep.mubr.bf16.mxu0 %v740
      %1026 = vmatmul.mubr.bf16.gmra.mrb[0].mxu0 %v739
      %v1027 = vpop.f32.mrb[0].mxu0
      %v1028 = vadd.f32 0.0, %v1027
      %v1029 = vpop.f32.mrb[0].mxu0
      %v1030 = vpop.f32.mrb[0].mxu0
      %v1031 = vadd.f32 0.0, %v1030
      %v1032 = vpop.f32.mrb[0].mxu0
      %1033 = vmatprep.mubr.bf16.mxu0 %v742
      %1034 = vmatmul.mubr.bf16.gmra.mrb[0].mxu0 %v741
      %v1035 = vpop.f32.mrb[0].mxu0
      %v1036 = vadd.f32 0.0, %v1035
      %v1037 = vpop.f32.mrb[0].mxu0
      %v1038 = vpop.f32.mrb[0].mxu0
      %v1039 = vadd.f32 0.0, %v1038
      %v1040 = vpop.f32.mrb[0].mxu0
      %1041 = vmatprep.mubr.bf16.mxu0 %v744
      %1042 = vmatmul.mubr.bf16.gmra.mrb[0].mxu0 %v743
      %v1043 = vpop.f32.mrb[0].mxu0
      %v1044 = vadd.f32 0.0, %v1043
      %v1045 = vpop.f32.mrb[0].mxu0
      %v1046 = vpop.f32.mrb[0].mxu0
      %v1047 = vadd.f32 0.0, %v1046
      %v1048 = vpop.f32.mrb[0].mxu0
      %1049 = vmatprep.mubr.bf16.mxu0 %v746
      %1050 = vmatmul.mubr.bf16.gmra.mrb[0].mxu0 %v745
      %v1051 = vpop.f32.mrb[0].mxu0
      %v1052 = vadd.f32 0.0, %v1051
      %v1053 = vpop.f32.mrb[0].mxu0
      %v1054 = vpop.f32.mrb[0].mxu0
      %v1055 = vadd.f32 0.0, %v1054
      %v1056 = vpop.f32.mrb[0].mxu0
      %1057 = vmatprep.mubr.bf16.mxu0 %v748
      %1058 = vmatmul.mubr.bf16.gmra.mrb[0].mxu0 %v747
      %v1059 = vpop.f32.mrb[0].mxu0
      %v1060 = vadd.f32 0.0, %v1059
      %v1061 = vpop.f32.mrb[0].mxu0
      %v1062 = vpop.f32.mrb[0].mxu0
      %v1063 = vadd.f32 0.0, %v1062
      %v1064 = vpop.f32.mrb[0].mxu0
      %1065 = vmatprep.mubr.bf16.mxu0 %v750
      %1066 = vmatmul.mubr.bf16.gmra.mrb[0].mxu0 %v749
      %v1067 = vpop.f32.mrb[0].mxu0
      %v1068 = vadd.f32 0.0, %v1067
      %v1069 = vpop.f32.mrb[0].mxu0
      %v1070 = vpop.f32.mrb[0].mxu0
      %v1071 = vadd.f32 0.0, %v1070
      %v1072 = vpop.f32.mrb[0].mxu0
      %1073 = vmatprep.mubr.bf16.mxu0 %v752
      %1074 = vmatmul.mubr.bf16.gmra.mrb[0].mxu0 %v751
      %v1075 = vpop.f32.mrb[0].mxu0
      %v1076 = vadd.f32 0.0, %v1075
      %v1077 = vpop.f32.mrb[0].mxu0
      %v1078 = vpop.f32.mrb[0].mxu0
      %v1079 = vadd.f32 0.0, %v1078
      %v1080 = vpop.f32.mrb[0].mxu0
      %1081 = vmatprep.mubr.bf16.mxu0 %v754
      %1082 = vmatmul.mubr.bf16.gmra.mrb[0].mxu0 %v753
      %v1083 = vpop.f32.mrb[0].mxu0
      %v1084 = vadd.f32 0.0, %v1083
      %v1085 = vpop.f32.mrb[0].mxu0
      %v1086 = vpop.f32.mrb[0].mxu0
      %v1087 = vadd.f32 0.0, %v1086
      %v1088 = vpop.f32.mrb[0].mxu0
      %1089 = vmatprep.mubr.bf16.mxu0 %v756
      %1090 = vmatmul.mubr.bf16.gmra.mrb[0].mxu0 %v755
      %v1091 = vpop.f32.mrb[0].mxu0
      %v1092 = vadd.f32 0.0, %v1091
      %v1093 = vpop.f32.mrb[0].mxu0
      %v1094 = vpop.f32.mrb[0].mxu0
      %v1095 = vadd.f32 0.0, %v1094
      %v1096 = vpop.f32.mrb[0].mxu0
      %1097 = vmatprep.mubr.bf16.mxu0 %v758
      %1098 = vmatmul.mubr.bf16.gmra.mrb[0].mxu0 %v757
      %v1099 = vpop.f32.mrb[0].mxu0
      %v1100 = vadd.f32 0.0, %v1099
      %v1101 = vpop.f32.mrb[0].mxu0
      %v1102 = vpop.f32.mrb[0].mxu0
      %v1103 = vadd.f32 0.0, %v1102
      %v1104 = vpop.f32.mrb[0].mxu0
      %1105 = vmatprep.mubr.bf16.mxu0 %v760
      %1106 = vmatmul.mubr.bf16.gmra.mrb[0].mxu0 %v759
      %v1107 = vpop.f32.mrb[0].mxu0
      %v1108 = vadd.f32 0.0, %v1107
      %v1109 = vpop.f32.mrb[0].mxu0
      %v1110 = vpop.f32.mrb[0].mxu0
      %v1111 = vadd.f32 0.0, %v1110
      %v1112 = vpop.f32.mrb[0].mxu0
      %1113 = vmatprep.mubr.bf16.mxu0 %v762
      %1114 = vmatmul.mubr.bf16.gmra.mrb[0].mxu0 %v761
      %v1115 = vpop.f32.mrb[0].mxu0
      %v1116 = vadd.f32 0.0, %v1115
      %v1117 = vpop.f32.mrb[0].mxu0
      %v1118 = vpop.f32.mrb[0].mxu0
      %v1119 = vadd.f32 0.0, %v1118
      %v1120 = vpop.f32.mrb[0].mxu0
      %1121 = vmatprep.mubr.bf16.mxu0 %v764
      %1122 = vmatmul.mubr.bf16.gmra.mrb[0].mxu0 %v763
      %v1123 = vpop.f32.mrb[0].mxu0
      %v1124 = vadd.f32 0.0, %v1123
      %v1125 = vpop.f32.mrb[0].mxu0
      %v1126 = vpop.f32.mrb[0].mxu0
      %v1127 = vadd.f32 0.0, %v1126
      %v1128 = vpop.f32.mrb[0].mxu0
      %1129 = vmatprep.mubr.bf16.mxu0 %v766
      %1130 = vmatmul.mubr.bf16.gmra.mrb[0].mxu0 %v765
      %v1131 = vpop.f32.mrb[0].mxu0
      %v1132 = vadd.f32 0.0, %v1131
      %v1133 = vpop.f32.mrb[0].mxu0
      %v1134 = vpop.f32.mrb[0].mxu0
      %v1135 = vadd.f32 0.0, %v1134
      %v1136 = vpop.f32.mrb[0].mxu0
      %1137 = vmatprep.mubr.bf16.mxu0 %v768
      %1138 = vmatmul.mubr.bf16.gmra.mrb[0].mxu0 %v767
      %v1139 = vpop.f32.mrb[0].mxu0
      %v1140 = vadd.f32 0.0, %v1139
      %v1141 = vpop.f32.mrb[0].mxu0
      %v1142 = vpop.f32.mrb[0].mxu0
      %v1143 = vadd.f32 0.0, %v1142
      %v1144 = vpop.f32.mrb[0].mxu0
      %1145 = vmatprep.mubr.bf16.mxu0 %v770
      %1146 = vmatmul.mubr.bf16.gmra.mrb[0].mxu0 %v769
      %v1147 = vpop.f32.mrb[0].mxu0
      %v1148 = vadd.f32 0.0, %v1147
      %v1149 = vpop.f32.mrb[0].mxu0
      %v1150 = vpop.f32.mrb[0].mxu0
      %v1151 = vadd.f32 0.0, %v1150
      %v1152 = vpop.f32.mrb[0].mxu0
      %1153 = vmatprep.mubr.bf16.mxu0 %v772
      %1154 = vmatmul.mubr.bf16.gmra.mrb[0].mxu0 %v771
      %v1155 = vpop.f32.mrb[0].mxu0
      %v1156 = vadd.f32 0.0, %v1155
      %v1157 = vpop.f32.mrb[0].mxu0
      %v1158 = vpop.f32.mrb[0].mxu0
      %v1159 = vadd.f32 0.0, %v1158
      %v1160 = vpop.f32.mrb[0].mxu0
      %1161 = vmatprep.mubr.bf16.mxu0 %v774
      %1162 = vmatmul.mubr.bf16.gmra.mrb[0].mxu0 %v773
      %v1163 = vpop.f32.mrb[0].mxu0
      %v1164 = vadd.f32 0.0, %v1163
      %v1165 = vpop.f32.mrb[0].mxu0
      %v1166 = vpop.f32.mrb[0].mxu0
      %v1167 = vadd.f32 0.0, %v1166
      %v1168 = vpop.f32.mrb[0].mxu0
      %1169 = vmatprep.mubr.bf16.mxu0 %v776
      %1170 = vmatmul.mubr.bf16.gmra.mrb[0].mxu0 %v775
      %v1171 = vpop.f32.mrb[0].mxu0
      %v1172 = vadd.f32 0.0, %v1171
      %v1173 = vpop.f32.mrb[0].mxu0
      %v1174 = vpop.f32.mrb[0].mxu0
      %v1175 = vadd.f32 0.0, %v1174
      %v1176 = vpop.f32.mrb[0].mxu0
      %1177 = vmatprep.mubr.bf16.mxu0 %v778
      %1178 = vmatmul.mubr.bf16.gmra.mrb[0].mxu0 %v777
      %v1179 = vpop.f32.mrb[0].mxu0
      %v1180 = vadd.f32 0.0, %v1179
      %v1181 = vpop.f32.mrb[0].mxu0
      %v1182 = vpop.f32.mrb[0].mxu0
      %v1183 = vadd.f32 0.0, %v1182
      %v1184 = vpop.f32.mrb[0].mxu0
      %1185 = vmatprep.mubr.bf16.mxu0 %v780
      %1186 = vmatmul.mubr.bf16.gmra.mrb[0].mxu0 %v779
      %v1187 = vpop.f32.mrb[0].mxu0
      %v1188 = vadd.f32 0.0, %v1187
      %v1189 = vpop.f32.mrb[0].mxu0
      %v1190 = vpop.f32.mrb[0].mxu0
      %v1191 = vadd.f32 0.0, %v1190
      %v1192 = vpop.f32.mrb[0].mxu0
      %1193 = vmatprep.mubr.bf16.mxu0 %v782
      %1194 = vmatmul.mubr.bf16.gmra.mrb[0].mxu0 %v781
      %v1195 = vpop.f32.mrb[0].mxu0
      %v1196 = vadd.f32 0.0, %v1195
      %v1197 = vpop.f32.mrb[0].mxu0
      %v1198 = vpop.f32.mrb[0].mxu0
      %v1199 = vadd.f32 0.0, %v1198
      %v1200 = vpop.f32.mrb[0].mxu0
      %1201 = vmatprep.mubr.bf16.mxu0 %v784
      %1202 = vmatmul.mubr.bf16.gmra.mrb[0].mxu0 %v783
      %v1203 = vpop.f32.mrb[0].mxu0
      %v1204 = vadd.f32 0.0, %v1203
      %v1205 = vpop.f32.mrb[0].mxu0
      %v1206 = vpop.f32.mrb[0].mxu0
      %v1207 = vadd.f32 0.0, %v1206
      %v1208 = vpop.f32.mrb[0].mxu0
      %1209 = vmatprep.mubr.bf16.mxu0 %v786
      %1210 = vmatmul.mubr.bf16.gmra.mrb[0].mxu0 %v785
      %v1211 = vpop.f32.mrb[0].mxu0
      %v1212 = vadd.f32 0.0, %v1211
      %v1213 = vpop.f32.mrb[0].mxu0
      %v1214 = vpop.f32.mrb[0].mxu0
      %v1215 = vadd.f32 0.0, %v1214
      %v1216 = vpop.f32.mrb[0].mxu0
      %1217 = vmatprep.mubr.bf16.mxu0 %v788
      %1218 = vmatmul.mubr.bf16.gmra.mrb[0].mxu0 %v787
      %v1219 = vpop.f32.mrb[0].mxu0
      %v1220 = vadd.f32 0.0, %v1219
      %v1221 = vpop.f32.mrb[0].mxu0
      %v1222 = vpop.f32.mrb[0].mxu0
      %v1223 = vadd.f32 0.0, %v1222
      %v1224 = vpop.f32.mrb[0].mxu0
      %1225 = vmatprep.mubr.bf16.mxu0 %v790
      %1226 = vmatmul.mubr.bf16.gmra.mrb[0].mxu0 %v789
      %v1227 = vpop.f32.mrb[0].mxu0
      %v1228 = vadd.f32 0.0, %v1227
      %v1229 = vpop.f32.mrb[0].mxu0
      %v1230 = vpop.f32.mrb[0].mxu0
      %v1231 = vadd.f32 0.0, %v1230
      %v1232 = vpop.f32.mrb[0].mxu0
      %1233 = vmatprep.mubr.bf16.mxu0 %v792
      %1234 = vmatmul.mubr.bf16.gmra.mrb[0].mxu0 %v791
      %v1235 = vpop.f32.mrb[0].mxu0
      %v1236 = vadd.f32 0.0, %v1235
      %v1237 = vpop.f32.mrb[0].mxu0
      %v1238 = vpop.f32.mrb[0].mxu0
      %v1239 = vadd.f32 0.0, %v1238
      %v1240 = vpop.f32.mrb[0].mxu0
      %1241 = vdwg.mxu0
      %v1242 = vadd.f32 %v377, %v988
      %v1243 = vadd.f32 %v378, %v991
      %v1244 = vadd.f32 %v379, %v996
      %v1245 = vadd.f32 %v380, %v999
      %v1246 = vadd.f32 %v381, %v1004
      %v1247 = vadd.f32 %v382, %v1007
      %v1248 = vadd.f32 %v383, %v1012
      %v1249 = vadd.f32 %v384, %v1015
      %v1250 = vadd.f32 %v385, %v1020
      %v1251 = vadd.f32 %v386, %v1023
      %v1252 = vadd.f32 %v387, %v1028
      %v1253 = vadd.f32 %v388, %v1031
      %v1254 = vadd.f32 %v389, %v1036
      %v1255 = vadd.f32 %v390, %v1039
      %v1256 = vadd.f32 %v391, %v1044
      %v1257 = vadd.f32 %v392, %v1047
      %v1258 = vadd.f32 %v393, %v1052
      %v1259 = vadd.f32 %v394, %v1055
      %v1260 = vadd.f32 %v395, %v1060
      %v1261 = vadd.f32 %v396, %v1063
      %v1262 = vadd.f32 %v397, %v1068
      %v1263 = vadd.f32 %v398, %v1071
      %v1264 = vadd.f32 %v399, %v1076
      %v1265 = vadd.f32 %v400, %v1079
      %v1266 = vadd.f32 %v401, %v1084
      %v1267 = vadd.f32 %v402, %v1087
      %v1268 = vadd.f32 %v403, %v1092
      %v1269 = vadd.f32 %v404, %v1095
      %v1270 = vadd.f32 %v405, %v1100
      %v1271 = vadd.f32 %v406, %v1103
      %v1272 = vadd.f32 %v407, %v1108
      %v1273 = vadd.f32 %v408, %v1111
      %v1274 = vadd.f32 %v409, %v1116
      %v1275 = vadd.f32 %v410, %v1119
      %v1276 = vadd.f32 %v411, %v1124
      %v1277 = vadd.f32 %v412, %v1127
      %v1278 = vadd.f32 %v413, %v1132
      %v1279 = vadd.f32 %v414, %v1135
      %v1280 = vadd.f32 %v415, %v1140
      %v1281 = vadd.f32 %v416, %v1143
      %v1282 = vadd.f32 %v417, %v1148
      %v1283 = vadd.f32 %v418, %v1151
      %v1284 = vadd.f32 %v419, %v1156
      %v1285 = vadd.f32 %v420, %v1159
      %v1286 = vadd.f32 %v421, %v1164
      %v1287 = vadd.f32 %v422, %v1167
      %v1288 = vadd.f32 %v423, %v1172
      %v1289 = vadd.f32 %v424, %v1175
      %v1290 = vadd.f32 %v425, %v1180
      %v1291 = vadd.f32 %v426, %v1183
      %v1292 = vadd.f32 %v427, %v1188
      %v1293 = vadd.f32 %v428, %v1191
      %v1294 = vadd.f32 %v429, %v1196
      %v1295 = vadd.f32 %v430, %v1199
      %v1296 = vadd.f32 %v431, %v1204
      %v1297 = vadd.f32 %v432, %v1207
      %v1298 = vadd.f32 %v433, %v1212
      %v1299 = vadd.f32 %v434, %v1215
      %v1300 = vadd.f32 %v435, %v1220
      %v1301 = vadd.f32 %v436, %v1223
      %v1302 = vadd.f32 %v437, %v1228
      %v1303 = vadd.f32 %v438, %v1231
      %v1304 = vadd.f32 %v439, %v1236
      %v1305 = vadd.f32 %v440, %v1239
      %1306 = vst [vmem:[#allocation2] sm:$0xff] %v1242
      %1307 = vst [vmem:[#allocation2 + $0x8] sm:$0xff] %v1243
      %1308 = vst [vmem:[#allocation2 + $0x10] sm:$0xff] %v1244
      %1309 = vst [vmem:[#allocation2 + $0x18] sm:$0xff] %v1245
      %1310 = vst [vmem:[#allocation2 + $0x20] sm:$0xff] %v1246
      %1311 = vst [vmem:[#allocation2 + $0x28] sm:$0xff] %v1247
      %1312 = vst [vmem:[#allocation2 + $0x30] sm:$0xff] %v1248
      %1313 = vst [vmem:[#allocation2 + $0x38] sm:$0xff] %v1249
      %1314 = vst [vmem:[#allocation2 + $0x40] sm:$0xff] %v1250
      %1315 = vst [vmem:[#allocation2 + $0x48] sm:$0xff] %v1251
      %1316 = vst [vmem:[#allocation2 + $0x50] sm:$0xff] %v1252
      %1317 = vst [vmem:[#allocation2 + $0x58] sm:$0xff] %v1253
      %1318 = vst [vmem:[#allocation2 + $0x60] sm:$0xff] %v1254
      %1319 = vst [vmem:[#allocation2 + $0x68] sm:$0xff] %v1255
      %1320 = vst [vmem:[#allocation2 + $0x70] sm:$0xff] %v1256
      %1321 = vst [vmem:[#allocation2 + $0x78] sm:$0xff] %v1257
      %1322 = vst [vmem:[#allocation2 + $0x80] sm:$0xff] %v1258
      %1323 = vst [vmem:[#allocation2 + $0x88] sm:$0xff] %v1259
      %1324 = vst [vmem:[#allocation2 + $0x90] sm:$0xff] %v1260
      %1325 = vst [vmem:[#allocation2 + $0x98] sm:$0xff] %v1261
      %1326 = vst [vmem:[#allocation2 + $0xa0] sm:$0xff] %v1262
      %1327 = vst [vmem:[#allocation2 + $0xa8] sm:$0xff] %v1263
      %1328 = vst [vmem:[#allocation2 + $0xb0] sm:$0xff] %v1264
      %1329 = vst [vmem:[#allocation2 + $0xb8] sm:$0xff] %v1265
      %1330 = vst [vmem:[#allocation2 + $0xc0] sm:$0xff] %v1266
      %1331 = vst [vmem:[#allocation2 + $0xc8] sm:$0xff] %v1267
      %1332 = vst [vmem:[#allocation2 + $0xd0] sm:$0xff] %v1268
      %1333 = vst [vmem:[#allocation2 + $0xd8] sm:$0xff] %v1269
      %1334 = vst [vmem:[#allocation2 + $0xe0] sm:$0xff] %v1270
      %1335 = vst [vmem:[#allocation2 + $0xe8] sm:$0xff] %v1271
      %1336 = vst [vmem:[#allocation2 + $0xf0] sm:$0xff] %v1272
      %1337 = vst [vmem:[#allocation2 + $0xf8] sm:$0xff] %v1273
      %1338 = vst [vmem:[#allocation2 + $0x100] sm:$0xff] %v1274
      %1339 = vst [vmem:[#allocation2 + $0x108] sm:$0xff] %v1275
      %1340 = vst [vmem:[#allocation2 + $0x110] sm:$0xff] %v1276
      %1341 = vst [vmem:[#allocation2 + $0x118] sm:$0xff] %v1277
      %1342 = vst [vmem:[#allocation2 + $0x120] sm:$0xff] %v1278
      %1343 = vst [vmem:[#allocation2 + $0x128] sm:$0xff] %v1279
      %1344 = vst [vmem:[#allocation2 + $0x130] sm:$0xff] %v1280
      %1345 = vst [vmem:[#allocation2 + $0x138] sm:$0xff] %v1281
      %1346 = vst [vmem:[#allocation2 + $0x140] sm:$0xff] %v1282
      %1347 = vst [vmem:[#allocation2 + $0x148] sm:$0xff] %v1283
      %1348 = vst [vmem:[#allocation2 + $0x150] sm:$0xff] %v1284
      %1349 = vst [vmem:[#allocation2 + $0x158] sm:$0xff] %v1285
      %1350 = vst [vmem:[#allocation2 + $0x160] sm:$0xff] %v1286
      %1351 = vst [vmem:[#allocation2 + $0x168] sm:$0xff] %v1287
      %1352 = vst [vmem:[#allocation2 + $0x170] sm:$0xff] %v1288
      %1353 = vst [vmem:[#allocation2 + $0x178] sm:$0xff] %v1289
      %1354 = vst [vmem:[#allocation2 + $0x180] sm:$0xff] %v1290
      %1355 = vst [vmem:[#allocation2 + $0x188] sm:$0xff] %v1291
      %1356 = vst [vmem:[#allocation2 + $0x190] sm:$0xff] %v1292
      %1357 = vst [vmem:[#allocation2 + $0x198] sm:$0xff] %v1293
      %1358 = vst [vmem:[#allocation2 + $0x1a0] sm:$0xff] %v1294
      %1359 = vst [vmem:[#allocation2 + $0x1a8] sm:$0xff] %v1295
      %1360 = vst [vmem:[#allocation2 + $0x1b0] sm:$0xff] %v1296
      %1361 = vst [vmem:[#allocation2 + $0x1b8] sm:$0xff] %v1297
      %1362 = vst [vmem:[#allocation2 + $0x1c0] sm:$0xff] %v1298
      %1363 = vst [vmem:[#allocation2 + $0x1c8] sm:$0xff] %v1299
      %1364 = vst [vmem:[#allocation2 + $0x1d0] sm:$0xff] %v1300
      %1365 = vst [vmem:[#allocation2 + $0x1d8] sm:$0xff] %v1301
      %1366 = vst [vmem:[#allocation2 + $0x1e0] sm:$0xff] %v1302
      %1367 = vst [vmem:[#allocation2 + $0x1e8] sm:$0xff] %v1303
      %1368 = vst [vmem:[#allocation2 + $0x1f0] sm:$0xff] %v1304
      %1369 = vst [vmem:[#allocation2 + $0x1f8] sm:$0xff] %v1305
      // Predicated region
      $region41: #{resnet_forward.3} parent=35 // pred_check
        %p1370 = pneg %p309
      $region42: #{resnet_forward.3} parent=35 // pred_check_branch
        %1372 = sbr.rel (%p1370) target = $region44
      $region43: #{resnet_forward.3} parent=35 // pred_region
        %v1373 = vld [vmem:[#allocation2] sm:$0xff]
        %v1374 = vld [vmem:[#allocation2 + $0x8] sm:$0xff]
        %v1375 = vld [vmem:[#allocation2 + $0x10] sm:$0xff]
        %v1376 = vld [vmem:[#allocation2 + $0x18] sm:$0xff]
        %v1377 = vld [vmem:[#allocation2 + $0x20] sm:$0xff]
        %v1378 = vld [vmem:[#allocation2 + $0x28] sm:$0xff]
        %v1379 = vld [vmem:[#allocation2 + $0x30] sm:$0xff]
        %v1380 = vld [vmem:[#allocation2 + $0x38] sm:$0xff]
        %v1381 = vld [vmem:[#allocation2 + $0x40] sm:$0xff]
        %v1382 = vld [vmem:[#allocation2 + $0x48] sm:$0xff]
        %v1383 = vld [vmem:[#allocation2 + $0x50] sm:$0xff]
        %v1384 = vld [vmem:[#allocation2 + $0x58] sm:$0xff]
        %v1385 = vld [vmem:[#allocation2 + $0x60] sm:$0xff]
        %v1386 = vld [vmem:[#allocation2 + $0x68] sm:$0xff]
        %v1387 = vld [vmem:[#allocation2 + $0x70] sm:$0xff]
        %v1388 = vld [vmem:[#allocation2 + $0x78] sm:$0xff]
        %v1389 = vld [vmem:[#allocation2 + $0x80] sm:$0xff]
        %v1390 = vld [vmem:[#allocation2 + $0x88] sm:$0xff]
        %v1391 = vld [vmem:[#allocation2 + $0x90] sm:$0xff]
        %v1392 = vld [vmem:[#allocation2 + $0x98] sm:$0xff]
        %v1393 = vld [vmem:[#allocation2 + $0xa0] sm:$0xff]
        %v1394 = vld [vmem:[#allocation2 + $0xa8] sm:$0xff]
        %v1395 = vld [vmem:[#allocation2 + $0xb0] sm:$0xff]
        %v1396 = vld [vmem:[#allocation2 + $0xb8] sm:$0xff]
        %v1397 = vld [vmem:[#allocation2 + $0xc0] sm:$0xff]
        %v1398 = vld [vmem:[#allocation2 + $0xc8] sm:$0xff]
        %v1399 = vld [vmem:[#allocation2 + $0xd0] sm:$0xff]
        %v1400 = vld [vmem:[#allocation2 + $0xd8] sm:$0xff]
        %v1401 = vld [vmem:[#allocation2 + $0xe0] sm:$0xff]
        %v1402 = vld [vmem:[#allocation2 + $0xe8] sm:$0xff]
        %v1403 = vld [vmem:[#allocation2 + $0xf0] sm:$0xff]
        %v1404 = vld [vmem:[#allocation2 + $0xf8] sm:$0xff]
        %v1405 = vld [vmem:[#allocation2 + $0x100] sm:$0xff]
        %v1406 = vld [vmem:[#allocation2 + $0x108] sm:$0xff]
        %v1407 = vld [vmem:[#allocation2 + $0x110] sm:$0xff]
        %v1408 = vld [vmem:[#allocation2 + $0x118] sm:$0xff]
        %v1409 = vld [vmem:[#allocation2 + $0x120] sm:$0xff]
        %v1410 = vld [vmem:[#allocation2 + $0x128] sm:$0xff]
        %v1411 = vld [vmem:[#allocation2 + $0x130] sm:$0xff]
        %v1412 = vld [vmem:[#allocation2 + $0x138] sm:$0xff]
        %v1413 = vld [vmem:[#allocation2 + $0x140] sm:$0xff]
        %v1414 = vld [vmem:[#allocation2 + $0x148] sm:$0xff]
        %v1415 = vld [vmem:[#allocation2 + $0x150] sm:$0xff]
        %v1416 = vld [vmem:[#allocation2 + $0x158] sm:$0xff]
        %v1417 = vld [vmem:[#allocation2 + $0x160] sm:$0xff]
        %v1418 = vld [vmem:[#allocation2 + $0x168] sm:$0xff]
        %v1419 = vld [vmem:[#allocation2 + $0x170] sm:$0xff]
        %v1420 = vld [vmem:[#allocation2 + $0x178] sm:$0xff]
        %v1421 = vld [vmem:[#allocation2 + $0x180] sm:$0xff]
        %v1422 = vld [vmem:[#allocation2 + $0x188] sm:$0xff]
        %v1423 = vld [vmem:[#allocation2 + $0x190] sm:$0xff]
        %v1424 = vld [vmem:[#allocation2 + $0x198] sm:$0xff]
        %v1425 = vld [vmem:[#allocation2 + $0x1a0] sm:$0xff]
        %v1426 = vld [vmem:[#allocation2 + $0x1a8] sm:$0xff]
        %v1427 = vld [vmem:[#allocation2 + $0x1b0] sm:$0xff]
        %v1428 = vld [vmem:[#allocation2 + $0x1b8] sm:$0xff]
        %v1429 = vld [vmem:[#allocation2 + $0x1c0] sm:$0xff]
        %v1430 = vld [vmem:[#allocation2 + $0x1c8] sm:$0xff]
        %v1431 = vld [vmem:[#allocation2 + $0x1d0] sm:$0xff]
        %v1432 = vld [vmem:[#allocation2 + $0x1d8] sm:$0xff]
        %v1433 = vld [vmem:[#allocation2 + $0x1e0] sm:$0xff]
        %v1434 = vld [vmem:[#allocation2 + $0x1e8] sm:$0xff]
        %v1435 = vld [vmem:[#allocation2 + $0x1f0] sm:$0xff]
        %v1436 = vld [vmem:[#allocation2 + $0x1f8] sm:$0xff]
        %v1437 = vld [vmem:[%s295] sm:$0x1]
        %v1439 = vlaneseq
        %v1440 = vshrl.u32 %v1439, 7
        %v1441 = vsub.s32 0, %v1440
        %v1442 = vrot.slane %v1437, %v1441
        %v1444 = vmul.f32 %v1373, %v1442
        %v1445 = vmul.f32 %v1374, %v1442
        %v1446 = vmul.f32 %v1375, %v1442
        %v1447 = vmul.f32 %v1376, %v1442
        %v1448 = vmul.f32 %v1377, %v1442
        %v1449 = vmul.f32 %v1378, %v1442
        %v1450 = vmul.f32 %v1379, %v1442
        %v1451 = vmul.f32 %v1380, %v1442
        %v1452 = vmul.f32 %v1381, %v1442
        %v1453 = vmul.f32 %v1382, %v1442
        %v1454 = vmul.f32 %v1383, %v1442
        %v1455 = vmul.f32 %v1384, %v1442
        %v1456 = vmul.f32 %v1385, %v1442
        %v1457 = vmul.f32 %v1386, %v1442
        %v1458 = vmul.f32 %v1387, %v1442
        %v1459 = vmul.f32 %v1388, %v1442
        %v1460 = vmul.f32 %v1389, %v1442
        %v1461 = vmul.f32 %v1390, %v1442
        %v1462 = vmul.f32 %v1391, %v1442
        %v1463 = vmul.f32 %v1392, %v1442
        %v1464 = vmul.f32 %v1393, %v1442
        %v1465 = vmul.f32 %v1394, %v1442
        %v1466 = vmul.f32 %v1395, %v1442
        %v1467 = vmul.f32 %v1396, %v1442
        %v1468 = vmul.f32 %v1397, %v1442
        %v1469 = vmul.f32 %v1398, %v1442
        %v1470 = vmul.f32 %v1399, %v1442
        %v1471 = vmul.f32 %v1400, %v1442
        %v1472 = vmul.f32 %v1401, %v1442
        %v1473 = vmul.f32 %v1402, %v1442
        %v1474 = vmul.f32 %v1403, %v1442
        %v1475 = vmul.f32 %v1404, %v1442
        %v1476 = vmul.f32 %v1405, %v1442
        %v1477 = vmul.f32 %v1406, %v1442
        %v1478 = vmul.f32 %v1407, %v1442
        %v1479 = vmul.f32 %v1408, %v1442
        %v1480 = vmul.f32 %v1409, %v1442
        %v1481 = vmul.f32 %v1410, %v1442
        %v1482 = vmul.f32 %v1411, %v1442
        %v1483 = vmul.f32 %v1412, %v1442
        %v1484 = vmul.f32 %v1413, %v1442
        %v1485 = vmul.f32 %v1414, %v1442
        %v1486 = vmul.f32 %v1415, %v1442
        %v1487 = vmul.f32 %v1416, %v1442
        %v1488 = vmul.f32 %v1417, %v1442
        %v1489 = vmul.f32 %v1418, %v1442
        %v1490 = vmul.f32 %v1419, %v1442
        %v1491 = vmul.f32 %v1420, %v1442
        %v1492 = vmul.f32 %v1421, %v1442
        %v1493 = vmul.f32 %v1422, %v1442
        %v1494 = vmul.f32 %v1423, %v1442
        %v1495 = vmul.f32 %v1424, %v1442
        %v1496 = vmul.f32 %v1425, %v1442
        %v1497 = vmul.f32 %v1426, %v1442
        %v1498 = vmul.f32 %v1427, %v1442
        %v1499 = vmul.f32 %v1428, %v1442
        %v1500 = vmul.f32 %v1429, %v1442
        %v1501 = vmul.f32 %v1430, %v1442
        %v1502 = vmul.f32 %v1431, %v1442
        %v1503 = vmul.f32 %v1432, %v1442
        %v1504 = vmul.f32 %v1433, %v1442
        %v1505 = vmul.f32 %v1434, %v1442
        %v1506 = vmul.f32 %v1435, %v1442
        %v1507 = vmul.f32 %v1436, %v1442
        %v1508 = vld [vmem:[%s298] sm:$0x1]
        %v1510 = vlaneseq
        %v1511 = vshrl.u32 %v1510, 7
        %v1512 = vsub.s32 0, %v1511
        %v1513 = vrot.slane %v1508, %v1512
        %v1515 = vadd.f32 %v1444, %v1513
        %v1516 = vadd.f32 %v1445, %v1513
        %v1517 = vadd.f32 %v1446, %v1513
        %v1518 = vadd.f32 %v1447, %v1513
        %v1519 = vadd.f32 %v1448, %v1513
        %v1520 = vadd.f32 %v1449, %v1513
        %v1521 = vadd.f32 %v1450, %v1513
        %v1522 = vadd.f32 %v1451, %v1513
        %v1523 = vadd.f32 %v1452, %v1513
        %v1524 = vadd.f32 %v1453, %v1513
        %v1525 = vadd.f32 %v1454, %v1513
        %v1526 = vadd.f32 %v1455, %v1513
        %v1527 = vadd.f32 %v1456, %v1513
        %v1528 = vadd.f32 %v1457, %v1513
        %v1529 = vadd.f32 %v1458, %v1513
        %v1530 = vadd.f32 %v1459, %v1513
        %v1531 = vadd.f32 %v1460, %v1513
        %v1532 = vadd.f32 %v1461, %v1513
        %v1533 = vadd.f32 %v1462, %v1513
        %v1534 = vadd.f32 %v1463, %v1513
        %v1535 = vadd.f32 %v1464, %v1513
        %v1536 = vadd.f32 %v1465, %v1513
        %v1537 = vadd.f32 %v1466, %v1513
        %v1538 = vadd.f32 %v1467, %v1513
        %v1539 = vadd.f32 %v1468, %v1513
        %v1540 = vadd.f32 %v1469, %v1513
        %v1541 = vadd.f32 %v1470, %v1513
        %v1542 = vadd.f32 %v1471, %v1513
        %v1543 = vadd.f32 %v1472, %v1513
        %v1544 = vadd.f32 %v1473, %v1513
        %v1545 = vadd.f32 %v1474, %v1513
        %v1546 = vadd.f32 %v1475, %v1513
        %v1547 = vadd.f32 %v1476, %v1513
        %v1548 = vadd.f32 %v1477, %v1513
        %v1549 = vadd.f32 %v1478, %v1513
        %v1550 = vadd.f32 %v1479, %v1513
        %v1551 = vadd.f32 %v1480, %v1513
        %v1552 = vadd.f32 %v1481, %v1513
        %v1553 = vadd.f32 %v1482, %v1513
        %v1554 = vadd.f32 %v1483, %v1513
        %v1555 = vadd.f32 %v1484, %v1513
        %v1556 = vadd.f32 %v1485, %v1513
        %v1557 = vadd.f32 %v1486, %v1513
        %v1558 = vadd.f32 %v1487, %v1513
        %v1559 = vadd.f32 %v1488, %v1513
        %v1560 = vadd.f32 %v1489, %v1513
        %v1561 = vadd.f32 %v1490, %v1513
        %v1562 = vadd.f32 %v1491, %v1513
        %v1563 = vadd.f32 %v1492, %v1513
        %v1564 = vadd.f32 %v1493, %v1513
        %v1565 = vadd.f32 %v1494, %v1513
        %v1566 = vadd.f32 %v1495, %v1513
        %v1567 = vadd.f32 %v1496, %v1513
        %v1568 = vadd.f32 %v1497, %v1513
        %v1569 = vadd.f32 %v1498, %v1513
        %v1570 = vadd.f32 %v1499, %v1513
        %v1571 = vadd.f32 %v1500, %v1513
        %v1572 = vadd.f32 %v1501, %v1513
        %v1573 = vadd.f32 %v1502, %v1513
        %v1574 = vadd.f32 %v1503, %v1513
        %v1575 = vadd.f32 %v1504, %v1513
        %v1576 = vadd.f32 %v1505, %v1513
        %v1577 = vadd.f32 %v1506, %v1513
        %v1578 = vadd.f32 %v1507, %v1513
        %vm1579 = vcmp.ge.f32.partialorder %v1515, 0.0
        %vm1580 = vcmp.ge.f32.partialorder %v1516, 0.0
        %vm1581 = vcmp.ge.f32.partialorder %v1517, 0.0
        %vm1582 = vcmp.ge.f32.partialorder %v1518, 0.0
        %vm1583 = vcmp.ge.f32.partialorder %v1519, 0.0
        %vm1584 = vcmp.ge.f32.partialorder %v1520, 0.0
        %vm1585 = vcmp.ge.f32.partialorder %v1521, 0.0
        %vm1586 = vcmp.ge.f32.partialorder %v1522, 0.0
        %vm1587 = vcmp.ge.f32.partialorder %v1523, 0.0
        %vm1588 = vcmp.ge.f32.partialorder %v1524, 0.0
        %vm1589 = vcmp.ge.f32.partialorder %v1525, 0.0
        %vm1590 = vcmp.ge.f32.partialorder %v1526, 0.0
        %vm1591 = vcmp.ge.f32.partialorder %v1527, 0.0
        %vm1592 = vcmp.ge.f32.partialorder %v1528, 0.0
        %vm1593 = vcmp.ge.f32.partialorder %v1529, 0.0
        %vm1594 = vcmp.ge.f32.partialorder %v1530, 0.0
        %vm1595 = vcmp.ge.f32.partialorder %v1531, 0.0
        %vm1596 = vcmp.ge.f32.partialorder %v1532, 0.0
        %vm1597 = vcmp.ge.f32.partialorder %v1533, 0.0
        %vm1598 = vcmp.ge.f32.partialorder %v1534, 0.0
        %vm1599 = vcmp.ge.f32.partialorder %v1535, 0.0
        %vm1600 = vcmp.ge.f32.partialorder %v1536, 0.0
        %vm1601 = vcmp.ge.f32.partialorder %v1537, 0.0
        %vm1602 = vcmp.ge.f32.partialorder %v1538, 0.0
        %vm1603 = vcmp.ge.f32.partialorder %v1539, 0.0
        %vm1604 = vcmp.ge.f32.partialorder %v1540, 0.0
        %vm1605 = vcmp.ge.f32.partialorder %v1541, 0.0
        %vm1606 = vcmp.ge.f32.partialorder %v1542, 0.0
        %vm1607 = vcmp.ge.f32.partialorder %v1543, 0.0
        %vm1608 = vcmp.ge.f32.partialorder %v1544, 0.0
        %vm1609 = vcmp.ge.f32.partialorder %v1545, 0.0
        %vm1610 = vcmp.ge.f32.partialorder %v1546, 0.0
        %vm1611 = vcmp.ge.f32.partialorder %v1547, 0.0
        %vm1612 = vcmp.ge.f32.partialorder %v1548, 0.0
        %vm1613 = vcmp.ge.f32.partialorder %v1549, 0.0
        %vm1614 = vcmp.ge.f32.partialorder %v1550, 0.0
        %vm1615 = vcmp.ge.f32.partialorder %v1551, 0.0
        %vm1616 = vcmp.ge.f32.partialorder %v1552, 0.0
        %vm1617 = vcmp.ge.f32.partialorder %v1553, 0.0
        %vm1618 = vcmp.ge.f32.partialorder %v1554, 0.0
        %vm1619 = vcmp.ge.f32.partialorder %v1555, 0.0
        %vm1620 = vcmp.ge.f32.partialorder %v1556, 0.0
        %vm1621 = vcmp.ge.f32.partialorder %v1557, 0.0
        %vm1622 = vcmp.ge.f32.partialorder %v1558, 0.0
        %vm1623 = vcmp.ge.f32.partialorder %v1559, 0.0
        %vm1624 = vcmp.ge.f32.partialorder %v1560, 0.0
        %vm1625 = vcmp.ge.f32.partialorder %v1561, 0.0
        %vm1626 = vcmp.ge.f32.partialorder %v1562, 0.0
        %vm1627 = vcmp.ge.f32.partialorder %v1563, 0.0
        %vm1628 = vcmp.ge.f32.partialorder %v1564, 0.0
        %vm1629 = vcmp.ge.f32.partialorder %v1565, 0.0
        %vm1630 = vcmp.ge.f32.partialorder %v1566, 0.0
        %vm1631 = vcmp.ge.f32.partialorder %v1567, 0.0
        %vm1632 = vcmp.ge.f32.partialorder %v1568, 0.0
        %vm1633 = vcmp.ge.f32.partialorder %v1569, 0.0
        %vm1634 = vcmp.ge.f32.partialorder %v1570, 0.0
        %vm1635 = vcmp.ge.f32.partialorder %v1571, 0.0
        %vm1636 = vcmp.ge.f32.partialorder %v1572, 0.0
        %vm1637 = vcmp.ge.f32.partialorder %v1573, 0.0
        %vm1638 = vcmp.ge.f32.partialorder %v1574, 0.0
        %vm1639 = vcmp.ge.f32.partialorder %v1575, 0.0
        %vm1640 = vcmp.ge.f32.partialorder %v1576, 0.0
        %vm1641 = vcmp.ge.f32.partialorder %v1577, 0.0
        %vm1642 = vcmp.ge.f32.partialorder %v1578, 0.0
        %v1643 = vmul.f32 %v1515, 0.01
        %v1644 = vmul.f32 %v1516, 0.01
        %v1645 = vmul.f32 %v1517, 0.01
        %v1646 = vmul.f32 %v1518, 0.01
        %v1647 = vmul.f32 %v1519, 0.01
        %v1648 = vmul.f32 %v1520, 0.01
        %v1649 = vmul.f32 %v1521, 0.01
        %v1650 = vmul.f32 %v1522, 0.01
        %v1651 = vmul.f32 %v1523, 0.01
        %v1652 = vmul.f32 %v1524, 0.01
        %v1653 = vmul.f32 %v1525, 0.01
        %v1654 = vmul.f32 %v1526, 0.01
        %v1655 = vmul.f32 %v1527, 0.01
        %v1656 = vmul.f32 %v1528, 0.01
        %v1657 = vmul.f32 %v1529, 0.01
        %v1658 = vmul.f32 %v1530, 0.01
        %v1659 = vmul.f32 %v1531, 0.01
        %v1660 = vmul.f32 %v1532, 0.01
        %v1661 = vmul.f32 %v1533, 0.01
        %v1662 = vmul.f32 %v1534, 0.01
        %v1663 = vmul.f32 %v1535, 0.01
        %v1664 = vmul.f32 %v1536, 0.01
        %v1665 = vmul.f32 %v1537, 0.01
        %v1666 = vmul.f32 %v1538, 0.01
        %v1667 = vmul.f32 %v1539, 0.01
        %v1668 = vmul.f32 %v1540, 0.01
        %v1669 = vmul.f32 %v1541, 0.01
        %v1670 = vmul.f32 %v1542, 0.01
        %v1671 = vmul.f32 %v1543, 0.01
        %v1672 = vmul.f32 %v1544, 0.01
        %v1673 = vmul.f32 %v1545, 0.01
        %v1674 = vmul.f32 %v1546, 0.01
        %v1675 = vmul.f32 %v1547, 0.01
        %v1676 = vmul.f32 %v1548, 0.01
        %v1677 = vmul.f32 %v1549, 0.01
        %v1678 = vmul.f32 %v1550, 0.01
        %v1679 = vmul.f32 %v1551, 0.01
        %v1680 = vmul.f32 %v1552, 0.01
        %v1681 = vmul.f32 %v1553, 0.01
        %v1682 = vmul.f32 %v1554, 0.01
        %v1683 = vmul.f32 %v1555, 0.01
        %v1684 = vmul.f32 %v1556, 0.01
        %v1685 = vmul.f32 %v1557, 0.01
        %v1686 = vmul.f32 %v1558, 0.01
        %v1687 = vmul.f32 %v1559, 0.01
        %v1688 = vmul.f32 %v1560, 0.01
        %v1689 = vmul.f32 %v1561, 0.01
        %v1690 = vmul.f32 %v1562, 0.01
        %v1691 = vmul.f32 %v1563, 0.01
        %v1692 = vmul.f32 %v1564, 0.01
        %v1693 = vmul.f32 %v1565, 0.01
        %v1694 = vmul.f32 %v1566, 0.01
        %v1695 = vmul.f32 %v1567, 0.01
        %v1696 = vmul.f32 %v1568, 0.01
        %v1697 = vmul.f32 %v1569, 0.01
        %v1698 = vmul.f32 %v1570, 0.01
        %v1699 = vmul.f32 %v1571, 0.01
        %v1700 = vmul.f32 %v1572, 0.01
        %v1701 = vmul.f32 %v1573, 0.01
        %v1702 = vmul.f32 %v1574, 0.01
        %v1703 = vmul.f32 %v1575, 0.01
        %v1704 = vmul.f32 %v1576, 0.01
        %v1705 = vmul.f32 %v1577, 0.01
        %v1706 = vmul.f32 %v1578, 0.01
        %v1707 = vsel %vm1579, %v1515, %v1643
        %v1708 = vsel %vm1580, %v1516, %v1644
        %v1709 = vsel %vm1581, %v1517, %v1645
        %v1710 = vsel %vm1582, %v1518, %v1646
        %v1711 = vsel %vm1583, %v1519, %v1647
        %v1712 = vsel %vm1584, %v1520, %v1648
        %v1713 = vsel %vm1585, %v1521, %v1649
        %v1714 = vsel %vm1586, %v1522, %v1650
        %v1715 = vsel %vm1587, %v1523, %v1651
        %v1716 = vsel %vm1588, %v1524, %v1652
        %v1717 = vsel %vm1589, %v1525, %v1653
        %v1718 = vsel %vm1590, %v1526, %v1654
        %v1719 = vsel %vm1591, %v1527, %v1655
        %v1720 = vsel %vm1592, %v1528, %v1656
        %v1721 = vsel %vm1593, %v1529, %v1657
        %v1722 = vsel %vm1594, %v1530, %v1658
        %v1723 = vsel %vm1595, %v1531, %v1659
        %v1724 = vsel %vm1596, %v1532, %v1660
        %v1725 = vsel %vm1597, %v1533, %v1661
        %v1726 = vsel %vm1598, %v1534, %v1662
        %v1727 = vsel %vm1599, %v1535, %v1663
        %v1728 = vsel %vm1600, %v1536, %v1664
        %v1729 = vsel %vm1601, %v1537, %v1665
        %v1730 = vsel %vm1602, %v1538, %v1666
        %v1731 = vsel %vm1603, %v1539, %v1667
        %v1732 = vsel %vm1604, %v1540, %v1668
        %v1733 = vsel %vm1605, %v1541, %v1669
        %v1734 = vsel %vm1606, %v1542, %v1670
        %v1735 = vsel %vm1607, %v1543, %v1671
        %v1736 = vsel %vm1608, %v1544, %v1672
        %v1737 = vsel %vm1609, %v1545, %v1673
        %v1738 = vsel %vm1610, %v1546, %v1674
        %v1739 = vsel %vm1611, %v1547, %v1675
        %v1740 = vsel %vm1612, %v1548, %v1676
        %v1741 = vsel %vm1613, %v1549, %v1677
        %v1742 = vsel %vm1614, %v1550, %v1678
        %v1743 = vsel %vm1615, %v1551, %v1679
        %v1744 = vsel %vm1616, %v1552, %v1680
        %v1745 = vsel %vm1617, %v1553, %v1681
        %v1746 = vsel %vm1618, %v1554, %v1682
        %v1747 = vsel %vm1619, %v1555, %v1683
        %v1748 = vsel %vm1620, %v1556, %v1684
        %v1749 = vsel %vm1621, %v1557, %v1685
        %v1750 = vsel %vm1622, %v1558, %v1686
        %v1751 = vsel %vm1623, %v1559, %v1687
        %v1752 = vsel %vm1624, %v1560, %v1688
        %v1753 = vsel %vm1625, %v1561, %v1689
        %v1754 = vsel %vm1626, %v1562, %v1690
        %v1755 = vsel %vm1627, %v1563, %v1691
        %v1756 = vsel %vm1628, %v1564, %v1692
        %v1757 = vsel %vm1629, %v1565, %v1693
        %v1758 = vsel %vm1630, %v1566, %v1694
        %v1759 = vsel %vm1631, %v1567, %v1695
        %v1760 = vsel %vm1632, %v1568, %v1696
        %v1761 = vsel %vm1633, %v1569, %v1697
        %v1762 = vsel %vm1634, %v1570, %v1698
        %v1763 = vsel %vm1635, %v1571, %v1699
        %v1764 = vsel %vm1636, %v1572, %v1700
        %v1765 = vsel %vm1637, %v1573, %v1701
        %v1766 = vsel %vm1638, %v1574, %v1702
        %v1767 = vsel %vm1639, %v1575, %v1703
        %v1768 = vsel %vm1640, %v1576, %v1704
        %v1769 = vsel %vm1641, %v1577, %v1705
        %v1770 = vsel %vm1642, %v1578, %v1706
        %v1771 = vpack.c.bf16 %v1708, %v1707
        %v1772 = vpack.c.bf16 %v1710, %v1709
        %v1773 = vpack.c.bf16 %v1712, %v1711
        %v1774 = vpack.c.bf16 %v1714, %v1713
        %v1775 = vpack.c.bf16 %v1716, %v1715
        %v1776 = vpack.c.bf16 %v1718, %v1717
        %v1777 = vpack.c.bf16 %v1720, %v1719
        %v1778 = vpack.c.bf16 %v1722, %v1721
        %v1779 = vpack.c.bf16 %v1724, %v1723
        %v1780 = vpack.c.bf16 %v1726, %v1725
        %v1781 = vpack.c.bf16 %v1728, %v1727
        %v1782 = vpack.c.bf16 %v1730, %v1729
        %v1783 = vpack.c.bf16 %v1732, %v1731
        %v1784 = vpack.c.bf16 %v1734, %v1733
        %v1785 = vpack.c.bf16 %v1736, %v1735
        %v1786 = vpack.c.bf16 %v1738, %v1737
        %v1787 = vpack.c.bf16 %v1740, %v1739
        %v1788 = vpack.c.bf16 %v1742, %v1741
        %v1789 = vpack.c.bf16 %v1744, %v1743
        %v1790 = vpack.c.bf16 %v1746, %v1745
        %v1791 = vpack.c.bf16 %v1748, %v1747
        %v1792 = vpack.c.bf16 %v1750, %v1749
        %v1793 = vpack.c.bf16 %v1752, %v1751
        %v1794 = vpack.c.bf16 %v1754, %v1753
        %v1795 = vpack.c.bf16 %v1756, %v1755
        %v1796 = vpack.c.bf16 %v1758, %v1757
        %v1797 = vpack.c.bf16 %v1760, %v1759
        %v1798 = vpack.c.bf16 %v1762, %v1761
        %v1799 = vpack.c.bf16 %v1764, %v1763
        %v1800 = vpack.c.bf16 %v1766, %v1765
        %v1801 = vpack.c.bf16 %v1768, %v1767
        %v1802 = vpack.c.bf16 %v1770, %v1769
        %v1835 = vunpack.c.l.b16 %v1771
        %v1836 = vunpack.c.h.b16 %v1771
        %v1837 = vunpack.c.l.b16 %v1772
        %v1838 = vunpack.c.h.b16 %v1772
        %v1839 = vunpack.c.l.b16 %v1773
        %v1840 = vunpack.c.h.b16 %v1773
        %v1841 = vunpack.c.l.b16 %v1774
        %v1842 = vunpack.c.h.b16 %v1774
        %v1843 = vunpack.c.l.b16 %v1775
        %v1844 = vunpack.c.h.b16 %v1775
        %v1845 = vunpack.c.l.b16 %v1776
        %v1846 = vunpack.c.h.b16 %v1776
        %v1847 = vunpack.c.l.b16 %v1777
        %v1848 = vunpack.c.h.b16 %v1777
        %v1849 = vunpack.c.l.b16 %v1778
        %v1850 = vunpack.c.h.b16 %v1778
        %v1851 = vunpack.c.l.b16 %v1779
        %v1852 = vunpack.c.h.b16 %v1779
        %v1853 = vunpack.c.l.b16 %v1780
        %v1854 = vunpack.c.h.b16 %v1780
        %v1855 = vunpack.c.l.b16 %v1781
        %v1856 = vunpack.c.h.b16 %v1781
        %v1857 = vunpack.c.l.b16 %v1782
        %v1858 = vunpack.c.h.b16 %v1782
        %v1859 = vunpack.c.l.b16 %v1783
        %v1860 = vunpack.c.h.b16 %v1783
        %v1861 = vunpack.c.l.b16 %v1784
        %v1862 = vunpack.c.h.b16 %v1784
        %v1863 = vunpack.c.l.b16 %v1785
        %v1864 = vunpack.c.h.b16 %v1785
        %v1865 = vunpack.c.l.b16 %v1786
        %v1866 = vunpack.c.h.b16 %v1786
        %v1867 = vunpack.c.l.b16 %v1787
        %v1868 = vunpack.c.h.b16 %v1787
        %v1869 = vunpack.c.l.b16 %v1788
        %v1870 = vunpack.c.h.b16 %v1788
        %v1871 = vunpack.c.l.b16 %v1789
        %v1872 = vunpack.c.h.b16 %v1789
        %v1873 = vunpack.c.l.b16 %v1790
        %v1874 = vunpack.c.h.b16 %v1790
        %v1875 = vunpack.c.l.b16 %v1791
        %v1876 = vunpack.c.h.b16 %v1791
        %v1877 = vunpack.c.l.b16 %v1792
        %v1878 = vunpack.c.h.b16 %v1792
        %v1879 = vunpack.c.l.b16 %v1793
        %v1880 = vunpack.c.h.b16 %v1793
        %v1881 = vunpack.c.l.b16 %v1794
        %v1882 = vunpack.c.h.b16 %v1794
        %v1883 = vunpack.c.l.b16 %v1795
        %v1884 = vunpack.c.h.b16 %v1795
        %v1885 = vunpack.c.l.b16 %v1796
        %v1886 = vunpack.c.h.b16 %v1796
        %v1887 = vunpack.c.l.b16 %v1797
        %v1888 = vunpack.c.h.b16 %v1797
        %v1889 = vunpack.c.l.b16 %v1798
        %v1890 = vunpack.c.h.b16 %v1798
        %v1891 = vunpack.c.l.b16 %v1799
        %v1892 = vunpack.c.h.b16 %v1799
        %v1893 = vunpack.c.l.b16 %v1800
        %v1894 = vunpack.c.h.b16 %v1800
        %v1895 = vunpack.c.l.b16 %v1801
        %v1896 = vunpack.c.h.b16 %v1801
        %v1897 = vunpack.c.l.b16 %v1802
        %v1898 = vunpack.c.h.b16 %v1802
        %v1899 = vpack.c.b16 %v1835, %v1835
        %v1900 = vpack.c.b16 %v1836, %v1836
        %v1901 = vpack.c.b16 %v1837, %v1837
        %v1902 = vpack.c.b16 %v1838, %v1838
        %v1903 = vpack.c.b16 %v1839, %v1839
        %v1904 = vpack.c.b16 %v1840, %v1840
        %v1905 = vpack.c.b16 %v1841, %v1841
        %v1906 = vpack.c.b16 %v1842, %v1842
        %v1907 = vpack.c.b16 %v1843, %v1843
        %v1908 = vpack.c.b16 %v1844, %v1844
        %v1909 = vpack.c.b16 %v1845, %v1845
        %v1910 = vpack.c.b16 %v1846, %v1846
        %v1911 = vpack.c.b16 %v1847, %v1847
        %v1912 = vpack.c.b16 %v1848, %v1848
        %v1913 = vpack.c.b16 %v1849, %v1849
        %v1914 = vpack.c.b16 %v1850, %v1850
        %v1915 = vpack.c.b16 %v1851, %v1851
        %v1916 = vpack.c.b16 %v1852, %v1852
        %v1917 = vpack.c.b16 %v1853, %v1853
        %v1918 = vpack.c.b16 %v1854, %v1854
        %v1919 = vpack.c.b16 %v1855, %v1855
        %v1920 = vpack.c.b16 %v1856, %v1856
        %v1921 = vpack.c.b16 %v1857, %v1857
        %v1922 = vpack.c.b16 %v1858, %v1858
        %v1923 = vpack.c.b16 %v1859, %v1859
        %v1924 = vpack.c.b16 %v1860, %v1860
        %v1925 = vpack.c.b16 %v1861, %v1861
        %v1926 = vpack.c.b16 %v1862, %v1862
        %v1927 = vpack.c.b16 %v1863, %v1863
        %v1928 = vpack.c.b16 %v1864, %v1864
        %v1929 = vpack.c.b16 %v1865, %v1865
        %v1930 = vpack.c.b16 %v1866, %v1866
        %v1931 = vpack.c.b16 %v1867, %v1867
        %v1932 = vpack.c.b16 %v1868, %v1868
        %v1933 = vpack.c.b16 %v1869, %v1869
        %v1934 = vpack.c.b16 %v1870, %v1870
        %v1935 = vpack.c.b16 %v1871, %v1871
        %v1936 = vpack.c.b16 %v1872, %v1872
        %v1937 = vpack.c.b16 %v1873, %v1873
        %v1938 = vpack.c.b16 %v1874, %v1874
        %v1939 = vpack.c.b16 %v1875, %v1875
        %v1940 = vpack.c.b16 %v1876, %v1876
        %v1941 = vpack.c.b16 %v1877, %v1877
        %v1942 = vpack.c.b16 %v1878, %v1878
        %v1943 = vpack.c.b16 %v1879, %v1879
        %v1944 = vpack.c.b16 %v1880, %v1880
        %v1945 = vpack.c.b16 %v1881, %v1881
        %v1946 = vpack.c.b16 %v1882, %v1882
        %v1947 = vpack.c.b16 %v1883, %v1883
        %v1948 = vpack.c.b16 %v1884, %v1884
        %v1949 = vpack.c.b16 %v1885, %v1885
        %v1950 = vpack.c.b16 %v1886, %v1886
        %v1951 = vpack.c.b16 %v1887, %v1887
        %v1952 = vpack.c.b16 %v1888, %v1888
        %v1953 = vpack.c.b16 %v1889, %v1889
        %v1954 = vpack.c.b16 %v1890, %v1890
        %v1955 = vpack.c.b16 %v1891, %v1891
        %v1956 = vpack.c.b16 %v1892, %v1892
        %v1957 = vpack.c.b16 %v1893, %v1893
        %v1958 = vpack.c.b16 %v1894, %v1894
        %v1959 = vpack.c.b16 %v1895, %v1895
        %v1960 = vpack.c.b16 %v1896, %v1896
        %v1961 = vpack.c.b16 %v1897, %v1897
        %v1962 = vpack.c.b16 %v1898, %v1898
        %2027 = vst [vmem:[%s306] sm:$0xf] %v1899
        %2028 = vst [vmem:[%s306 + $0x4] sm:$0xf] %v1900
        %2029 = vst [vmem:[%s306 + $0x8] sm:$0xf] %v1901
        %2030 = vst [vmem:[%s306 + $0xc] sm:$0xf] %v1902
        %2031 = vst [vmem:[%s306 + $0x10] sm:$0xf] %v1903
        %2032 = vst [vmem:[%s306 + $0x14] sm:$0xf] %v1904
        %2033 = vst [vmem:[%s306 + $0x18] sm:$0xf] %v1905
        %2034 = vst [vmem:[%s306 + $0x1c] sm:$0xf] %v1906
        %2035 = vst [vmem:[%s306 + $0x20] sm:$0xf] %v1907
        %2036 = vst [vmem:[%s306 + $0x24] sm:$0xf] %v1908
        %2037 = vst [vmem:[%s306 + $0x28] sm:$0xf] %v1909
        %2038 = vst [vmem:[%s306 + $0x2c] sm:$0xf] %v1910
        %2039 = vst [vmem:[%s306 + $0x30] sm:$0xf] %v1911
        %2040 = vst [vmem:[%s306 + $0x34] sm:$0xf] %v1912
        %2041 = vst [vmem:[%s306 + $0x38] sm:$0xf] %v1913
        %2042 = vst [vmem:[%s306 + $0x3c] sm:$0xf] %v1914
        %2043 = vst [vmem:[%s306 + $0x40] sm:$0xf] %v1915
        %2044 = vst [vmem:[%s306 + $0x44] sm:$0xf] %v1916
        %2045 = vst [vmem:[%s306 + $0x48] sm:$0xf] %v1917
        %2046 = vst [vmem:[%s306 + $0x4c] sm:$0xf] %v1918
        %2047 = vst [vmem:[%s306 + $0x50] sm:$0xf] %v1919
        %2048 = vst [vmem:[%s306 + $0x54] sm:$0xf] %v1920
        %2049 = vst [vmem:[%s306 + $0x58] sm:$0xf] %v1921
        %2050 = vst [vmem:[%s306 + $0x5c] sm:$0xf] %v1922
        %2051 = vst [vmem:[%s306 + $0x60] sm:$0xf] %v1923
        %2052 = vst [vmem:[%s306 + $0x64] sm:$0xf] %v1924
        %2053 = vst [vmem:[%s306 + $0x68] sm:$0xf] %v1925
        %2054 = vst [vmem:[%s306 + $0x6c] sm:$0xf] %v1926
        %2055 = vst [vmem:[%s306 + $0x70] sm:$0xf] %v1927
        %2056 = vst [vmem:[%s306 + $0x74] sm:$0xf] %v1928
        %2057 = vst [vmem:[%s306 + $0x78] sm:$0xf] %v1929
        %2058 = vst [vmem:[%s306 + $0x7c] sm:$0xf] %v1930
        %2059 = vst [vmem:[%s306 + $0x80] sm:$0xf] %v1931
        %2060 = vst [vmem:[%s306 + $0x84] sm:$0xf] %v1932
        %2061 = vst [vmem:[%s306 + $0x88] sm:$0xf] %v1933
        %2062 = vst [vmem:[%s306 + $0x8c] sm:$0xf] %v1934
        %2063 = vst [vmem:[%s306 + $0x90] sm:$0xf] %v1935
        %2064 = vst [vmem:[%s306 + $0x94] sm:$0xf] %v1936
        %2065 = vst [vmem:[%s306 + $0x98] sm:$0xf] %v1937
        %2066 = vst [vmem:[%s306 + $0x9c] sm:$0xf] %v1938
        %2067 = vst [vmem:[%s306 + $0xa0] sm:$0xf] %v1939
        %2068 = vst [vmem:[%s306 + $0xa4] sm:$0xf] %v1940
        %2069 = vst [vmem:[%s306 + $0xa8] sm:$0xf] %v1941
        %2070 = vst [vmem:[%s306 + $0xac] sm:$0xf] %v1942
        %2071 = vst [vmem:[%s306 + $0xb0] sm:$0xf] %v1943
        %2072 = vst [vmem:[%s306 + $0xb4] sm:$0xf] %v1944
        %2073 = vst [vmem:[%s306 + $0xb8] sm:$0xf] %v1945
        %2074 = vst [vmem:[%s306 + $0xbc] sm:$0xf] %v1946
        %2075 = vst [vmem:[%s306 + $0xc0] sm:$0xf] %v1947
        %2076 = vst [vmem:[%s306 + $0xc4] sm:$0xf] %v1948
        %2077 = vst [vmem:[%s306 + $0xc8] sm:$0xf] %v1949
        %2078 = vst [vmem:[%s306 + $0xcc] sm:$0xf] %v1950
        %2079 = vst [vmem:[%s306 + $0xd0] sm:$0xf] %v1951
        %2080 = vst [vmem:[%s306 + $0xd4] sm:$0xf] %v1952
        %2081 = vst [vmem:[%s306 + $0xd8] sm:$0xf] %v1953
        %2082 = vst [vmem:[%s306 + $0xdc] sm:$0xf] %v1954
        %2083 = vst [vmem:[%s306 + $0xe0] sm:$0xf] %v1955
        %2084 = vst [vmem:[%s306 + $0xe4] sm:$0xf] %v1956
        %2085 = vst [vmem:[%s306 + $0xe8] sm:$0xf] %v1957
        %2086 = vst [vmem:[%s306 + $0xec] sm:$0xf] %v1958
        %2087 = vst [vmem:[%s306 + $0xf0] sm:$0xf] %v1959
        %2088 = vst [vmem:[%s306 + $0xf4] sm:$0xf] %v1960
        %2089 = vst [vmem:[%s306 + $0xf8] sm:$0xf] %v1961
        %2090 = vst [vmem:[%s306 + $0xfc] sm:$0xf] %v1962
      $region44: #{resnet_forward.3} parent=35 // pred_fallthru
        _
      %s2091 = smul.u32 64, %s20
      %p2092 = scmp.lt.s32.totalorder %s2091, 255
      %s2093 = scalar_select %p2092, %s2091, 255
      %p2094 = scmp.lt.s32.totalorder %s21, 0
      %s2095 = scalar_select %p2094, %s21, 0
      %s2096 = sadd.s32 %s2095, %s2093
      %s2097 = smul.addr %s2096, 4
      %s2098 = scalar_lea.vmem %s4, %s2097
      // Predicated region
      $region45: #{resnet_forward.3} parent=35 // pred_check
        %p2099 = pneg %p162
      $region46: #{resnet_forward.3} parent=35 // pred_check_branch
        %2101 = sbr.rel (%p2099) target = $region48
      $region47: #{resnet_forward.3} parent=35 // pred_region
        %s2102 = smul.u32 64, %s20
      $region48: #{resnet_forward.3} parent=35 // pred_fallthru
        _
    $region36: #{resnet_forward.3} parent=5 // pred_fallthru
      _
    %p2103 = scmp.le.s32.totalorder 2, %s10
    // Predicated region
    $region49: #{resnet_forward.3} parent=5 // pred_check
      %p2104 = pneg %p2103
    $region50: #{resnet_forward.3} parent=5 // pred_check_branch
      %2106 = sbr.rel (%p2104) target = $region52
    $region51: #{resnet_forward.3} parent=5 // pred_region
      %s2107 = ssub.s32 %s10, 2
      // Predicated region
      $region53: #{resnet_forward.3} parent=51 // pred_check
        %p2108 = pneg %p168
      $region54: #{resnet_forward.3} parent=51 // pred_check_branch
        %2110 = sbr.rel (%p2108) target = $region56
      $region55: #{resnet_forward.3} parent=51 // pred_region
        %s2111 = smul.u32 64, %s23
        %p2112 = scmp.lt.s32.totalorder %s2111, 255
        %s2113 = scalar_select %p2112, %s2111, 255
        %p2114 = scmp.lt.s32.totalorder %s24, 0
        %s2115 = scalar_select %p2114, %s24, 0
        %s2116 = sadd.s32 %s2115, %s2113
        %s2117 = smul.addr %s2116, 4
        %s2118 = scalar_lea.vmem %s4, %s2117
      $region56: #{resnet_forward.3} parent=51 // pred_fallthru
        _
    $region52: #{resnet_forward.3} parent=5 // pred_fallthru
      _
  $region6: #{resnet_forward.3} parent=0 // loop_footer
    %s14 = sadd.s32 1, %s10
  $region7: #{resnet_forward.3} parent=0 // loop_footer_branch
    %9 = sbr.rel target = $region3
  $region8: #{resnet_forward.3} parent=0 // loop_exit
    _

// kernel: resnet_forward.5
$region0: #{resnet_forward.5}
  #allocation0 [shape = 'u32[]', space=smem, size = 0x4, offset = 0x4, fixed_abs, tag = 'smem constant byte address 0x4 - core index']
  #allocation1 [shape = 'u32[144,128]{1,0:T(1,128)}', space=vmem, size = 0x12000, scoped, tag = 'internal scratch']
  #allocation2 [shape = 'f32[256,128]{1,0:T(8,128)}', space=vmem, size = 0x20000, scoped, tag = 'scratch operand']
  %s0 = inlined_call_operand.vmem [shape: bf16[512,768], index: 0, kind: input, shape index: {}]
  %s1 = inlined_call_operand.vmem [shape: bf16[768,128], index: 1, kind: input, shape index: {}]
  %s2 = inlined_call_operand.vmem [shape: f32[1,128], index: 2, kind: input, shape index: {}]
  %s3 = inlined_call_operand.vmem [shape: f32[1,128], index: 3, kind: input, shape index: {}]
  %s4 = inlined_call_operand.vmem [shape: bf16[512,128], index: 4, kind: input, shape index: {}]
  %s5 = inlined_call_operand.vmem [shape: bf16[512,128], index: 5, kind: output, shape index: {}]
  %s6 = sld [smem:[#allocation0]]
  $region99: #{resnet_forward.5} parent=0
    _
  %s8 = ssub.s32 1, %s6
  %s9 = scalar_select 0, %s8, %s6
  $region1: #{resnet_forward.5} parent=0
    #allocation3 [shape = 'u8[262144]{0}', space=vmem, size = 0x40000, scoped, tag = 'input window, operand 0']
    loop: start=0, step=1, limit=8
    $region2: #{resnet_forward.5} parent=1 // loop_pre_header
      _
    $region3: #{resnet_forward.5} parent=1 // loop_header
      %s11 = sphi 0, %s15
      %p12 = scmp.ge.s32.totalorder %s11, 8
      %s18 = sphi 0, %s37
      %s19 = sphi 0, %s33
      %s20 = sphi 0, %s29
      %s21 = sphi 0, %s18
      %s22 = sphi 0, %s19
      %s23 = sphi 0, %s20
      %s24 = sphi 0, %s21
      %s25 = sphi 0, %s22
      %s26 = sphi 0, %s23
      %s42 = sphi 0, %s44
      %s45 = sphi 0, %s42
      %s46 = sphi 0, %s45
      %s62 = sphi 0, %s46
      %s70 = sphi 0, %s72
      %s73 = sphi 0, %s70
      %s74 = sphi 0, %s73
      %s90 = sphi 0, %s74
      %s96 = sphi 0, %s98
      %s99 = sphi 0, %s96
      %s100 = sphi 0, %s99
      %s116 = sphi 0, %s100
      %s122 = sphi 0, %s124
      %s125 = sphi 0, %s122
      %s126 = sphi 0, %s125
      %s142 = sphi 0, %s126
      %s150 = sphi 0, %s152
      %s153 = sphi 0, %s150
      %s154 = sphi 0, %s153
      %s170 = sphi 0, %s154
      %s178 = sphi 0, %s180
      %s181 = sphi 0, %s178
      %s182 = sphi 0, %s181
      %s198 = sphi 0, %s182
    $region4: #{resnet_forward.5} parent=1 // loop_header_branch
      %14 = sbr.rel (%p12) target = $region8
    $region5: #{resnet_forward.5} parent=1 // loop_body
      %s16 = ssub.s32 %s11, 1
      %s17 = ssub.s32 %s11, 2
      %s27 = sadd.s32 1, %s20
      %p28 = scmp.ge.s32.totalorder %s27, 3
      %s29 = scalar_select %p28, 0, %s27
      %s30 = sadd.s32 1, %s19
      %s31 = scalar_select %p28, %s30, %s19
      %p32 = scmp.ge.s32.totalorder %s31, 1
      %s33 = scalar_select %p32, 0, %s31
      %s34 = sadd.s32 1, %s18
      %s35 = scalar_select %p32, %s34, %s18
      %p36 = scmp.ge.s32.totalorder %s35, 2
      %s37 = scalar_select %p36, 0, %s35
      %s38 = ssub.s32 %s18, %s37
      %s39 = ssub.s32 %s20, %s29
      %s40 = sor.u32 %s38, %s39
      %p41 = scmp.eq.s32.totalorder %s40, 0
      %s43 = sadd.s32 %s42, 1
      %s44 = scalar_select %p41, %s42, %s43
      %p47 = pneg %p41
      %p48 = scmp.eq.s32.totalorder %s11, 5
      %p49 = por %p47, %p48
      %p50 = scmp.ne.s32.totalorder %s42, %s45
      %p51 = scmp.eq.s32.totalorder %s11, 0
      %p52 = por %p50, %p51
      %p53 = scmp.ne.s32.totalorder %s42, %s45
      %p54 = scmp.eq.s32.totalorder %s16, 5
      %p55 = por %p53, %p54
      %p56 = scmp.ne.s32.totalorder %s45, %s46
      %p57 = scmp.eq.s32.totalorder %s16, 0
      %p58 = por %p56, %p57
      %p59 = scmp.ne.s32.totalorder %s45, %s46
      %p60 = scmp.eq.s32.totalorder %s17, 5
      %p61 = por %p59, %p60
      %p63 = scmp.ne.s32.totalorder %s46, %s62
      %p64 = scmp.eq.s32.totalorder %s17, 0
      %p65 = por %p63, %p64
      %s66 = ssub.s32 %s20, %s29
      %s67 = ssub.s32 %s19, %s33
      %s68 = sor.u32 %s66, %s67
      %p69 = scmp.eq.s32.totalorder %s68, 0
      %s71 = sadd.s32 %s70, 1
      %s72 = scalar_select %p69, %s70, %s71
      %p75 = pneg %p69
      %p76 = scmp.eq.s32.totalorder %s11, 5
      %p77 = por %p75, %p76
      %p78 = scmp.ne.s32.totalorder %s70, %s73
      %p79 = scmp.eq.s32.totalorder %s11, 0
      %p80 = por %p78, %p79
      %p81 = scmp.ne.s32.totalorder %s70, %s73
      %p82 = scmp.eq.s32.totalorder %s16, 5
      %p83 = por %p81, %p82
      %p84 = scmp.ne.s32.totalorder %s73, %s74
      %p85 = scmp.eq.s32.totalorder %s16, 0
      %p86 = por %p84, %p85
      %p87 = scmp.ne.s32.totalorder %s73, %s74
      %p88 = scmp.eq.s32.totalorder %s17, 5
      %p89 = por %p87, %p88
      %p91 = scmp.ne.s32.totalorder %s74, %s90
      %p92 = scmp.eq.s32.totalorder %s17, 0
      %p93 = por %p91, %p92
      %s94 = ssub.s32 %s19, %s33
      %p95 = scmp.eq.s32.totalorder %s94, 0
      %s97 = sadd.s32 %s96, 1
      %s98 = scalar_select %p95, %s96, %s97
      %p101 = pneg %p95
      %p102 = scmp.eq.s32.totalorder %s11, 5
      %p103 = por %p101, %p102
      %p104 = scmp.ne.s32.totalorder %s96, %s99
      %p105 = scmp.eq.s32.totalorder %s11, 0
      %p106 = por %p104, %p105
      %p107 = scmp.ne.s32.totalorder %s96, %s99
      %p108 = scmp.eq.s32.totalorder %s16, 5
      %p109 = por %p107, %p108
      %p110 = scmp.ne.s32.totalorder %s99, %s100
      %p111 = scmp.eq.s32.totalorder %s16, 0
      %p112 = por %p110, %p111
      %p113 = scmp.ne.s32.totalorder %s99, %s100
      %p114 = scmp.eq.s32.totalorder %s17, 5
      %p115 = por %p113, %p114
      %p117 = scmp.ne.s32.totalorder %s100, %s116
      %p118 = scmp.eq.s32.totalorder %s17, 0
      %p119 = por %p117, %p118
      %s120 = ssub.s32 %s19, %s33
      %p121 = scmp.eq.s32.totalorder %s120, 0
      %s123 = sadd.s32 %s122, 1
      %s124 = scalar_select %p121, %s122, %s123
      %p127 = pneg %p121
      %p128 = scmp.eq.s32.totalorder %s11, 5
      %p129 = por %p127, %p128
      %p130 = scmp.ne.s32.totalorder %s122, %s125
      %p131 = scmp.eq.s32.totalorder %s11, 0
      %p132 = por %p130, %p131
      %p133 = scmp.ne.s32.totalorder %s122, %s125
      %p134 = scmp.eq.s32.totalorder %s16, 5
      %p135 = por %p133, %p134
      %p136 = scmp.ne.s32.totalorder %s125, %s126
      %p137 = scmp.eq.s32.totalorder %s16, 0
      %p138 = por %p136, %p137
      %p139 = scmp.ne.s32.totalorder %s125, %s126
      %p140 = scmp.eq.s32.totalorder %s17, 5
      %p141 = por %p139, %p140
      %p143 = scmp.ne.s32.totalorder %s126, %s142
      %p144 = scmp.eq.s32.totalorder %s17, 0
      %p145 = por %p143, %p144
      %s146 = ssub.s32 %s18, %s37
      %s147 = ssub.s32 %s19, %s33
      %s148 = sor.u32 %s146, %s147
      %p149 = scmp.eq.s32.totalorder %s148, 0
      %s151 = sadd.s32 %s150, 1
      %s152 = scalar_select %p149, %s150, %s151
      %p155 = pneg %p149
      %p156 = scmp.eq.s32.totalorder %s11, 5
      %p157 = por %p155, %p156
      %p158 = scmp.ne.s32.totalorder %s150, %s153
      %p159 = scmp.eq.s32.totalorder %s11, 0
      %p160 = por %p158, %p159
      %p161 = scmp.ne.s32.totalorder %s150, %s153
      %p162 = scmp.eq.s32.totalorder %s16, 5
      %p163 = por %p161, %p162
      %p164 = scmp.ne.s32.totalorder %s153, %s154
      %p165 = scmp.eq.s32.totalorder %s16, 0
      %p166 = por %p164, %p165
      %p167 = scmp.ne.s32.totalorder %s153, %s154
      %p168 = scmp.eq.s32.totalorder %s17, 5
      %p169 = por %p167, %p168
      %p171 = scmp.ne.s32.totalorder %s154, %s170
      %p172 = scmp.eq.s32.totalorder %s17, 0
      %p173 = por %p171, %p172
      %s174 = ssub.s32 %s18, %s37
      %s175 = ssub.s32 %s19, %s33
      %s176 = sor.u32 %s174, %s175
      %p177 = scmp.eq.s32.totalorder %s176, 0
      %s179 = sadd.s32 %s178, 1
      %s180 = scalar_select %p177, %s178, %s179
      %p183 = pneg %p177
      %p184 = scmp.eq.s32.totalorder %s11, 5
      %p185 = por %p183, %p184
      %p186 = scmp.ne.s32.totalorder %s178, %s181
      %p187 = scmp.eq.s32.totalorder %s11, 0
      %p188 = por %p186, %p187
      %p189 = scmp.ne.s32.totalorder %s178, %s181
      %p190 = scmp.eq.s32.totalorder %s16, 5
      %p191 = por %p189, %p190
      %p192 = scmp.ne.s32.totalorder %s181, %s182
      %p193 = scmp.eq.s32.totalorder %s16, 0
      %p194 = por %p192, %p193
      %p195 = scmp.ne.s32.totalorder %s181, %s182
      %p196 = scmp.eq.s32.totalorder %s17, 5
      %p197 = por %p195, %p196
      %p199 = scmp.ne.s32.totalorder %s182, %s198
      %p200 = scmp.eq.s32.totalorder %s17, 0
      %p201 = por %p199, %p200
      %p202 = scmp.le.s32.totalorder 1, %s11
      %p203 = scmp.lt.s32.totalorder %s11, 7
      %p204 = pnand %p202, %p203
      %p205 = pneg %p204
      // Predicated region
      $region9: #{resnet_forward.5} parent=5 // pred_check
        _
      $region10: #{resnet_forward.5} parent=5 // pred_check_branch
        %207 = sbr.rel (%p204) target = $region12
      $region11: #{resnet_forward.5} parent=5 // pred_region
        %s208 = ssub.s32 %s11, 1
        // Predicated region
        $region13: #{resnet_forward.5} parent=11 // pred_check
          %p209 = pneg %p112
        $region14: #{resnet_forward.5} parent=11 // pred_check_branch
          %211 = sbr.rel (%p209) target = $region16
        $region15: #{resnet_forward.5} parent=11 // pred_region
          %p212 = scmp.lt.s32.totalorder %s22, 0
          %s213 = scalar_select %p212, %s22, 0
          %s214 = scalar_lea.vmem %s2, %s213
        $region16: #{resnet_forward.5} parent=11 // pred_fallthru
          _
        // Predicated region
        $region17: #{resnet_forward.5} parent=11 // pred_check
          %p215 = pneg %p138
        $region18: #{resnet_forward.5} parent=11 // pred_check_branch
          %217 = sbr.rel (%p215) target = $region20
        $region19: #{resnet_forward.5} parent=11 // pred_region
          %p218 = scmp.lt.s32.totalorder %s22, 0
          %s219 = scalar_select %p218, %s22, 0
          %s220 = scalar_lea.vmem %s3, %s219
        $region20: #{resnet_forward.5} parent=11 // pred_fallthru
          _
      $region12: #{resnet_forward.5} parent=5 // pred_fallthru
        _
      %p221 = scmp.lt.s32.totalorder %s11, 6
      // Predicated region
      $region21: #{resnet_forward.5} parent=5 // pred_check
        %p222 = pneg %p221
      $region22: #{resnet_forward.5} parent=5 // pred_check_branch
        %224 = sbr.rel (%p222) target = $region24
      $region23: #{resnet_forward.5} parent=5 // pred_region
        // Predicated region
        $region25: #{resnet_forward.5} parent=23 // pred_check
          %p225 = pneg %p52
        $region26: #{resnet_forward.5} parent=23 // pred_check_branch
          %227 = sbr.rel (%p225) target = $region28
        $region27: #{resnet_forward.5} parent=23 // pred_region
          %s228 = sand.u32 %s42, 1
          %s229 = sand.u32 %s42, 1
          %s230 = smul.addr %s229, 256
          %s231 = scalar_lea.vmem [#allocation3], %s230
          %s232 = smul.u32 32, %s18
          %s233 = smul.u32 2, %s20
          %s234 = smul.addr %s232, 6
          %s235 = sadd.s32 %s233, %s234
          %s236 = smul.addr %s235, 4
          %s237 = scalar_lea.vmem %s0, %s236
          // Predicated region
          $region29: #{resnet_forward.5} parent=27 // pred_check
            _
          $region30: #{resnet_forward.5} parent=27 // pred_check_branch
            %239 = sbr.rel (0) target = $region32
          $region31: #{resnet_forward.5} parent=27 // pred_region
            // Predicated region
            $region33: #{resnet_forward.5} parent=31 // pred_check
              _
            $region34: #{resnet_forward.5} parent=31 // pred_check_branch
              %241 = sbr.rel (0) target = $region36
            $region35: #{resnet_forward.5} parent=31 // pred_region
              // Predicated region
              $region48: #{resnet_forward.5} parent=35 // pred_check
                _
              $region49: #{resnet_forward.5} parent=35 // pred_check_branch
                %318 = sbr.rel (0) target = $region51
              $region50: #{resnet_forward.5} parent=35 // pred_region
                loop: start=0, step=1, limit=1
                $region52: #{resnet_forward.5} parent=50 // loop_pre_header
                  _
                $region53: #{resnet_forward.5} parent=50 // loop_header
                  %s320 = sphi 0, %s324
                  %p321 = scmp.ge.s32.totalorder %s320, 1
                  %s325 = sphi %s237, %s237
                  %s326 = sphi %s231, %s231
                $region54: #{resnet_forward.5} parent=50 // loop_header_branch
                  %323 = sbr.rel (%p321) target = $region58
                $region55: #{resnet_forward.5} parent=50 // loop_body
                  %v327 = vld [vmem:[%s325] sm:$0xff]
                  %328 = vst [vmem:[%s326] sm:$0xff] %v327
                  %v329 = vld [vmem:[%s325 + $0x18] sm:$0xff]
                  %330 = vst [vmem:[%s326 + $0x8] sm:$0xff] %v329
                  %v331 = vld [vmem:[%s325 + $0x30] sm:$0xff]
                  %332 = vst [vmem:[%s326 + $0x10] sm:$0xff] %v331
                  %v333 = vld [vmem:[%s325 + $0x48] sm:$0xff]
                  %334 = vst [vmem:[%s326 + $0x18] sm:$0xff] %v333
                  %v335 = vld [vmem:[%s325 + $0x60] sm:$0xff]
                  %336 = vst [vmem:[%s326 + $0x20] sm:$0xff] %v335
                  %v337 = vld [vmem:[%s325 + $0x78] sm:$0xff]
                  %338 = vst [vmem:[%s326 + $0x28] sm:$0xff] %v337
                  %v339 = vld [vmem:[%s325 + $0x90] sm:$0xff]
                  %340 = vst [vmem:[%s326 + $0x30] sm:$0xff] %v339
                  %v341 = vld [vmem:[%s325 + $0xa8] sm:$0xff]
                  %342 = vst [vmem:[%s326 + $0x38] sm:$0xff] %v341
                  %v343 = vld [vmem:[%s325 + $0xc0] sm:$0xff]
                  %344 = vst [vmem:[%s326 + $0x40] sm:$0xff] %v343
                  %v345 = vld [vmem:[%s325 + $0xd8] sm:$0xff]
                  %346 = vst [vmem:[%s326 + $0x48] sm:$0xff] %v345
                  %v347 = vld [vmem:[%s325 + $0xf0] sm:$0xff]
                  %348 = vst [vmem:[%s326 + $0x50] sm:$0xff] %v347
                  %v349 = vld [vmem:[%s325 + $0x108] sm:$0xff]
                  %350 = vst [vmem:[%s326 + $0x58] sm:$0xff] %v349
                  %v351 = vld [vmem:[%s325 + $0x120] sm:$0xff]
                  %352 = vst [vmem:[%s326 + $0x60] sm:$0xff] %v351
                  %v353 = vld [vmem:[%s325 + $0x138] sm:$0xff]
                  %354 = vst [vmem:[%s326 + $0x68] sm:$0xff] %v353
                  %v355 = vld [vmem:[%s325 + $0x150] sm:$0xff]
                  %356 = vst [vmem:[%s326 + $0x70] sm:$0xff] %v355
                  %v357 = vld [vmem:[%s325 + $0x168] sm:$0xff]
                  %358 = vst [vmem:[%s326 + $0x78] sm:$0xff] %v357
                  %v359 = vld [vmem:[%s325 + $0x180] sm:$0xff]
                  %360 = vst [vmem:[%s326 + $0x80] sm:$0xff] %v359
                  %v361 = vld [vmem:[%s325 + $0x198] sm:$0xff]
                  %362 = vst [vmem:[%s326 + $0x88] sm:$0xff] %v361
                  %v363 = vld [vmem:[%s325 + $0x1b0] sm:$0xff]
                  %364 = vst [vmem:[%s326 + $0x90] sm:$0xff] %v363
                  %v365 = vld [vmem:[%s325 + $0x1c8] sm:$0xff]
                  %366 = vst [vmem:[%s326 + $0x98] sm:$0xff] %v365
                  %v367 = vld [vmem:[%s325 + $0x1e0] sm:$0xff]
                  %368 = vst [vmem:[%s326 + $0xa0] sm:$0xff] %v367
                  %v369 = vld [vmem:[%s325 + $0x1f8] sm:$0xff]
                  %370 = vst [vmem:[%s326 + $0xa8] sm:$0xff] %v369
                  %v371 = vld [vmem:[%s325 + $0x210] sm:$0xff]
                  %372 = vst [vmem:[%s326 + $0xb0] sm:$0xff] %v371
                  %v373 = vld [vmem:[%s325 + $0x228] sm:$0xff]
                  %374 = vst [vmem:[%s326 + $0xb8] sm:$0xff] %v373
                  %v375 = vld [vmem:[%s325 + $0x240] sm:$0xff]
                  %376 = vst [vmem:[%s326 + $0xc0] sm:$0xff] %v375
                  %v377 = vld [vmem:[%s325 + $0x258] sm:$0xff]
                  %378 = vst [vmem:[%s326 + $0xc8] sm:$0xff] %v377
                  %v379 = vld [vmem:[%s325 + $0x270] sm:$0xff]
                  %380 = vst [vmem:[%s326 + $0xd0] sm:$0xff] %v379
                  %v381 = vld [vmem:[%s325 + $0x288] sm:$0xff]
                  %382 = vst [vmem:[%s326 + $0xd8] sm:$0xff] %v381
                  %v383 = vld [vmem:[%s325 + $0x2a0] sm:$0xff]
                  %384 = vst [vmem:[%s326 + $0xe0] sm:$0xff] %v383
                  %v385 = vld [vmem:[%s325 + $0x2b8] sm:$0xff]
                  %386 = vst [vmem:[%s326 + $0xe8] sm:$0xff] %v385
                  %v387 = vld [vmem:[%s325 + $0x2d0] sm:$0xff]
                  %388 = vst [vmem:[%s326 + $0xf0] sm:$0xff] %v387
                  %v389 = vld [vmem:[%s325 + $0x2e8] sm:$0xff]
                  %390 = vst [vmem:[%s326 + $0xf8] sm:$0xff] %v389
                $region56: #{resnet_forward.5} parent=50 // loop_footer
                  %s324 = sadd.s32 1, %s320
                $region57: #{resnet_forward.5} parent=50 // loop_footer_branch
                  %319 = sbr.rel target = $region53
                $region58: #{resnet_forward.5} parent=50 // loop_exit
                  _
              $region51: #{resnet_forward.5} parent=35 // pred_fallthru
                _
              // Predicated region
              $region59: #{resnet_forward.5} parent=35 // pred_check
                _
              $region60: #{resnet_forward.5} parent=35 // pred_check_branch
                %392 = sbr.rel target = $region62
              $region61: #{resnet_forward.5} parent=35 // pred_region
                _
              $region62: #{resnet_forward.5} parent=35 // pred_fallthru
                _
            $region36: #{resnet_forward.5} parent=31 // pred_fallthru
              _
            // Predicated region
            $region37: #{resnet_forward.5} parent=31 // pred_check
              _
            $region38: #{resnet_forward.5} parent=31 // pred_check_branch
              %243 = sbr.rel target = $region40
            $region39: #{resnet_forward.5} parent=31 // pred_region
              loop: start=0, step=1, limit=1
              $region41: #{resnet_forward.5} parent=39 // loop_pre_header
                _
              $region42: #{resnet_forward.5} parent=39 // loop_header
                %s246 = sphi 0, %s250
                %p247 = scmp.ge.s32.totalorder %s246, 1
                %s251 = sphi %s237, %s237
                %s252 = sphi %s231, %s231
              $region43: #{resnet_forward.5} parent=39 // loop_header_branch
                %249 = sbr.rel (%p247) target = $region47
              $region44: #{resnet_forward.5} parent=39 // loop_body
                %v253 = vld [vmem:[%s251] sm:$0xff]
                %254 = vst [vmem:[%s252] sm:$0xff] %v253
                %v255 = vld [vmem:[%s251 + $0x18] sm:$0xff]
                %256 = vst [vmem:[%s252 + $0x8] sm:$0xff] %v255
                %v257 = vld [vmem:[%s251 + $0x30] sm:$0xff]
                %258 = vst [vmem:[%s252 + $0x10] sm:$0xff] %v257
                %v259 = vld [vmem:[%s251 + $0x48] sm:$0xff]
                %260 = vst [vmem:[%s252 + $0x18] sm:$0xff] %v259
                %v261 = vld [vmem:[%s251 + $0x60] sm:$0xff]
                %262 = vst [vmem:[%s252 + $0x20] sm:$0xff] %v261
                %v263 = vld [vmem:[%s251 + $0x78] sm:$0xff]
                %264 = vst [vmem:[%s252 + $0x28] sm:$0xff] %v263
                %v265 = vld [vmem:[%s251 + $0x90] sm:$0xff]
                %266 = vst [vmem:[%s252 + $0x30] sm:$0xff] %v265
                %v267 = vld [vmem:[%s251 + $0xa8] sm:$0xff]
                %268 = vst [vmem:[%s252 + $0x38] sm:$0xff] %v267
                %v269 = vld [vmem:[%s251 + $0xc0] sm:$0xff]
                %270 = vst [vmem:[%s252 + $0x40] sm:$0xff] %v269
                %v271 = vld [vmem:[%s251 + $0xd8] sm:$0xff]
                %272 = vst [vmem:[%s252 + $0x48] sm:$0xff] %v271
                %v273 = vld [vmem:[%s251 + $0xf0] sm:$0xff]
                %274 = vst [vmem:[%s252 + $0x50] sm:$0xff] %v273
                %v275 = vld [vmem:[%s251 + $0x108] sm:$0xff]
                %276 = vst [vmem:[%s252 + $0x58] sm:$0xff] %v275
                %v277 = vld [vmem:[%s251 + $0x120] sm:$0xff]
                %278 = vst [vmem:[%s252 + $0x60] sm:$0xff] %v277
                %v279 = vld [vmem:[%s251 + $0x138] sm:$0xff]
                %280 = vst [vmem:[%s252 + $0x68] sm:$0xff] %v279
                %v281 = vld [vmem:[%s251 + $0x150] sm:$0xff]
                %282 = vst [vmem:[%s252 + $0x70] sm:$0xff] %v281
                %v283 = vld [vmem:[%s251 + $0x168] sm:$0xff]
                %284 = vst [vmem:[%s252 + $0x78] sm:$0xff] %v283
                %v285 = vld [vmem:[%s251 + $0x180] sm:$0xff]
                %286 = vst [vmem:[%s252 + $0x80] sm:$0xff] %v285
                %v287 = vld [vmem:[%s251 + $0x198] sm:$0xff]
                %288 = vst [vmem:[%s252 + $0x88] sm:$0xff] %v287
                %v289 = vld [vmem:[%s251 + $0x1b0] sm:$0xff]
                %290 = vst [vmem:[%s252 + $0x90] sm:$0xff] %v289
                %v291 = vld [vmem:[%s251 + $0x1c8] sm:$0xff]
                %292 = vst [vmem:[%s252 + $0x98] sm:$0xff] %v291
                %v293 = vld [vmem:[%s251 + $0x1e0] sm:$0xff]
                %294 = vst [vmem:[%s252 + $0xa0] sm:$0xff] %v293
                %v295 = vld [vmem:[%s251 + $0x1f8] sm:$0xff]
                %296 = vst [vmem:[%s252 + $0xa8] sm:$0xff] %v295
                %v297 = vld [vmem:[%s251 + $0x210] sm:$0xff]
                %298 = vst [vmem:[%s252 + $0xb0] sm:$0xff] %v297
                %v299 = vld [vmem:[%s251 + $0x228] sm:$0xff]
                %300 = vst [vmem:[%s252 + $0xb8] sm:$0xff] %v299
                %v301 = vld [vmem:[%s251 + $0x240] sm:$0xff]
                %302 = vst [vmem:[%s252 + $0xc0] sm:$0xff] %v301
                %v303 = vld [vmem:[%s251 + $0x258] sm:$0xff]
                %304 = vst [vmem:[%s252 + $0xc8] sm:$0xff] %v303
                %v305 = vld [vmem:[%s251 + $0x270] sm:$0xff]
                %306 = vst [vmem:[%s252 + $0xd0] sm:$0xff] %v305
                %v307 = vld [vmem:[%s251 + $0x288] sm:$0xff]
                %308 = vst [vmem:[%s252 + $0xd8] sm:$0xff] %v307
                %v309 = vld [vmem:[%s251 + $0x2a0] sm:$0xff]
                %310 = vst [vmem:[%s252 + $0xe0] sm:$0xff] %v309
                %v311 = vld [vmem:[%s251 + $0x2b8] sm:$0xff]
                %312 = vst [vmem:[%s252 + $0xe8] sm:$0xff] %v311
                %v313 = vld [vmem:[%s251 + $0x2d0] sm:$0xff]
                %314 = vst [vmem:[%s252 + $0xf0] sm:$0xff] %v313
                %v315 = vld [vmem:[%s251 + $0x2e8] sm:$0xff]
                %316 = vst [vmem:[%s252 + $0xf8] sm:$0xff] %v315
              $region45: #{resnet_forward.5} parent=39 // loop_footer
                %s250 = sadd.s32 1, %s246
              $region46: #{resnet_forward.5} parent=39 // loop_footer_branch
                %245 = sbr.rel target = $region42
              $region47: #{resnet_forward.5} parent=39 // loop_exit
                _
            $region40: #{resnet_forward.5} parent=31 // pred_fallthru
              _
          $region32: #{resnet_forward.5} parent=27 // pred_fallthru
            _
          %393 = vnop
        $region28: #{resnet_forward.5} parent=23 // pred_fallthru
          _
        // Predicated region
        $region63: #{resnet_forward.5} parent=23 // pred_check
          %p394 = pneg %p80
        $region64: #{resnet_forward.5} parent=23 // pred_check_branch
          %396 = sbr.rel (%p394) target = $region66
        $region65: #{resnet_forward.5} parent=23 // pred_region
          %s397 = smul.u32 32, %s20
          %p398 = scmp.lt.s32.totalorder %s397, 95
          %s399 = scalar_select %p398, %s397, 95
          %p400 = scmp.lt.s32.totalorder %s19, 0
          %s401 = scalar_select %p400, %s19, 0
          %s402 = sadd.s32 %s401, %s399
          %s403 = smul.addr %s402, 4
          %s404 = scalar_lea.vmem %s1, %s403
          %s405 = smul.u32 32, %s20
        $region66: #{resnet_forward.5} parent=23 // pred_fallthru
          _
        // Predicated region
        $region67: #{resnet_forward.5} parent=23 // pred_check
          %p406 = pneg %p160
        $region68: #{resnet_forward.5} parent=23 // pred_check_branch
          %408 = sbr.rel (%p406) target = $region70
        $region69: #{resnet_forward.5} parent=23 // pred_region
          %s409 = smul.u32 32, %s18
          %p410 = scmp.lt.s32.totalorder %s409, 63
          %s411 = scalar_select %p410, %s409, 63
          %p412 = scmp.lt.s32.totalorder %s19, 0
          %s413 = scalar_select %p412, %s19, 0
          %s414 = sadd.s32 %s413, %s411
          %s415 = smul.addr %s414, 4
          %s416 = scalar_lea.vmem %s4, %s415
          %s417 = smul.u32 32, %s18
        $region70: #{resnet_forward.5} parent=23 // pred_fallthru
          _
      $region24: #{resnet_forward.5} parent=5 // pred_fallthru
        _
      %p418 = scmp.le.s32.totalorder 1, %s11
      %p419 = scmp.lt.s32.totalorder %s11, 7
      %p420 = pnand %p418, %p419
      %p421 = pneg %p420
      // Predicated region
      $region71: #{resnet_forward.5} parent=5 // pred_check
        _
      $region72: #{resnet_forward.5} parent=5 // pred_check_branch
        %423 = sbr.rel (%p420) target = $region74
      $region73: #{resnet_forward.5} parent=5 // pred_region
        %s424 = ssub.s32 %s11, 1
        %s425 = sand.u32 %s45, 1
        %s426 = sand.u32 %s45, 1
        %s427 = smul.addr %s426, 256
        %s428 = scalar_lea.vmem [#allocation3], %s427
        // Predicated region
        $region75: #{resnet_forward.5} parent=73 // pred_check
          %p429 = pneg %p58
        $region76: #{resnet_forward.5} parent=73 // pred_check_branch
          %431 = sbr.rel (%p429) target = $region78
        $region77: #{resnet_forward.5} parent=73 // pred_region
          _
        $region78: #{resnet_forward.5} parent=73 // pred_fallthru
          _
        %s432 = sand.u32 %s45, 1
        %s433 = sand.u32 %s45, 1
        %s434 = smul.addr %s433, 256
        %s435 = scalar_lea.vmem [#allocation3], %s434
        %p436 = pneg %p58
        %p437 = pneg %p55
        %s438 = smul.u32 32, %s23
        %p439 = scmp.lt.s32.totalorder %s438, 95
        %s440 = scalar_select %p439, %s438, 95
        %p441 = scmp.lt.s32.totalorder %s22, 0
        %s442 = scalar_select %p441, %s22, 0
        %s443 = sadd.s32 %s442, %s440
        %s444 = smul.addr %s443, 4
        %s445 = scalar_lea.vmem %s1, %s444
        %p446 = pneg %p86
        %p447 = pneg %p83
        %p448 = scmp.lt.s32.totalorder %s22, 0
        %s449 = scalar_select %p448, %s22, 0
        %s450 = scalar_lea.vmem %s2, %s449
        %p451 = pneg %p112
        %p452 = pneg %p109
        %p453 = scmp.lt.s32.totalorder %s22, 0
        %s454 = scalar_select %p453, %s22, 0
        %s455 = scalar_lea.vmem %s3, %s454
        %p456 = pneg %p138
        %p457 = pneg %p135
        %s458 = smul.u32 32, %s21
        %p459 = scmp.lt.s32.totalorder %s458, 63
        %s460 = scalar_select %p459, %s458, 63
        %p461 = scmp.lt.s32.totalorder %s22, 0
        %s462 = scalar_select %p461, %s22, 0
        %s463 = sadd.s32 %s462, %s460
        %s464 = smul.addr %s463, 4
        %s465 = scalar_lea.vmem %s4, %s464
        %p466 = pneg %p166
        %p467 = pneg %p163
        %p468 = pneg %p194
        %p469 = pneg %p191
        %s470 = smul.u32 32, %s21
        %p471 = scmp.lt.s32.totalorder %s470, 63
        %s472 = scalar_select %p471, %s470, 63
        %p473 = scmp.lt.s32.totalorder %s22, 0
        %s474 = scalar_select %p473, %s22, 0
        %s475 = sadd.s32 %s474, %s472
        %s476 = smul.addr %s475, 4
        %s477 = scalar_lea.vmem %s5, %s476
        %s478 = smul.u32 32, %s21
        %s479 = smul.u32 2, %s23
        %s480 = smul.u32 32, %s23
        %p481 = scmp.lt.s32.totalorder %s480, 95
        %s482 = scalar_select %p481, %s480, 95
        %p483 = scmp.lt.s32.totalorder %s22, 0
        %s484 = scalar_select %p483, %s22, 0
        %s485 = sadd.s32 %s484, %s482
        %s486 = smul.addr %s485, 4
        %s487 = scalar_lea.vmem %s1, %s486
        %s488 = smul.u32 32, %s23
        %p489 = scmp.lt.s32.totalorder %s22, 0
        %s490 = scalar_select %p489, %s22, 0
        %s491 = scalar_lea.vmem %s2, %s490
        %p492 = scmp.lt.s32.totalorder %s22, 0
        %s493 = scalar_select %p492, %s22, 0
        %s494 = scalar_lea.vmem %s3, %s493
        %s495 = smul.u32 32, %s21
        %p496 = scmp.lt.s32.totalorder %s495, 63
        %s497 = scalar_select %p496, %s495, 63
        %p498 = scmp.lt.s32.totalorder %s22, 0
        %s499 = scalar_select %p498, %s22, 0
        %s500 = sadd.s32 %s499, %s497
        %s501 = smul.addr %s500, 4
        %s502 = scalar_lea.vmem %s4, %s501
        %s503 = smul.u32 32, %s21
        %s504 = smul.u32 32, %s21
        %p505 = scmp.lt.s32.totalorder %s504, 63
        %s506 = scalar_select %p505, %s504, 63
        %p507 = scmp.lt.s32.totalorder %s22, 0
        %s508 = scalar_select %p507, %s22, 0
        %s509 = sadd.s32 %s508, %s506
        %s510 = smul.addr %s509, 4
        %s511 = scalar_lea.vmem %s5, %s510
        %s512 = smul.u32 32, %s21
        %p514 = scmp.eq.s32.totalorder %s23, 0
        // Predicated region
        $region79: #{resnet_forward.5} parent=73 // pred_check
          %p515 = pneg %p514
        $region80: #{resnet_forward.5} parent=73 // pred_check_branch
          %517 = sbr.rel (%p515) target = $region82
        $region81: #{resnet_forward.5} parent=73 // pred_region
          %518 = vst [vmem:[#allocation2] sm:$0xff] 0.0
          %519 = vst [vmem:[#allocation2 + $0x8] sm:$0xff] 0.0
          %520 = vst [vmem:[#allocation2 + $0x10] sm:$0xff] 0.0
          %521 = vst [vmem:[#allocation2 + $0x18] sm:$0xff] 0.0
          %522 = vst [vmem:[#allocation2 + $0x20] sm:$0xff] 0.0
          %523 = vst [vmem:[#allocation2 + $0x28] sm:$0xff] 0.0
          %524 = vst [vmem:[#allocation2 + $0x30] sm:$0xff] 0.0
          %525 = vst [vmem:[#allocation2 + $0x38] sm:$0xff] 0.0
          %526 = vst [vmem:[#allocation2 + $0x40] sm:$0xff] 0.0
          %527 = vst [vmem:[#allocation2 + $0x48] sm:$0xff] 0.0
          %528 = vst [vmem:[#allocation2 + $0x50] sm:$0xff] 0.0
          %529 = vst [vmem:[#allocation2 + $0x58] sm:$0xff] 0.0
          %530 = vst [vmem:[#allocation2 + $0x60] sm:$0xff] 0.0
          %531 = vst [vmem:[#allocation2 + $0x68] sm:$0xff] 0.0
          %532 = vst [vmem:[#allocation2 + $0x70] sm:$0xff] 0.0
          %533 = vst [vmem:[#allocation2 + $0x78] sm:$0xff] 0.0
          %534 = vst [vmem:[#allocation2 + $0x80] sm:$0xff] 0.0
          %535 = vst [vmem:[#allocation2 + $0x88] sm:$0xff] 0.0
          %536 = vst [vmem:[#allocation2 + $0x90] sm:$0xff] 0.0
          %537 = vst [vmem:[#allocation2 + $0x98] sm:$0xff] 0.0
          %538 = vst [vmem:[#allocation2 + $0xa0] sm:$0xff] 0.0
          %539 = vst [vmem:[#allocation2 + $0xa8] sm:$0xff] 0.0
          %540 = vst [vmem:[#allocation2 + $0xb0] sm:$0xff] 0.0
          %541 = vst [vmem:[#allocation2 + $0xb8] sm:$0xff] 0.0
          %542 = vst [vmem:[#allocation2 + $0xc0] sm:$0xff] 0.0
          %543 = vst [vmem:[#allocation2 + $0xc8] sm:$0xff] 0.0
          %544 = vst [vmem:[#allocation2 + $0xd0] sm:$0xff] 0.0
          %545 = vst [vmem:[#allocation2 + $0xd8] sm:$0xff] 0.0
          %546 = vst [vmem:[#allocation2 + $0xe0] sm:$0xff] 0.0
          %547 = vst [vmem:[#allocation2 + $0xe8] sm:$0xff] 0.0
          %548 = vst [vmem:[#allocation2 + $0xf0] sm:$0xff] 0.0
          %549 = vst [vmem:[#allocation2 + $0xf8] sm:$0xff] 0.0
        $region82: #{resnet_forward.5} parent=73 // pred_fallthru
          _
        %v550 = vld [vmem:[#allocation2] sm:$0xff]
        %v551 = vld [vmem:[#allocation2 + $0x8] sm:$0xff]
        %v552 = vld [vmem:[#allocation2 + $0x10] sm:$0xff]
        %v553 = vld [vmem:[#allocation2 + $0x18] sm:$0xff]
        %v554 = vld [vmem:[#allocation2 + $0x20] sm:$0xff]
        %v555 = vld [vmem:[#allocation2 + $0x28] sm:$0xff]
        %v556 = vld [vmem:[#allocation2 + $0x30] sm:$0xff]
        %v557 = vld [vmem:[#allocation2 + $0x38] sm:$0xff]
        %v558 = vld [vmem:[#allocation2 + $0x40] sm:$0xff]
        %v559 = vld [vmem:[#allocation2 + $0x48] sm:$0xff]
        %v560 = vld [vmem:[#allocation2 + $0x50] sm:$0xff]
        %v561 = vld [vmem:[#allocation2 + $0x58] sm:$0xff]
        %v562 = vld [vmem:[#allocation2 + $0x60] sm:$0xff]
        %v563 = vld [vmem:[#allocation2 + $0x68] sm:$0xff]
        %v564 = vld [vmem:[#allocation2 + $0x70] sm:$0xff]
        %v565 = vld [vmem:[#allocation2 + $0x78] sm:$0xff]
        %v566 = vld [vmem:[#allocation2 + $0x80] sm:$0xff]
        %v567 = vld [vmem:[#allocation2 + $0x88] sm:$0xff]
        %v568 = vld [vmem:[#allocation2 + $0x90] sm:$0xff]
        %v569 = vld [vmem:[#allocation2 + $0x98] sm:$0xff]
        %v570 = vld [vmem:[#allocation2 + $0xa0] sm:$0xff]
        %v571 = vld [vmem:[#allocation2 + $0xa8] sm:$0xff]
        %v572 = vld [vmem:[#allocation2 + $0xb0] sm:$0xff]
        %v573 = vld [vmem:[#allocation2 + $0xb8] sm:$0xff]
        %v574 = vld [vmem:[#allocation2 + $0xc0] sm:$0xff]
        %v575 = vld [vmem:[#allocation2 + $0xc8] sm:$0xff]
        %v576 = vld [vmem:[#allocation2 + $0xd0] sm:$0xff]
        %v577 = vld [vmem:[#allocation2 + $0xd8] sm:$0xff]
        %v578 = vld [vmem:[#allocation2 + $0xe0] sm:$0xff]
        %v579 = vld [vmem:[#allocation2 + $0xe8] sm:$0xff]
        %v580 = vld [vmem:[#allocation2 + $0xf0] sm:$0xff]
        %v581 = vld [vmem:[#allocation2 + $0xf8] sm:$0xff]
        %v582 = vld [vmem:[%s428] sm:$0xff]
        %v583 = vld [vmem:[%s428 + $0x8] sm:$0xff]
        %v584 = vld [vmem:[%s428 + $0x10] sm:$0xff]
        %v585 = vld [vmem:[%s428 + $0x18] sm:$0xff]
        %v586 = vld [vmem:[%s428 + $0x20] sm:$0xff]
        %v587 = vld [vmem:[%s428 + $0x28] sm:$0xff]
        %v588 = vld [vmem:[%s428 + $0x30] sm:$0xff]
        %v589 = vld [vmem:[%s428 + $0x38] sm:$0xff]
        %v590 = vld [vmem:[%s428 + $0x40] sm:$0xff]
        %v591 = vld [vmem:[%s428 + $0x48] sm:$0xff]
        %v592 = vld [vmem:[%s428 + $0x50] sm:$0xff]
        %v593 = vld [vmem:[%s428 + $0x58] sm:$0xff]
        %v594 = vld [vmem:[%s428 + $0x60] sm:$0xff]
        %v595 = vld [vmem:[%s428 + $0x68] sm:$0xff]
        %v596 = vld [vmem:[%s428 + $0x70] sm:$0xff]
        %v597 = vld [vmem:[%s428 + $0x78] sm:$0xff]
        %v598 = vld [vmem:[%s428 + $0x80] sm:$0xff]
        %v599 = vld [vmem:[%s428 + $0x88] sm:$0xff]
        %v600 = vld [vmem:[%s428 + $0x90] sm:$0xff]
        %v601 = vld [vmem:[%s428 + $0x98] sm:$0xff]
        %v602 = vld [vmem:[%s428 + $0xa0] sm:$0xff]
        %v603 = vld [vmem:[%s428 + $0xa8] sm:$0xff]
        %v604 = vld [vmem:[%s428 + $0xb0] sm:$0xff]
        %v605 = vld [vmem:[%s428 + $0xb8] sm:$0xff]
        %v606 = vld [vmem:[%s428 + $0xc0] sm:$0xff]
        %v607 = vld [vmem:[%s428 + $0xc8] sm:$0xff]
        %v608 = vld [vmem:[%s428 + $0xd0] sm:$0xff]
        %v609 = vld [vmem:[%s428 + $0xd8] sm:$0xff]
        %v610 = vld [vmem:[%s428 + $0xe0] sm:$0xff]
        %v611 = vld [vmem:[%s428 + $0xe8] sm:$0xff]
        %v612 = vld [vmem:[%s428 + $0xf0] sm:$0xff]
        %v613 = vld [vmem:[%s428 + $0xf8] sm:$0xff]
        %v614 = vld [vmem:[%s487] sm:$0xf]
        %v615 = vld [vmem:[%s487 + $0x4] sm:$0xf]
        %v616 = vld [vmem:[%s487 + $0x8] sm:$0xf]
        %v617 = vld [vmem:[%s487 + $0xc] sm:$0xf]
        %v618 = vld [vmem:[%s487 + $0x10] sm:$0xf]
        %v619 = vld [vmem:[%s487 + $0x14] sm:$0xf]
        %v620 = vld [vmem:[%s487 + $0x18] sm:$0xf]
        %v621 = vld [vmem:[%s487 + $0x1c] sm:$0xf]
        %v622 = vld [vmem:[%s487 + $0x20] sm:$0xf]
        %v623 = vld [vmem:[%s487 + $0x24] sm:$0xf]
        %v624 = vld [vmem:[%s487 + $0x28] sm:$0xf]
        %v625 = vld [vmem:[%s487 + $0x2c] sm:$0xf]
        %v626 = vld [vmem:[%s487 + $0x30] sm:$0xf]
        %v627 = vld [vmem:[%s487 + $0x34] sm:$0xf]
        %v628 = vld [vmem:[%s487 + $0x38] sm:$0xf]
        %v629 = vld [vmem:[%s487 + $0x3c] sm:$0xf]
        %v630 = vld [vmem:[%s487 + $0x40] sm:$0xf]
        %v631 = vld [vmem:[%s487 + $0x44] sm:$0xf]
        %v632 = vld [vmem:[%s487 + $0x48] sm:$0xf]
        %v633 = vld [vmem:[%s487 + $0x4c] sm:$0xf]
        %v634 = vld [vmem:[%s487 + $0x50] sm:$0xf]
        %v635 = vld [vmem:[%s487 + $0x54] sm:$0xf]
        %v636 = vld [vmem:[%s487 + $0x58] sm:$0xf]
        %v637 = vld [vmem:[%s487 + $0x5c] sm:$0xf]
        %v638 = vld [vmem:[%s487 + $0x60] sm:$0xf]
        %v639 = vld [vmem:[%s487 + $0x64] sm:$0xf]
        %v640 = vld [vmem:[%s487 + $0x68] sm:$0xf]
        %v641 = vld [vmem:[%s487 + $0x6c] sm:$0xf]
        %v642 = vld [vmem:[%s487 + $0x70] sm:$0xf]
        %v643 = vld [vmem:[%s487 + $0x74] sm:$0xf]
        %v644 = vld [vmem:[%s487 + $0x78] sm:$0xf]
        %v645 = vld [vmem:[%s487 + $0x7c] sm:$0xf]
        %v678 = vunpack.c.l.b16 %v582
        %v679 = vunpack.c.h.b16 %v582
        %v680 = vunpack.c.l.b16 %v583
        %v681 = vunpack.c.h.b16 %v583
        %v682 = vunpack.c.l.b16 %v584
        %v683 = vunpack.c.h.b16 %v584
        %v684 = vunpack.c.l.b16 %v585
        %v685 = vunpack.c.h.b16 %v585
        %v686 = vunpack.c.l.b16 %v586
        %v687 = vunpack.c.h.b16 %v586
        %v688 = vunpack.c.l.b16 %v587
        %v689 = vunpack.c.h.b16 %v587
        %v690 = vunpack.c.l.b16 %v588
        %v691 = vunpack.c.h.b16 %v588
        %v692 = vunpack.c.l.b16 %v589
        %v693 = vunpack.c.h.b16 %v589
        %v694 = vunpack.c.l.b16 %v590
        %v695 = vunpack.c.h.b16 %v590
        %v696 = vunpack.c.l.b16 %v591
        %v697 = vunpack.c.h.b16 %v591
        %v698 = vunpack.c.l.b16 %v592
        %v699 = vunpack.c.h.b16 %v592
        %v700 = vunpack.c.l.b16 %v593
        %v701 = vunpack.c.h.b16 %v593
        %v702 = vunpack.c.l.b16 %v594
        %v703 = vunpack.c.h.b16 %v594
        %v704 = vunpack.c.l.b16 %v595
        %v705 = vunpack.c.h.b16 %v595
        %v706 = vunpack.c.l.b16 %v596
        %v707 = vunpack.c.h.b16 %v596
        %v708 = vunpack.c.l.b16 %v597
        %v709 = vunpack.c.h.b16 %v597
        %v710 = vunpack.c.l.b16 %v598
        %v711 = vunpack.c.h.b16 %v598
        %v712 = vunpack.c.l.b16 %v599
        %v713 = vunpack.c.h.b16 %v599
        %v714 = vunpack.c.l.b16 %v600
        %v715 = vunpack.c.h.b16 %v600
        %v716 = vunpack.c.l.b16 %v601
        %v717 = vunpack.c.h.b16 %v601
        %v718 = vunpack.c.l.b16 %v602
        %v719 = vunpack.c.h.b16 %v602
        %v720 = vunpack.c.l.b16 %v603
        %v721 = vunpack.c.h.b16 %v603
        %v722 = vunpack.c.l.b16 %v604
        %v723 = vunpack.c.h.b16 %v604
        %v724 = vunpack.c.l.b16 %v605
        %v725 = vunpack.c.h.b16 %v605
        %v726 = vunpack.c.l.b16 %v606
        %v727 = vunpack.c.h.b16 %v606
        %v728 = vunpack.c.l.b16 %v607
        %v729 = vunpack.c.h.b16 %v607
        %v730 = vunpack.c.l.b16 %v608
        %v731 = vunpack.c.h.b16 %v608
        %v732 = vunpack.c.l.b16 %v609
        %v733 = vunpack.c.h.b16 %v609
        %v734 = vunpack.c.l.b16 %v610
        %v735 = vunpack.c.h.b16 %v610
        %v736 = vunpack.c.l.b16 %v611
        %v737 = vunpack.c.h.b16 %v611
        %v738 = vunpack.c.l.b16 %v612
        %v739 = vunpack.c.h.b16 %v612
        %v740 = vunpack.c.l.b16 %v613
        %v741 = vunpack.c.h.b16 %v613
        %v742 = vpack.c.b16 %v680, %v678
        %v743 = vpack.c.b16 %v681, %v679
        %v744 = vpack.c.b16 %v684, %v682
        %v745 = vpack.c.b16 %v685, %v683
        %v746 = vpack.c.b16 %v688, %v686
        %v747 = vpack.c.b16 %v689, %v687
        %v748 = vpack.c.b16 %v692, %v690
        %v749 = vpack.c.b16 %v693, %v691
        %v750 = vpack.c.b16 %v696, %v694
        %v751 = vpack.c.b16 %v697, %v695
        %v752 = vpack.c.b16 %v700, %v698
        %v753 = vpack.c.b16 %v701, %v699
        %v754 = vpack.c.b16 %v704, %v702
        %v755 = vpack.c.b16 %v705, %v703
        %v756 = vpack.c.b16 %v708, %v706
        %v757 = vpack.c.b16 %v709, %v707
        %v758 = vpack.c.b16 %v712, %v710
        %v759 = vpack.c.b16 %v713, %v711
        %v760 = vpack.c.b16 %v716, %v714
        %v761 = vpack.c.b16 %v717, %v715
        %v762 = vpack.c.b16 %v720, %v718
        %v763 = vpack.c.b16 %v721, %v719
        %v764 = vpack.c.b16 %v724, %v722
        %v765 = vpack.c.b16 %v725, %v723
        %v766 = vpack.c.b16 %v728, %v726
        %v767 = vpack.c.b16 %v729, %v727
        %v768 = vpack.c.b16 %v732, %v730
        %v769 = vpack.c.b16 %v733, %v731
        %v770 = vpack.c.b16 %v736, %v734
        %v771 = vpack.c.b16 %v737, %v735
        %v772 = vpack.c.b16 %v740, %v738
        %v773 = vpack.c.b16 %v741, %v739
        %v838 = vunpack.c.l.b16 %v614
        %v839 = vunpack.c.l.b16 %v615
        %v840 = vunpack.c.l.b16 %v616
        %v841 = vunpack.c.l.b16 %v617
        %v842 = vunpack.c.l.b16 %v618
        %v843 = vunpack.c.l.b16 %v619
        %v844 = vunpack.c.l.b16 %v620
        %v845 = vunpack.c.l.b16 %v621
        %v846 = vunpack.c.l.b16 %v622
        %v847 = vunpack.c.l.b16 %v623
        %v848 = vunpack.c.l.b16 %v624
        %v849 = vunpack.c.l.b16 %v625
        %v850 = vunpack.c.l.b16 %v626
        %v851 = vunpack.c.l.b16 %v627
        %v852 = vunpack.c.l.b16 %v628
        %v853 = vunpack.c.l.b16 %v629
        %v854 = vunpack.c.l.b16 %v630
        %v855 = vunpack.c.l.b16 %v631
        %v856 = vunpack.c.l.b16 %v632
        %v857 = vunpack.c.l.b16 %v633
        %v858 = vunpack.c.l.b16 %v634
        %v859 = vunpack.c.l.b16 %v635
        %v860 = vunpack.c.l.b16 %v636
        %v861 = vunpack.c.l.b16 %v637
        %v862 = vunpack.c.l.b16 %v638
        %v863 = vunpack.c.l.b16 %v639
        %v864 = vunpack.c.l.b16 %v640
        %v865 = vunpack.c.l.b16 %v641
        %v866 = vunpack.c.l.b16 %v642
        %v867 = vunpack.c.l.b16 %v643
        %v868 = vunpack.c.l.b16 %v644
        %v869 = vunpack.c.l.b16 %v645
        %v870 = vpack.c.b16 %v839, %v838
        %v871 = vpack.c.b16 %v841, %v840
        %v872 = vpack.c.b16 %v843, %v842
        %v873 = vpack.c.b16 %v845, %v844
        %v874 = vpack.c.b16 %v847, %v846
        %v875 = vpack.c.b16 %v849, %v848
        %v876 = vpack.c.b16 %v851, %v850
        %v877 = vpack.c.b16 %v853, %v852
        %v878 = vpack.c.b16 %v855, %v854
        %v879 = vpack.c.b16 %v857, %v856
        %v880 = vpack.c.b16 %v859, %v858
        %v881 = vpack.c.b16 %v861, %v860
        %v882 = vpack.c.b16 %v863, %v862
        %v883 = vpack.c.b16 %v865, %v864
        %v884 = vpack.c.b16 %v867, %v866
        %v885 = vpack.c.b16 %v869, %v868
        %902 = vmatprep.subr.bf16.mxu0 0
        %903 = vmatpush1.bf16.msra.mxu0 %v870
        %904 = vmatprep.subr.bf16.mxu0 0
        %905 = vmatpush1.bf16.msra.mxu0 %v871
        %906 = vmatprep.subr.bf16.mxu0 0
        %907 = vmatpush1.bf16.msra.mxu0 %v872
        %908 = vmatprep.subr.bf16.mxu0 0
        %909 = vmatpush1.bf16.msra.mxu0 %v873
        %910 = vmatprep.subr.bf16.mxu0 0
        %911 = vmatpush1.bf16.msra.mxu0 %v874
        %912 = vmatprep.subr.bf16.mxu0 0
        %913 = vmatpush1.bf16.msra.mxu0 %v875
        %914 = vmatprep.subr.bf16.mxu0 0
        %915 = vmatpush1.bf16.msra.mxu0 %v876
        %916 = vmatprep.subr.bf16.mxu0 0
        %917 = vmatpush1.bf16.msra.mxu0 %v877
        %918 = vmatprep.subr.bf16.mxu0 0
        %919 = vmatpush1.bf16.msra.mxu0 %v878
        %920 = vmatprep.subr.bf16.mxu0 0
        %921 = vmatpush1.bf16.msra.mxu0 %v879
        %922 = vmatprep.subr.bf16.mxu0 0
        %923 = vmatpush1.bf16.msra.mxu0 %v880
        %924 = vmatprep.subr.bf16.mxu0 0
        %925 = vmatpush1.bf16.msra.mxu0 %v881
        %926 = vmatprep.subr.bf16.mxu0 0
        %927 = vmatpush1.bf16.msra.mxu0 %v882
        %928 = vmatprep.subr.bf16.mxu0 0
        %929 = vmatpush1.bf16.msra.mxu0 %v883
        %930 = vmatprep.subr.bf16.mxu0 0
        %931 = vmatpush1.bf16.msra.mxu0 %v884
        %932 = vmatprep.subr.bf16.mxu0 0
        %933 = vmatpush1.bf16.msra.mxu0 %v885
        %934 = vmatprep.mubr.bf16.mxu0 %v743
        %935 = vmatmul.mubr.bf16.gmra.mrb[0].mxu0 %v742
        %v936 = vpop.f32.mrb[0].mxu0
        %v937 = vadd.f32 0.0, %v936
        %v938 = vpop.f32.mrb[0].mxu0
        %v939 = vpop.f32.mrb[0].mxu0
        %v940 = vadd.f32 0.0, %v939
        %v941 = vpop.f32.mrb[0].mxu0
        %942 = vmatprep.mubr.bf16.mxu0 %v745
        %943 = vmatmul.mubr.bf16.gmra.mrb[0].mxu0 %v744
        %v944 = vpop.f32.mrb[0].mxu0
        %v945 = vadd.f32 0.0, %v944
        %v946 = vpop.f32.mrb[0].mxu0
        %v947 = vpop.f32.mrb[0].mxu0
        %v948 = vadd.f32 0.0, %v947
        %v949 = vpop.f32.mrb[0].mxu0
        %950 = vmatprep.mubr.bf16.mxu0 %v747
        %951 = vmatmul.mubr.bf16.gmra.mrb[0].mxu0 %v746
        %v952 = vpop.f32.mrb[0].mxu0
        %v953 = vadd.f32 0.0, %v952
        %v954 = vpop.f32.mrb[0].mxu0
        %v955 = vpop.f32.mrb[0].mxu0
        %v956 = vadd.f32 0.0, %v955
        %v957 = vpop.f32.mrb[0].mxu0
        %958 = vmatprep.mubr.bf16.mxu0 %v749
        %959 = vmatmul.mubr.bf16.gmra.mrb[0].mxu0 %v748
        %v960 = vpop.f32.mrb[0].mxu0
        %v961 = vadd.f32 0.0, %v960
        %v962 = vpop.f32.mrb[0].mxu0
        %v963 = vpop.f32.mrb[0].mxu0
        %v964 = vadd.f32 0.0, %v963
        %v965 = vpop.f32.mrb[0].mxu0
        %966 = vmatprep.mubr.bf16.mxu0 %v751
        %967 = vmatmul.mubr.bf16.gmra.mrb[0].mxu0 %v750
        %v968 = vpop.f32.mrb[0].mxu0
        %v969 = vadd.f32 0.0, %v968
        %v970 = vpop.f32.mrb[0].mxu0
        %v971 = vpop.f32.mrb[0].mxu0
        %v972 = vadd.f32 0.0, %v971
        %v973 = vpop.f32.mrb[0].mxu0
        %974 = vmatprep.mubr.bf16.mxu0 %v753
        %975 = vmatmul.mubr.bf16.gmra.mrb[0].mxu0 %v752
        %v976 = vpop.f32.mrb[0].mxu0
        %v977 = vadd.f32 0.0, %v976
        %v978 = vpop.f32.mrb[0].mxu0
        %v979 = vpop.f32.mrb[0].mxu0
        %v980 = vadd.f32 0.0, %v979
        %v981 = vpop.f32.mrb[0].mxu0
        %982 = vmatprep.mubr.bf16.mxu0 %v755
        %983 = vmatmul.mubr.bf16.gmra.mrb[0].mxu0 %v754
        %v984 = vpop.f32.mrb[0].mxu0
        %v985 = vadd.f32 0.0, %v984
        %v986 = vpop.f32.mrb[0].mxu0
        %v987 = vpop.f32.mrb[0].mxu0
        %v988 = vadd.f32 0.0, %v987
        %v989 = vpop.f32.mrb[0].mxu0
        %990 = vmatprep.mubr.bf16.mxu0 %v757
        %991 = vmatmul.mubr.bf16.gmra.mrb[0].mxu0 %v756
        %v992 = vpop.f32.mrb[0].mxu0
        %v993 = vadd.f32 0.0, %v992
        %v994 = vpop.f32.mrb[0].mxu0
        %v995 = vpop.f32.mrb[0].mxu0
        %v996 = vadd.f32 0.0, %v995
        %v997 = vpop.f32.mrb[0].mxu0
        %998 = vmatprep.mubr.bf16.mxu0 %v759
        %999 = vmatmul.mubr.bf16.gmra.mrb[0].mxu0 %v758
        %v1000 = vpop.f32.mrb[0].mxu0
        %v1001 = vadd.f32 0.0, %v1000
        %v1002 = vpop.f32.mrb[0].mxu0
        %v1003 = vpop.f32.mrb[0].mxu0
        %v1004 = vadd.f32 0.0, %v1003
        %v1005 = vpop.f32.mrb[0].mxu0
        %1006 = vmatprep.mubr.bf16.mxu0 %v761
        %1007 = vmatmul.mubr.bf16.gmra.mrb[0].mxu0 %v760
        %v1008 = vpop.f32.mrb[0].mxu0
        %v1009 = vadd.f32 0.0, %v1008
        %v1010 = vpop.f32.mrb[0].mxu0
        %v1011 = vpop.f32.mrb[0].mxu0
        %v1012 = vadd.f32 0.0, %v1011
        %v1013 = vpop.f32.mrb[0].mxu0
        %1014 = vmatprep.mubr.bf16.mxu0 %v763
        %1015 = vmatmul.mubr.bf16.gmra.mrb[0].mxu0 %v762
        %v1016 = vpop.f32.mrb[0].mxu0
        %v1017 = vadd.f32 0.0, %v1016
        %v1018 = vpop.f32.mrb[0].mxu0
        %v1019 = vpop.f32.mrb[0].mxu0
        %v1020 = vadd.f32 0.0, %v1019
        %v1021 = vpop.f32.mrb[0].mxu0
        %1022 = vmatprep.mubr.bf16.mxu0 %v765
        %1023 = vmatmul.mubr.bf16.gmra.mrb[0].mxu0 %v764
        %v1024 = vpop.f32.mrb[0].mxu0
        %v1025 = vadd.f32 0.0, %v1024
        %v1026 = vpop.f32.mrb[0].mxu0
        %v1027 = vpop.f32.mrb[0].mxu0
        %v1028 = vadd.f32 0.0, %v1027
        %v1029 = vpop.f32.mrb[0].mxu0
        %1030 = vmatprep.mubr.bf16.mxu0 %v767
        %1031 = vmatmul.mubr.bf16.gmra.mrb[0].mxu0 %v766
        %v1032 = vpop.f32.mrb[0].mxu0
        %v1033 = vadd.f32 0.0, %v1032
        %v1034 = vpop.f32.mrb[0].mxu0
        %v1035 = vpop.f32.mrb[0].mxu0
        %v1036 = vadd.f32 0.0, %v1035
        %v1037 = vpop.f32.mrb[0].mxu0
        %1038 = vmatprep.mubr.bf16.mxu0 %v769
        %1039 = vmatmul.mubr.bf16.gmra.mrb[0].mxu0 %v768
        %v1040 = vpop.f32.mrb[0].mxu0
        %v1041 = vadd.f32 0.0, %v1040
        %v1042 = vpop.f32.mrb[0].mxu0
        %v1043 = vpop.f32.mrb[0].mxu0
        %v1044 = vadd.f32 0.0, %v1043
        %v1045 = vpop.f32.mrb[0].mxu0
        %1046 = vmatprep.mubr.bf16.mxu0 %v771
        %1047 = vmatmul.mubr.bf16.gmra.mrb[0].mxu0 %v770
        %v1048 = vpop.f32.mrb[0].mxu0
        %v1049 = vadd.f32 0.0, %v1048
        %v1050 = vpop.f32.mrb[0].mxu0
        %v1051 = vpop.f32.mrb[0].mxu0
        %v1052 = vadd.f32 0.0, %v1051
        %v1053 = vpop.f32.mrb[0].mxu0
        %1054 = vmatprep.mubr.bf16.mxu0 %v773
        %1055 = vmatmul.mubr.bf16.gmra.mrb[0].mxu0 %v772
        %v1056 = vpop.f32.mrb[0].mxu0
        %v1057 = vadd.f32 0.0, %v1056
        %v1058 = vpop.f32.mrb[0].mxu0
        %v1059 = vpop.f32.mrb[0].mxu0
        %v1060 = vadd.f32 0.0, %v1059
        %v1061 = vpop.f32.mrb[0].mxu0
        %1062 = vdwg.mxu0
        %v1063 = vadd.f32 %v550, %v937
        %v1064 = vadd.f32 %v551, %v940
        %v1065 = vadd.f32 %v552, %v945
        %v1066 = vadd.f32 %v553, %v948
        %v1067 = vadd.f32 %v554, %v953
        %v1068 = vadd.f32 %v555, %v956
        %v1069 = vadd.f32 %v556, %v961
        %v1070 = vadd.f32 %v557, %v964
        %v1071 = vadd.f32 %v558, %v969
        %v1072 = vadd.f32 %v559, %v972
        %v1073 = vadd.f32 %v560, %v977
        %v1074 = vadd.f32 %v561, %v980
        %v1075 = vadd.f32 %v562, %v985
        %v1076 = vadd.f32 %v563, %v988
        %v1077 = vadd.f32 %v564, %v993
        %v1078 = vadd.f32 %v565, %v996
        %v1079 = vadd.f32 %v566, %v1001
        %v1080 = vadd.f32 %v567, %v1004
        %v1081 = vadd.f32 %v568, %v1009
        %v1082 = vadd.f32 %v569, %v1012
        %v1083 = vadd.f32 %v570, %v1017
        %v1084 = vadd.f32 %v571, %v1020
        %v1085 = vadd.f32 %v572, %v1025
        %v1086 = vadd.f32 %v573, %v1028
        %v1087 = vadd.f32 %v574, %v1033
        %v1088 = vadd.f32 %v575, %v1036
        %v1089 = vadd.f32 %v576, %v1041
        %v1090 = vadd.f32 %v577, %v1044
        %v1091 = vadd.f32 %v578, %v1049
        %v1092 = vadd.f32 %v579, %v1052
        %v1093 = vadd.f32 %v580, %v1057
        %v1094 = vadd.f32 %v581, %v1060
        %1095 = vst [vmem:[#allocation2] sm:$0xff] %v1063
        %1096 = vst [vmem:[#allocation2 + $0x8] sm:$0xff] %v1064
        %1097 = vst [vmem:[#allocation2 + $0x10] sm:$0xff] %v1065
        %1098 = vst [vmem:[#allocation2 + $0x18] sm:$0xff] %v1066
        %1099 = vst [vmem:[#allocation2 + $0x20] sm:$0xff] %v1067
        %1100 = vst [vmem:[#allocation2 + $0x28] sm:$0xff] %v1068
        %1101 = vst [vmem:[#allocation2 + $0x30] sm:$0xff] %v1069
        %1102 = vst [vmem:[#allocation2 + $0x38] sm:$0xff] %v1070
        %1103 = vst [vmem:[#allocation2 + $0x40] sm:$0xff] %v1071
        %1104 = vst [vmem:[#allocation2 + $0x48] sm:$0xff] %v1072
        %1105 = vst [vmem:[#allocation2 + $0x50] sm:$0xff] %v1073
        %1106 = vst [vmem:[#allocation2 + $0x58] sm:$0xff] %v1074
        %1107 = vst [vmem:[#allocation2 + $0x60] sm:$0xff] %v1075
        %1108 = vst [vmem:[#allocation2 + $0x68] sm:$0xff] %v1076
        %1109 = vst [vmem:[#allocation2 + $0x70] sm:$0xff] %v1077
        %1110 = vst [vmem:[#allocation2 + $0x78] sm:$0xff] %v1078
        %1111 = vst [vmem:[#allocation2 + $0x80] sm:$0xff] %v1079
        %1112 = vst [vmem:[#allocation2 + $0x88] sm:$0xff] %v1080
        %1113 = vst [vmem:[#allocation2 + $0x90] sm:$0xff] %v1081
        %1114 = vst [vmem:[#allocation2 + $0x98] sm:$0xff] %v1082
        %1115 = vst [vmem:[#allocation2 + $0xa0] sm:$0xff] %v1083
        %1116 = vst [vmem:[#allocation2 + $0xa8] sm:$0xff] %v1084
        %1117 = vst [vmem:[#allocation2 + $0xb0] sm:$0xff] %v1085
        %1118 = vst [vmem:[#allocation2 + $0xb8] sm:$0xff] %v1086
        %1119 = vst [vmem:[#allocation2 + $0xc0] sm:$0xff] %v1087
        %1120 = vst [vmem:[#allocation2 + $0xc8] sm:$0xff] %v1088
        %1121 = vst [vmem:[#allocation2 + $0xd0] sm:$0xff] %v1089
        %1122 = vst [vmem:[#allocation2 + $0xd8] sm:$0xff] %v1090
        %1123 = vst [vmem:[#allocation2 + $0xe0] sm:$0xff] %v1091
        %1124 = vst [vmem:[#allocation2 + $0xe8] sm:$0xff] %v1092
        %1125 = vst [vmem:[#allocation2 + $0xf0] sm:$0xff] %v1093
        %1126 = vst [vmem:[#allocation2 + $0xf8] sm:$0xff] %v1094
        %p1127 = scmp.eq.s32.totalorder %s23, 2
        // Predicated region
        $region83: #{resnet_forward.5} parent=73 // pred_check
          %p1128 = pneg %p1127
        $region84: #{resnet_forward.5} parent=73 // pred_check_branch
          %1130 = sbr.rel (%p1128) target = $region86
        $region85: #{resnet_forward.5} parent=73 // pred_region
          %v1131 = vld [vmem:[#allocation2] sm:$0xff]
          %v1132 = vld [vmem:[#allocation2 + $0x8] sm:$0xff]
          %v1133 = vld [vmem:[#allocation2 + $0x10] sm:$0xff]
          %v1134 = vld [vmem:[#allocation2 + $0x18] sm:$0xff]
          %v1135 = vld [vmem:[#allocation2 + $0x20] sm:$0xff]
          %v1136 = vld [vmem:[#allocation2 + $0x28] sm:$0xff]
          %v1137 = vld [vmem:[#allocation2 + $0x30] sm:$0xff]
          %v1138 = vld [vmem:[#allocation2 + $0x38] sm:$0xff]
          %v1139 = vld [vmem:[#allocation2 + $0x40] sm:$0xff]
          %v1140 = vld [vmem:[#allocation2 + $0x48] sm:$0xff]
          %v1141 = vld [vmem:[#allocation2 + $0x50] sm:$0xff]
          %v1142 = vld [vmem:[#allocation2 + $0x58] sm:$0xff]
          %v1143 = vld [vmem:[#allocation2 + $0x60] sm:$0xff]
          %v1144 = vld [vmem:[#allocation2 + $0x68] sm:$0xff]
          %v1145 = vld [vmem:[#allocation2 + $0x70] sm:$0xff]
          %v1146 = vld [vmem:[#allocation2 + $0x78] sm:$0xff]
          %v1147 = vld [vmem:[#allocation2 + $0x80] sm:$0xff]
          %v1148 = vld [vmem:[#allocation2 + $0x88] sm:$0xff]
          %v1149 = vld [vmem:[#allocation2 + $0x90] sm:$0xff]
          %v1150 = vld [vmem:[#allocation2 + $0x98] sm:$0xff]
          %v1151 = vld [vmem:[#allocation2 + $0xa0] sm:$0xff]
          %v1152 = vld [vmem:[#allocation2 + $0xa8] sm:$0xff]
          %v1153 = vld [vmem:[#allocation2 + $0xb0] sm:$0xff]
          %v1154 = vld [vmem:[#allocation2 + $0xb8] sm:$0xff]
          %v1155 = vld [vmem:[#allocation2 + $0xc0] sm:$0xff]
          %v1156 = vld [vmem:[#allocation2 + $0xc8] sm:$0xff]
          %v1157 = vld [vmem:[#allocation2 + $0xd0] sm:$0xff]
          %v1158 = vld [vmem:[#allocation2 + $0xd8] sm:$0xff]
          %v1159 = vld [vmem:[#allocation2 + $0xe0] sm:$0xff]
          %v1160 = vld [vmem:[#allocation2 + $0xe8] sm:$0xff]
          %v1161 = vld [vmem:[#allocation2 + $0xf0] sm:$0xff]
          %v1162 = vld [vmem:[#allocation2 + $0xf8] sm:$0xff]
          %v1163 = vld [vmem:[%s491] sm:$0x1]
          %v1165 = vlaneseq
          %v1166 = vshrl.u32 %v1165, 7
          %v1167 = vsub.s32 0, %v1166
          %v1168 = vrot.slane %v1163, %v1167
          %v1170 = vmul.f32 %v1131, %v1168
          %v1171 = vmul.f32 %v1132, %v1168
          %v1172 = vmul.f32 %v1133, %v1168
          %v1173 = vmul.f32 %v1134, %v1168
          %v1174 = vmul.f32 %v1135, %v1168
          %v1175 = vmul.f32 %v1136, %v1168
          %v1176 = vmul.f32 %v1137, %v1168
          %v1177 = vmul.f32 %v1138, %v1168
          %v1178 = vmul.f32 %v1139, %v1168
          %v1179 = vmul.f32 %v1140, %v1168
          %v1180 = vmul.f32 %v1141, %v1168
          %v1181 = vmul.f32 %v1142, %v1168
          %v1182 = vmul.f32 %v1143, %v1168
          %v1183 = vmul.f32 %v1144, %v1168
          %v1184 = vmul.f32 %v1145, %v1168
          %v1185 = vmul.f32 %v1146, %v1168
          %v1186 = vmul.f32 %v1147, %v1168
          %v1187 = vmul.f32 %v1148, %v1168
          %v1188 = vmul.f32 %v1149, %v1168
          %v1189 = vmul.f32 %v1150, %v1168
          %v1190 = vmul.f32 %v1151, %v1168
          %v1191 = vmul.f32 %v1152, %v1168
          %v1192 = vmul.f32 %v1153, %v1168
          %v1193 = vmul.f32 %v1154, %v1168
          %v1194 = vmul.f32 %v1155, %v1168
          %v1195 = vmul.f32 %v1156, %v1168
          %v1196 = vmul.f32 %v1157, %v1168
          %v1197 = vmul.f32 %v1158, %v1168
          %v1198 = vmul.f32 %v1159, %v1168
          %v1199 = vmul.f32 %v1160, %v1168
          %v1200 = vmul.f32 %v1161, %v1168
          %v1201 = vmul.f32 %v1162, %v1168
          %v1202 = vld [vmem:[%s494] sm:$0x1]
          %v1204 = vlaneseq
          %v1205 = vshrl.u32 %v1204, 7
          %v1206 = vsub.s32 0, %v1205
          %v1207 = vrot.slane %v1202, %v1206
          %v1209 = vadd.f32 %v1170, %v1207
          %v1210 = vadd.f32 %v1171, %v1207
          %v1211 = vadd.f32 %v1172, %v1207
          %v1212 = vadd.f32 %v1173, %v1207
          %v1213 = vadd.f32 %v1174, %v1207
          %v1214 = vadd.f32 %v1175, %v1207
          %v1215 = vadd.f32 %v1176, %v1207
          %v1216 = vadd.f32 %v1177, %v1207
          %v1217 = vadd.f32 %v1178, %v1207
          %v1218 = vadd.f32 %v1179, %v1207
          %v1219 = vadd.f32 %v1180, %v1207
          %v1220 = vadd.f32 %v1181, %v1207
          %v1221 = vadd.f32 %v1182, %v1207
          %v1222 = vadd.f32 %v1183, %v1207
          %v1223 = vadd.f32 %v1184, %v1207
          %v1224 = vadd.f32 %v1185, %v1207
          %v1225 = vadd.f32 %v1186, %v1207
          %v1226 = vadd.f32 %v1187, %v1207
          %v1227 = vadd.f32 %v1188, %v1207
          %v1228 = vadd.f32 %v1189, %v1207
          %v1229 = vadd.f32 %v1190, %v1207
          %v1230 = vadd.f32 %v1191, %v1207
          %v1231 = vadd.f32 %v1192, %v1207
          %v1232 = vadd.f32 %v1193, %v1207
          %v1233 = vadd.f32 %v1194, %v1207
          %v1234 = vadd.f32 %v1195, %v1207
          %v1235 = vadd.f32 %v1196, %v1207
          %v1236 = vadd.f32 %v1197, %v1207
          %v1237 = vadd.f32 %v1198, %v1207
          %v1238 = vadd.f32 %v1199, %v1207
          %v1239 = vadd.f32 %v1200, %v1207
          %v1240 = vadd.f32 %v1201, %v1207
          %v1241 = vld [vmem:[%s502] sm:$0xf]
          %v1242 = vld [vmem:[%s502 + $0x4] sm:$0xf]
          %v1243 = vld [vmem:[%s502 + $0x8] sm:$0xf]
          %v1244 = vld [vmem:[%s502 + $0xc] sm:$0xf]
          %v1245 = vld [vmem:[%s502 + $0x10] sm:$0xf]
          %v1246 = vld [vmem:[%s502 + $0x14] sm:$0xf]
          %v1247 = vld [vmem:[%s502 + $0x18] sm:$0xf]
          %v1248 = vld [vmem:[%s502 + $0x1c] sm:$0xf]
          %v1249 = vld [vmem:[%s502 + $0x20] sm:$0xf]
          %v1250 = vld [vmem:[%s502 + $0x24] sm:$0xf]
          %v1251 = vld [vmem:[%s502 + $0x28] sm:$0xf]
          %v1252 = vld [vmem:[%s502 + $0x2c] sm:$0xf]
          %v1253 = vld [vmem:[%s502 + $0x30] sm:$0xf]
          %v1254 = vld [vmem:[%s502 + $0x34] sm:$0xf]
          %v1255 = vld [vmem:[%s502 + $0x38] sm:$0xf]
          %v1256 = vld [vmem:[%s502 + $0x3c] sm:$0xf]
          %v1257 = vld [vmem:[%s502 + $0x40] sm:$0xf]
          %v1258 = vld [vmem:[%s502 + $0x44] sm:$0xf]
          %v1259 = vld [vmem:[%s502 + $0x48] sm:$0xf]
          %v1260 = vld [vmem:[%s502 + $0x4c] sm:$0xf]
          %v1261 = vld [vmem:[%s502 + $0x50] sm:$0xf]
          %v1262 = vld [vmem:[%s502 + $0x54] sm:$0xf]
          %v1263 = vld [vmem:[%s502 + $0x58] sm:$0xf]
          %v1264 = vld [vmem:[%s502 + $0x5c] sm:$0xf]
          %v1265 = vld [vmem:[%s502 + $0x60] sm:$0xf]
          %v1266 = vld [vmem:[%s502 + $0x64] sm:$0xf]
          %v1267 = vld [vmem:[%s502 + $0x68] sm:$0xf]
          %v1268 = vld [vmem:[%s502 + $0x6c] sm:$0xf]
          %v1269 = vld [vmem:[%s502 + $0x70] sm:$0xf]
          %v1270 = vld [vmem:[%s502 + $0x74] sm:$0xf]
          %v1271 = vld [vmem:[%s502 + $0x78] sm:$0xf]
          %v1272 = vld [vmem:[%s502 + $0x7c] sm:$0xf]
          %v1273 = vunpack.c.l.bf16 %v1241
          %v1274 = vunpack.c.l.bf16 %v1242
          %v1275 = vunpack.c.l.bf16 %v1243
          %v1276 = vunpack.c.l.bf16 %v1244
          %v1277 = vunpack.c.l.bf16 %v1245
          %v1278 = vunpack.c.l.bf16 %v1246
          %v1279 = vunpack.c.l.bf16 %v1247
          %v1280 = vunpack.c.l.bf16 %v1248
          %v1281 = vunpack.c.l.bf16 %v1249
          %v1282 = vunpack.c.l.bf16 %v1250
          %v1283 = vunpack.c.l.bf16 %v1251
          %v1284 = vunpack.c.l.bf16 %v1252
          %v1285 = vunpack.c.l.bf16 %v1253
          %v1286 = vunpack.c.l.bf16 %v1254
          %v1287 = vunpack.c.l.bf16 %v1255
          %v1288 = vunpack.c.l.bf16 %v1256
          %v1289 = vunpack.c.l.bf16 %v1257
          %v1290 = vunpack.c.l.bf16 %v1258
          %v1291 = vunpack.c.l.bf16 %v1259
          %v1292 = vunpack.c.l.bf16 %v1260
          %v1293 = vunpack.c.l.bf16 %v1261
          %v1294 = vunpack.c.l.bf16 %v1262
          %v1295 = vunpack.c.l.bf16 %v1263
          %v1296 = vunpack.c.l.bf16 %v1264
          %v1297 = vunpack.c.l.bf16 %v1265
          %v1298 = vunpack.c.l.bf16 %v1266
          %v1299 = vunpack.c.l.bf16 %v1267
          %v1300 = vunpack.c.l.bf16 %v1268
          %v1301 = vunpack.c.l.bf16 %v1269
          %v1302 = vunpack.c.l.bf16 %v1270
          %v1303 = vunpack.c.l.bf16 %v1271
          %v1304 = vunpack.c.l.bf16 %v1272
          %v1305 = vadd.f32 %v1209, %v1273
          %v1306 = vadd.f32 %v1210, %v1274
          %v1307 = vadd.f32 %v1211, %v1275
          %v1308 = vadd.f32 %v1212, %v1276
          %v1309 = vadd.f32 %v1213, %v1277
          %v1310 = vadd.f32 %v1214, %v1278
          %v1311 = vadd.f32 %v1215, %v1279
          %v1312 = vadd.f32 %v1216, %v1280
          %v1313 = vadd.f32 %v1217, %v1281
          %v1314 = vadd.f32 %v1218, %v1282
          %v1315 = vadd.f32 %v1219, %v1283
          %v1316 = vadd.f32 %v1220, %v1284
          %v1317 = vadd.f32 %v1221, %v1285
          %v1318 = vadd.f32 %v1222, %v1286
          %v1319 = vadd.f32 %v1223, %v1287
          %v1320 = vadd.f32 %v1224, %v1288
          %v1321 = vadd.f32 %v1225, %v1289
          %v1322 = vadd.f32 %v1226, %v1290
          %v1323 = vadd.f32 %v1227, %v1291
          %v1324 = vadd.f32 %v1228, %v1292
          %v1325 = vadd.f32 %v1229, %v1293
          %v1326 = vadd.f32 %v1230, %v1294
          %v1327 = vadd.f32 %v1231, %v1295
          %v1328 = vadd.f32 %v1232, %v1296
          %v1329 = vadd.f32 %v1233, %v1297
          %v1330 = vadd.f32 %v1234, %v1298
          %v1331 = vadd.f32 %v1235, %v1299
          %v1332 = vadd.f32 %v1236, %v1300
          %v1333 = vadd.f32 %v1237, %v1301
          %v1334 = vadd.f32 %v1238, %v1302
          %v1335 = vadd.f32 %v1239, %v1303
          %v1336 = vadd.f32 %v1240, %v1304
          %v1337 = vmax.f32 %v1305, 0.0
          %v1338 = vmax.f32 %v1306, 0.0
          %v1339 = vmax.f32 %v1307, 0.0
          %v1340 = vmax.f32 %v1308, 0.0
          %v1341 = vmax.f32 %v1309, 0.0
          %v1342 = vmax.f32 %v1310, 0.0
          %v1343 = vmax.f32 %v1311, 0.0
          %v1344 = vmax.f32 %v1312, 0.0
          %v1345 = vmax.f32 %v1313, 0.0
          %v1346 = vmax.f32 %v1314, 0.0
          %v1347 = vmax.f32 %v1315, 0.0
          %v1348 = vmax.f32 %v1316, 0.0
          %v1349 = vmax.f32 %v1317, 0.0
          %v1350 = vmax.f32 %v1318, 0.0
          %v1351 = vmax.f32 %v1319, 0.0
          %v1352 = vmax.f32 %v1320, 0.0
          %v1353 = vmax.f32 %v1321, 0.0
          %v1354 = vmax.f32 %v1322, 0.0
          %v1355 = vmax.f32 %v1323, 0.0
          %v1356 = vmax.f32 %v1324, 0.0
          %v1357 = vmax.f32 %v1325, 0.0
          %v1358 = vmax.f32 %v1326, 0.0
          %v1359 = vmax.f32 %v1327, 0.0
          %v1360 = vmax.f32 %v1328, 0.0
          %v1361 = vmax.f32 %v1329, 0.0
          %v1362 = vmax.f32 %v1330, 0.0
          %v1363 = vmax.f32 %v1331, 0.0
          %v1364 = vmax.f32 %v1332, 0.0
          %v1365 = vmax.f32 %v1333, 0.0
          %v1366 = vmax.f32 %v1334, 0.0
          %v1367 = vmax.f32 %v1335, 0.0
          %v1368 = vmax.f32 %v1336, 0.0
          %v1369 = vpack.c.bf16 %v1338, %v1337
          %v1370 = vpack.c.bf16 %v1340, %v1339
          %v1371 = vpack.c.bf16 %v1342, %v1341
          %v1372 = vpack.c.bf16 %v1344, %v1343
          %v1373 = vpack.c.bf16 %v1346, %v1345
          %v1374 = vpack.c.bf16 %v1348, %v1347
          %v1375 = vpack.c.bf16 %v1350, %v1349
          %v1376 = vpack.c.bf16 %v1352, %v1351
          %v1377 = vpack.c.bf16 %v1354, %v1353
          %v1378 = vpack.c.bf16 %v1356, %v1355
          %v1379 = vpack.c.bf16 %v1358, %v1357
          %v1380 = vpack.c.bf16 %v1360, %v1359
          %v1381 = vpack.c.bf16 %v1362, %v1361
          %v1382 = vpack.c.bf16 %v1364, %v1363
          %v1383 = vpack.c.bf16 %v1366, %v1365
          %v1384 = vpack.c.bf16 %v1368, %v1367
          %v1401 = vunpack.c.l.b16 %v1369
          %v1402 = vunpack.c.h.b16 %v1369
          %v1403 = vunpack.c.l.b16 %v1370
          %v1404 = vunpack.c.h.b16 %v1370
          %v1405 = vunpack.c.l.b16 %v1371
          %v1406 = vunpack.c.h.b16 %v1371
          %v1407 = vunpack.c.l.b16 %v1372
          %v1408 = vunpack.c.h.b16 %v1372
          %v1409 = vunpack.c.l.b16 %v1373
          %v1410 = vunpack.c.h.b16 %v1373
          %v1411 = vunpack.c.l.b16 %v1374
          %v1412 = vunpack.c.h.b16 %v1374
          %v1413 = vunpack.c.l.b16 %v1375
          %v1414 = vunpack.c.h.b16 %v1375
          %v1415 = vunpack.c.l.b16 %v1376
          %v1416 = vunpack.c.h.b16 %v1376
          %v1417 = vunpack.c.l.b16 %v1377
          %v1418 = vunpack.c.h.b16 %v1377
          %v1419 = vunpack.c.l.b16 %v1378
          %v1420 = vunpack.c.h.b16 %v1378
          %v1421 = vunpack.c.l.b16 %v1379
          %v1422 = vunpack.c.h.b16 %v1379
          %v1423 = vunpack.c.l.b16 %v1380
          %v1424 = vunpack.c.h.b16 %v1380
          %v1425 = vunpack.c.l.b16 %v1381
          %v1426 = vunpack.c.h.b16 %v1381
          %v1427 = vunpack.c.l.b16 %v1382
          %v1428 = vunpack.c.h.b16 %v1382
          %v1429 = vunpack.c.l.b16 %v1383
          %v1430 = vunpack.c.h.b16 %v1383
          %v1431 = vunpack.c.l.b16 %v1384
          %v1432 = vunpack.c.h.b16 %v1384
          %v1433 = vpack.c.b16 %v1401, %v1401
          %v1434 = vpack.c.b16 %v1402, %v1402
          %v1435 = vpack.c.b16 %v1403, %v1403
          %v1436 = vpack.c.b16 %v1404, %v1404
          %v1437 = vpack.c.b16 %v1405, %v1405
          %v1438 = vpack.c.b16 %v1406, %v1406
          %v1439 = vpack.c.b16 %v1407, %v1407
          %v1440 = vpack.c.b16 %v1408, %v1408
          %v1441 = vpack.c.b16 %v1409, %v1409
          %v1442 = vpack.c.b16 %v1410, %v1410
          %v1443 = vpack.c.b16 %v1411, %v1411
          %v1444 = vpack.c.b16 %v1412, %v1412
          %v1445 = vpack.c.b16 %v1413, %v1413
          %v1446 = vpack.c.b16 %v1414, %v1414
          %v1447 = vpack.c.b16 %v1415, %v1415
          %v1448 = vpack.c.b16 %v1416, %v1416
          %v1449 = vpack.c.b16 %v1417, %v1417
          %v1450 = vpack.c.b16 %v1418, %v1418
          %v1451 = vpack.c.b16 %v1419, %v1419
          %v1452 = vpack.c.b16 %v1420, %v1420
          %v1453 = vpack.c.b16 %v1421, %v1421
          %v1454 = vpack.c.b16 %v1422, %v1422
          %v1455 = vpack.c.b16 %v1423, %v1423
          %v1456 = vpack.c.b16 %v1424, %v1424
          %v1457 = vpack.c.b16 %v1425, %v1425
          %v1458 = vpack.c.b16 %v1426, %v1426
          %v1459 = vpack.c.b16 %v1427, %v1427
          %v1460 = vpack.c.b16 %v1428, %v1428
          %v1461 = vpack.c.b16 %v1429, %v1429
          %v1462 = vpack.c.b16 %v1430, %v1430
          %v1463 = vpack.c.b16 %v1431, %v1431
          %v1464 = vpack.c.b16 %v1432, %v1432
          %1497 = vst [vmem:[%s511] sm:$0xf] %v1433
          %1498 = vst [vmem:[%s511 + $0x4] sm:$0xf] %v1434
          %1499 = vst [vmem:[%s511 + $0x8] sm:$0xf] %v1435
          %1500 = vst [vmem:[%s511 + $0xc] sm:$0xf] %v1436
          %1501 = vst [vmem:[%s511 + $0x10] sm:$0xf] %v1437
          %1502 = vst [vmem:[%s511 + $0x14] sm:$0xf] %v1438
          %1503 = vst [vmem:[%s511 + $0x18] sm:$0xf] %v1439
          %1504 = vst [vmem:[%s511 + $0x1c] sm:$0xf] %v1440
          %1505 = vst [vmem:[%s511 + $0x20] sm:$0xf] %v1441
          %1506 = vst [vmem:[%s511 + $0x24] sm:$0xf] %v1442
          %1507 = vst [vmem:[%s511 + $0x28] sm:$0xf] %v1443
          %1508 = vst [vmem:[%s511 + $0x2c] sm:$0xf] %v1444
          %1509 = vst [vmem:[%s511 + $0x30] sm:$0xf] %v1445
          %1510 = vst [vmem:[%s511 + $0x34] sm:$0xf] %v1446
          %1511 = vst [vmem:[%s511 + $0x38] sm:$0xf] %v1447
          %1512 = vst [vmem:[%s511 + $0x3c] sm:$0xf] %v1448
          %1513 = vst [vmem:[%s511 + $0x40] sm:$0xf] %v1449
          %1514 = vst [vmem:[%s511 + $0x44] sm:$0xf] %v1450
          %1515 = vst [vmem:[%s511 + $0x48] sm:$0xf] %v1451
          %1516 = vst [vmem:[%s511 + $0x4c] sm:$0xf] %v1452
          %1517 = vst [vmem:[%s511 + $0x50] sm:$0xf] %v1453
          %1518 = vst [vmem:[%s511 + $0x54] sm:$0xf] %v1454
          %1519 = vst [vmem:[%s511 + $0x58] sm:$0xf] %v1455
          %1520 = vst [vmem:[%s511 + $0x5c] sm:$0xf] %v1456
          %1521 = vst [vmem:[%s511 + $0x60] sm:$0xf] %v1457
          %1522 = vst [vmem:[%s511 + $0x64] sm:$0xf] %v1458
          %1523 = vst [vmem:[%s511 + $0x68] sm:$0xf] %v1459
          %1524 = vst [vmem:[%s511 + $0x6c] sm:$0xf] %v1460
          %1525 = vst [vmem:[%s511 + $0x70] sm:$0xf] %v1461
          %1526 = vst [vmem:[%s511 + $0x74] sm:$0xf] %v1462
          %1527 = vst [vmem:[%s511 + $0x78] sm:$0xf] %v1463
          %1528 = vst [vmem:[%s511 + $0x7c] sm:$0xf] %v1464
        $region86: #{resnet_forward.5} parent=73 // pred_fallthru
          _
        %s1529 = smul.u32 32, %s21
        %p1530 = scmp.lt.s32.totalorder %s1529, 63
        %s1531 = scalar_select %p1530, %s1529, 63
        %p1532 = scmp.lt.s32.totalorder %s22, 0
        %s1533 = scalar_select %p1532, %s22, 0
        %s1534 = sadd.s32 %s1533, %s1531
        %s1535 = smul.addr %s1534, 4
        %s1536 = scalar_lea.vmem %s5, %s1535
        // Predicated region
        $region87: #{resnet_forward.5} parent=73 // pred_check
          %p1537 = pneg %p191
        $region88: #{resnet_forward.5} parent=73 // pred_check_branch
          %1539 = sbr.rel (%p1537) target = $region90
        $region89: #{resnet_forward.5} parent=73 // pred_region
          %s1540 = smul.u32 32, %s21
        $region90: #{resnet_forward.5} parent=73 // pred_fallthru
          _
      $region74: #{resnet_forward.5} parent=5 // pred_fallthru
        _
      %p1541 = scmp.le.s32.totalorder 2, %s11
      // Predicated region
      $region91: #{resnet_forward.5} parent=5 // pred_check
        %p1542 = pneg %p1541
      $region92: #{resnet_forward.5} parent=5 // pred_check_branch
        %1544 = sbr.rel (%p1542) target = $region94
      $region93: #{resnet_forward.5} parent=5 // pred_region
        %s1545 = ssub.s32 %s11, 2
        // Predicated region
        $region95: #{resnet_forward.5} parent=93 // pred_check
          %p1546 = pneg %p197
        $region96: #{resnet_forward.5} parent=93 // pred_check_branch
          %1548 = sbr.rel (%p1546) target = $region98
        $region97: #{resnet_forward.5} parent=93 // pred_region
          %s1549 = smul.u32 32, %s24
          %p1550 = scmp.lt.s32.totalorder %s1549, 63
          %s1551 = scalar_select %p1550, %s1549, 63
          %p1552 = scmp.lt.s32.totalorder %s25, 0
          %s1553 = scalar_select %p1552, %s25, 0
          %s1554 = sadd.s32 %s1553, %s1551
          %s1555 = smul.addr %s1554, 4
          %s1556 = scalar_lea.vmem %s5, %s1555
        $region98: #{resnet_forward.5} parent=93 // pred_fallthru
          _
      $region94: #{resnet_forward.5} parent=5 // pred_fallthru
        _
    $region6: #{resnet_forward.5} parent=1 // loop_footer
      %s15 = sadd.s32 1, %s11
    $region7: #{resnet_forward.5} parent=1 // loop_footer_branch
      %10 = sbr.rel target = $region3
    $region8: #{resnet_forward.5} parent=1 // loop_exit
      _

// kernel: resnet_forward.4
$region0: #{resnet_forward.4}
  #allocation0 [shape = 'u32[]', space=smem, size = 0x4, offset = 0x4, fixed_abs, tag = 'smem constant byte address 0x4 - core index']
  #allocation1 [shape = 'u32[144,128]{1,0:T(1,128)}', space=vmem, size = 0x12000, scoped, tag = 'internal scratch']
  #allocation2 [shape = 'f32[256,128]{1,0:T(8,128)}', space=vmem, size = 0x20000, scoped, tag = 'scratch operand']
  %s0 = inlined_call_operand.vmem [shape: bf16[512,768], index: 0, kind: input, shape index: {}]
  %s1 = inlined_call_operand.vmem [shape: bf16[768,128], index: 1, kind: input, shape index: {}]
  %s2 = inlined_call_operand.vmem [shape: f32[1,128], index: 2, kind: input, shape index: {}]
  %s3 = inlined_call_operand.vmem [shape: f32[1,128], index: 3, kind: input, shape index: {}]
  %s4 = inlined_call_operand.vmem [shape: bf16[512,128], index: 4, kind: output, shape index: {}]
  %s5 = sld [smem:[#allocation0]]
  $region95: #{resnet_forward.4} parent=0
    _
  %s7 = ssub.s32 1, %s5
  %s8 = scalar_select 0, %s7, %s5
  $region1: #{resnet_forward.4} parent=0
    #allocation3 [shape = 'u8[262144]{0}', space=vmem, size = 0x40000, scoped, tag = 'input window, operand 0']
    loop: start=0, step=1, limit=8
    $region2: #{resnet_forward.4} parent=1 // loop_pre_header
      _
    $region3: #{resnet_forward.4} parent=1 // loop_header
      %s10 = sphi 0, %s14
      %p11 = scmp.ge.s32.totalorder %s10, 8
      %s17 = sphi 0, %s36
      %s18 = sphi 0, %s32
      %s19 = sphi 0, %s28
      %s20 = sphi 0, %s17
      %s21 = sphi 0, %s18
      %s22 = sphi 0, %s19
      %s23 = sphi 0, %s20
      %s24 = sphi 0, %s21
      %s25 = sphi 0, %s22
      %s41 = sphi 0, %s43
      %s44 = sphi 0, %s41
      %s45 = sphi 0, %s44
      %s61 = sphi 0, %s45
      %s69 = sphi 0, %s71
      %s72 = sphi 0, %s69
      %s73 = sphi 0, %s72
      %s89 = sphi 0, %s73
      %s95 = sphi 0, %s97
      %s98 = sphi 0, %s95
      %s99 = sphi 0, %s98
      %s115 = sphi 0, %s99
      %s121 = sphi 0, %s123
      %s124 = sphi 0, %s121
      %s125 = sphi 0, %s124
      %s141 = sphi 0, %s125
      %s149 = sphi 0, %s151
      %s152 = sphi 0, %s149
      %s153 = sphi 0, %s152
      %s169 = sphi 0, %s153
    $region4: #{resnet_forward.4} parent=1 // loop_header_branch
      %13 = sbr.rel (%p11) target = $region8
    $region5: #{resnet_forward.4} parent=1 // loop_body
      %s15 = ssub.s32 %s10, 1
      %s16 = ssub.s32 %s10, 2
      %s26 = sadd.s32 1, %s19
      %p27 = scmp.ge.s32.totalorder %s26, 3
      %s28 = scalar_select %p27, 0, %s26
      %s29 = sadd.s32 1, %s18
      %s30 = scalar_select %p27, %s29, %s18
      %p31 = scmp.ge.s32.totalorder %s30, 1
      %s32 = scalar_select %p31, 0, %s30
      %s33 = sadd.s32 1, %s17
      %s34 = scalar_select %p31, %s33, %s17
      %p35 = scmp.ge.s32.totalorder %s34, 2
      %s36 = scalar_select %p35, 0, %s34
      %s37 = ssub.s32 %s17, %s36
      %s38 = ssub.s32 %s19, %s28
      %s39 = sor.u32 %s37, %s38
      %p40 = scmp.eq.s32.totalorder %s39, 0
      %s42 = sadd.s32 %s41, 1
      %s43 = scalar_select %p40, %s41, %s42
      %p46 = pneg %p40
      %p47 = scmp.eq.s32.totalorder %s10, 5
      %p48 = por %p46, %p47
      %p49 = scmp.ne.s32.totalorder %s41, %s44
      %p50 = scmp.eq.s32.totalorder %s10, 0
      %p51 = por %p49, %p50
      %p52 = scmp.ne.s32.totalorder %s41, %s44
      %p53 = scmp.eq.s32.totalorder %s15, 5
      %p54 = por %p52, %p53
      %p55 = scmp.ne.s32.totalorder %s44, %s45
      %p56 = scmp.eq.s32.totalorder %s15, 0
      %p57 = por %p55, %p56
      %p58 = scmp.ne.s32.totalorder %s44, %s45
      %p59 = scmp.eq.s32.totalorder %s16, 5
      %p60 = por %p58, %p59
      %p62 = scmp.ne.s32.totalorder %s45, %s61
      %p63 = scmp.eq.s32.totalorder %s16, 0
      %p64 = por %p62, %p63
      %s65 = ssub.s32 %s19, %s28
      %s66 = ssub.s32 %s18, %s32
      %s67 = sor.u32 %s65, %s66
      %p68 = scmp.eq.s32.totalorder %s67, 0
      %s70 = sadd.s32 %s69, 1
      %s71 = scalar_select %p68, %s69, %s70
      %p74 = pneg %p68
      %p75 = scmp.eq.s32.totalorder %s10, 5
      %p76 = por %p74, %p75
      %p77 = scmp.ne.s32.totalorder %s69, %s72
      %p78 = scmp.eq.s32.totalorder %s10, 0
      %p79 = por %p77, %p78
      %p80 = scmp.ne.s32.totalorder %s69, %s72
      %p81 = scmp.eq.s32.totalorder %s15, 5
      %p82 = por %p80, %p81
      %p83 = scmp.ne.s32.totalorder %s72, %s73
      %p84 = scmp.eq.s32.totalorder %s15, 0
      %p85 = por %p83, %p84
      %p86 = scmp.ne.s32.totalorder %s72, %s73
      %p87 = scmp.eq.s32.totalorder %s16, 5
      %p88 = por %p86, %p87
      %p90 = scmp.ne.s32.totalorder %s73, %s89
      %p91 = scmp.eq.s32.totalorder %s16, 0
      %p92 = por %p90, %p91
      %s93 = ssub.s32 %s18, %s32
      %p94 = scmp.eq.s32.totalorder %s93, 0
      %s96 = sadd.s32 %s95, 1
      %s97 = scalar_select %p94, %s95, %s96
      %p100 = pneg %p94
      %p101 = scmp.eq.s32.totalorder %s10, 5
      %p102 = por %p100, %p101
      %p103 = scmp.ne.s32.totalorder %s95, %s98
      %p104 = scmp.eq.s32.totalorder %s10, 0
      %p105 = por %p103, %p104
      %p106 = scmp.ne.s32.totalorder %s95, %s98
      %p107 = scmp.eq.s32.totalorder %s15, 5
      %p108 = por %p106, %p107
      %p109 = scmp.ne.s32.totalorder %s98, %s99
      %p110 = scmp.eq.s32.totalorder %s15, 0
      %p111 = por %p109, %p110
      %p112 = scmp.ne.s32.totalorder %s98, %s99
      %p113 = scmp.eq.s32.totalorder %s16, 5
      %p114 = por %p112, %p113
      %p116 = scmp.ne.s32.totalorder %s99, %s115
      %p117 = scmp.eq.s32.totalorder %s16, 0
      %p118 = por %p116, %p117
      %s119 = ssub.s32 %s18, %s32
      %p120 = scmp.eq.s32.totalorder %s119, 0
      %s122 = sadd.s32 %s121, 1
      %s123 = scalar_select %p120, %s121, %s122
      %p126 = pneg %p120
      %p127 = scmp.eq.s32.totalorder %s10, 5
      %p128 = por %p126, %p127
      %p129 = scmp.ne.s32.totalorder %s121, %s124
      %p130 = scmp.eq.s32.totalorder %s10, 0
      %p131 = por %p129, %p130
      %p132 = scmp.ne.s32.totalorder %s121, %s124
      %p133 = scmp.eq.s32.totalorder %s15, 5
      %p134 = por %p132, %p133
      %p135 = scmp.ne.s32.totalorder %s124, %s125
      %p136 = scmp.eq.s32.totalorder %s15, 0
      %p137 = por %p135, %p136
      %p138 = scmp.ne.s32.totalorder %s124, %s125
      %p139 = scmp.eq.s32.totalorder %s16, 5
      %p140 = por %p138, %p139
      %p142 = scmp.ne.s32.totalorder %s125, %s141
      %p143 = scmp.eq.s32.totalorder %s16, 0
      %p144 = por %p142, %p143
      %s145 = ssub.s32 %s17, %s36
      %s146 = ssub.s32 %s18, %s32
      %s147 = sor.u32 %s145, %s146
      %p148 = scmp.eq.s32.totalorder %s147, 0
      %s150 = sadd.s32 %s149, 1
      %s151 = scalar_select %p148, %s149, %s150
      %p154 = pneg %p148
      %p155 = scmp.eq.s32.totalorder %s10, 5
      %p156 = por %p154, %p155
      %p157 = scmp.ne.s32.totalorder %s149, %s152
      %p158 = scmp.eq.s32.totalorder %s10, 0
      %p159 = por %p157, %p158
      %p160 = scmp.ne.s32.totalorder %s149, %s152
      %p161 = scmp.eq.s32.totalorder %s15, 5
      %p162 = por %p160, %p161
      %p163 = scmp.ne.s32.totalorder %s152, %s153
      %p164 = scmp.eq.s32.totalorder %s15, 0
      %p165 = por %p163, %p164
      %p166 = scmp.ne.s32.totalorder %s152, %s153
      %p167 = scmp.eq.s32.totalorder %s16, 5
      %p168 = por %p166, %p167
      %p170 = scmp.ne.s32.totalorder %s153, %s169
      %p171 = scmp.eq.s32.totalorder %s16, 0
      %p172 = por %p170, %p171
      %p173 = scmp.le.s32.totalorder 1, %s10
      %p174 = scmp.lt.s32.totalorder %s10, 7
      %p175 = pnand %p173, %p174
      %p176 = pneg %p175
      // Predicated region
      $region9: #{resnet_forward.4} parent=5 // pred_check
        _
      $region10: #{resnet_forward.4} parent=5 // pred_check_branch
        %178 = sbr.rel (%p175) target = $region12
      $region11: #{resnet_forward.4} parent=5 // pred_region
        %s179 = ssub.s32 %s10, 1
        // Predicated region
        $region13: #{resnet_forward.4} parent=11 // pred_check
          %p180 = pneg %p111
        $region14: #{resnet_forward.4} parent=11 // pred_check_branch
          %182 = sbr.rel (%p180) target = $region16
        $region15: #{resnet_forward.4} parent=11 // pred_region
          %p183 = scmp.lt.s32.totalorder %s21, 0
          %s184 = scalar_select %p183, %s21, 0
          %s185 = scalar_lea.vmem %s2, %s184
        $region16: #{resnet_forward.4} parent=11 // pred_fallthru
          _
        // Predicated region
        $region17: #{resnet_forward.4} parent=11 // pred_check
          %p186 = pneg %p137
        $region18: #{resnet_forward.4} parent=11 // pred_check_branch
          %188 = sbr.rel (%p186) target = $region20
        $region19: #{resnet_forward.4} parent=11 // pred_region
          %p189 = scmp.lt.s32.totalorder %s21, 0
          %s190 = scalar_select %p189, %s21, 0
          %s191 = scalar_lea.vmem %s3, %s190
        $region20: #{resnet_forward.4} parent=11 // pred_fallthru
          _
      $region12: #{resnet_forward.4} parent=5 // pred_fallthru
        _
      %p192 = scmp.lt.s32.totalorder %s10, 6
      // Predicated region
      $region21: #{resnet_forward.4} parent=5 // pred_check
        %p193 = pneg %p192
      $region22: #{resnet_forward.4} parent=5 // pred_check_branch
        %195 = sbr.rel (%p193) target = $region24
      $region23: #{resnet_forward.4} parent=5 // pred_region
        // Predicated region
        $region25: #{resnet_forward.4} parent=23 // pred_check
          %p196 = pneg %p51
        $region26: #{resnet_forward.4} parent=23 // pred_check_branch
          %198 = sbr.rel (%p196) target = $region28
        $region27: #{resnet_forward.4} parent=23 // pred_region
          %s199 = sand.u32 %s41, 1
          %s200 = sand.u32 %s41, 1
          %s201 = smul.addr %s200, 256
          %s202 = scalar_lea.vmem [#allocation3], %s201
          %s203 = smul.u32 32, %s17
          %s204 = smul.u32 2, %s19
          %s205 = smul.addr %s203, 6
          %s206 = sadd.s32 %s204, %s205
          %s207 = smul.addr %s206, 4
          %s208 = scalar_lea.vmem %s0, %s207
          // Predicated region
          $region29: #{resnet_forward.4} parent=27 // pred_check
            _
          $region30: #{resnet_forward.4} parent=27 // pred_check_branch
            %210 = sbr.rel (0) target = $region32
          $region31: #{resnet_forward.4} parent=27 // pred_region
            // Predicated region
            $region33: #{resnet_forward.4} parent=31 // pred_check
              _
            $region34: #{resnet_forward.4} parent=31 // pred_check_branch
              %212 = sbr.rel (0) target = $region36
            $region35: #{resnet_forward.4} parent=31 // pred_region
              // Predicated region
              $region48: #{resnet_forward.4} parent=35 // pred_check
                _
              $region49: #{resnet_forward.4} parent=35 // pred_check_branch
                %289 = sbr.rel (0) target = $region51
              $region50: #{resnet_forward.4} parent=35 // pred_region
                loop: start=0, step=1, limit=1
                $region52: #{resnet_forward.4} parent=50 // loop_pre_header
                  _
                $region53: #{resnet_forward.4} parent=50 // loop_header
                  %s291 = sphi 0, %s295
                  %p292 = scmp.ge.s32.totalorder %s291, 1
                  %s296 = sphi %s208, %s208
                  %s297 = sphi %s202, %s202
                $region54: #{resnet_forward.4} parent=50 // loop_header_branch
                  %294 = sbr.rel (%p292) target = $region58
                $region55: #{resnet_forward.4} parent=50 // loop_body
                  %v298 = vld [vmem:[%s296] sm:$0xff]
                  %299 = vst [vmem:[%s297] sm:$0xff] %v298
                  %v300 = vld [vmem:[%s296 + $0x18] sm:$0xff]
                  %301 = vst [vmem:[%s297 + $0x8] sm:$0xff] %v300
                  %v302 = vld [vmem:[%s296 + $0x30] sm:$0xff]
                  %303 = vst [vmem:[%s297 + $0x10] sm:$0xff] %v302
                  %v304 = vld [vmem:[%s296 + $0x48] sm:$0xff]
                  %305 = vst [vmem:[%s297 + $0x18] sm:$0xff] %v304
                  %v306 = vld [vmem:[%s296 + $0x60] sm:$0xff]
                  %307 = vst [vmem:[%s297 + $0x20] sm:$0xff] %v306
                  %v308 = vld [vmem:[%s296 + $0x78] sm:$0xff]
                  %309 = vst [vmem:[%s297 + $0x28] sm:$0xff] %v308
                  %v310 = vld [vmem:[%s296 + $0x90] sm:$0xff]
                  %311 = vst [vmem:[%s297 + $0x30] sm:$0xff] %v310
                  %v312 = vld [vmem:[%s296 + $0xa8] sm:$0xff]
                  %313 = vst [vmem:[%s297 + $0x38] sm:$0xff] %v312
                  %v314 = vld [vmem:[%s296 + $0xc0] sm:$0xff]
                  %315 = vst [vmem:[%s297 + $0x40] sm:$0xff] %v314
                  %v316 = vld [vmem:[%s296 + $0xd8] sm:$0xff]
                  %317 = vst [vmem:[%s297 + $0x48] sm:$0xff] %v316
                  %v318 = vld [vmem:[%s296 + $0xf0] sm:$0xff]
                  %319 = vst [vmem:[%s297 + $0x50] sm:$0xff] %v318
                  %v320 = vld [vmem:[%s296 + $0x108] sm:$0xff]
                  %321 = vst [vmem:[%s297 + $0x58] sm:$0xff] %v320
                  %v322 = vld [vmem:[%s296 + $0x120] sm:$0xff]
                  %323 = vst [vmem:[%s297 + $0x60] sm:$0xff] %v322
                  %v324 = vld [vmem:[%s296 + $0x138] sm:$0xff]
                  %325 = vst [vmem:[%s297 + $0x68] sm:$0xff] %v324
                  %v326 = vld [vmem:[%s296 + $0x150] sm:$0xff]
                  %327 = vst [vmem:[%s297 + $0x70] sm:$0xff] %v326
                  %v328 = vld [vmem:[%s296 + $0x168] sm:$0xff]
                  %329 = vst [vmem:[%s297 + $0x78] sm:$0xff] %v328
                  %v330 = vld [vmem:[%s296 + $0x180] sm:$0xff]
                  %331 = vst [vmem:[%s297 + $0x80] sm:$0xff] %v330
                  %v332 = vld [vmem:[%s296 + $0x198] sm:$0xff]
                  %333 = vst [vmem:[%s297 + $0x88] sm:$0xff] %v332
                  %v334 = vld [vmem:[%s296 + $0x1b0] sm:$0xff]
                  %335 = vst [vmem:[%s297 + $0x90] sm:$0xff] %v334
                  %v336 = vld [vmem:[%s296 + $0x1c8] sm:$0xff]
                  %337 = vst [vmem:[%s297 + $0x98] sm:$0xff] %v336
                  %v338 = vld [vmem:[%s296 + $0x1e0] sm:$0xff]
                  %339 = vst [vmem:[%s297 + $0xa0] sm:$0xff] %v338
                  %v340 = vld [vmem:[%s296 + $0x1f8] sm:$0xff]
                  %341 = vst [vmem:[%s297 + $0xa8] sm:$0xff] %v340
                  %v342 = vld [vmem:[%s296 + $0x210] sm:$0xff]
                  %343 = vst [vmem:[%s297 + $0xb0] sm:$0xff] %v342
                  %v344 = vld [vmem:[%s296 + $0x228] sm:$0xff]
                  %345 = vst [vmem:[%s297 + $0xb8] sm:$0xff] %v344
                  %v346 = vld [vmem:[%s296 + $0x240] sm:$0xff]
                  %347 = vst [vmem:[%s297 + $0xc0] sm:$0xff] %v346
                  %v348 = vld [vmem:[%s296 + $0x258] sm:$0xff]
                  %349 = vst [vmem:[%s297 + $0xc8] sm:$0xff] %v348
                  %v350 = vld [vmem:[%s296 + $0x270] sm:$0xff]
                  %351 = vst [vmem:[%s297 + $0xd0] sm:$0xff] %v350
                  %v352 = vld [vmem:[%s296 + $0x288] sm:$0xff]
                  %353 = vst [vmem:[%s297 + $0xd8] sm:$0xff] %v352
                  %v354 = vld [vmem:[%s296 + $0x2a0] sm:$0xff]
                  %355 = vst [vmem:[%s297 + $0xe0] sm:$0xff] %v354
                  %v356 = vld [vmem:[%s296 + $0x2b8] sm:$0xff]
                  %357 = vst [vmem:[%s297 + $0xe8] sm:$0xff] %v356
                  %v358 = vld [vmem:[%s296 + $0x2d0] sm:$0xff]
                  %359 = vst [vmem:[%s297 + $0xf0] sm:$0xff] %v358
                  %v360 = vld [vmem:[%s296 + $0x2e8] sm:$0xff]
                  %361 = vst [vmem:[%s297 + $0xf8] sm:$0xff] %v360
                $region56: #{resnet_forward.4} parent=50 // loop_footer
                  %s295 = sadd.s32 1, %s291
                $region57: #{resnet_forward.4} parent=50 // loop_footer_branch
                  %290 = sbr.rel target = $region53
                $region58: #{resnet_forward.4} parent=50 // loop_exit
                  _
              $region51: #{resnet_forward.4} parent=35 // pred_fallthru
                _
              // Predicated region
              $region59: #{resnet_forward.4} parent=35 // pred_check
                _
              $region60: #{resnet_forward.4} parent=35 // pred_check_branch
                %363 = sbr.rel target = $region62
              $region61: #{resnet_forward.4} parent=35 // pred_region
                _
              $region62: #{resnet_forward.4} parent=35 // pred_fallthru
                _
            $region36: #{resnet_forward.4} parent=31 // pred_fallthru
              _
            // Predicated region
            $region37: #{resnet_forward.4} parent=31 // pred_check
              _
            $region38: #{resnet_forward.4} parent=31 // pred_check_branch
              %214 = sbr.rel target = $region40
            $region39: #{resnet_forward.4} parent=31 // pred_region
              loop: start=0, step=1, limit=1
              $region41: #{resnet_forward.4} parent=39 // loop_pre_header
                _
              $region42: #{resnet_forward.4} parent=39 // loop_header
                %s217 = sphi 0, %s221
                %p218 = scmp.ge.s32.totalorder %s217, 1
                %s222 = sphi %s208, %s208
                %s223 = sphi %s202, %s202
              $region43: #{resnet_forward.4} parent=39 // loop_header_branch
                %220 = sbr.rel (%p218) target = $region47
              $region44: #{resnet_forward.4} parent=39 // loop_body
                %v224 = vld [vmem:[%s222] sm:$0xff]
                %225 = vst [vmem:[%s223] sm:$0xff] %v224
                %v226 = vld [vmem:[%s222 + $0x18] sm:$0xff]
                %227 = vst [vmem:[%s223 + $0x8] sm:$0xff] %v226
                %v228 = vld [vmem:[%s222 + $0x30] sm:$0xff]
                %229 = vst [vmem:[%s223 + $0x10] sm:$0xff] %v228
                %v230 = vld [vmem:[%s222 + $0x48] sm:$0xff]
                %231 = vst [vmem:[%s223 + $0x18] sm:$0xff] %v230
                %v232 = vld [vmem:[%s222 + $0x60] sm:$0xff]
                %233 = vst [vmem:[%s223 + $0x20] sm:$0xff] %v232
                %v234 = vld [vmem:[%s222 + $0x78] sm:$0xff]
                %235 = vst [vmem:[%s223 + $0x28] sm:$0xff] %v234
                %v236 = vld [vmem:[%s222 + $0x90] sm:$0xff]
                %237 = vst [vmem:[%s223 + $0x30] sm:$0xff] %v236
                %v238 = vld [vmem:[%s222 + $0xa8] sm:$0xff]
                %239 = vst [vmem:[%s223 + $0x38] sm:$0xff] %v238
                %v240 = vld [vmem:[%s222 + $0xc0] sm:$0xff]
                %241 = vst [vmem:[%s223 + $0x40] sm:$0xff] %v240
                %v242 = vld [vmem:[%s222 + $0xd8] sm:$0xff]
                %243 = vst [vmem:[%s223 + $0x48] sm:$0xff] %v242
                %v244 = vld [vmem:[%s222 + $0xf0] sm:$0xff]
                %245 = vst [vmem:[%s223 + $0x50] sm:$0xff] %v244
                %v246 = vld [vmem:[%s222 + $0x108] sm:$0xff]
                %247 = vst [vmem:[%s223 + $0x58] sm:$0xff] %v246
                %v248 = vld [vmem:[%s222 + $0x120] sm:$0xff]
                %249 = vst [vmem:[%s223 + $0x60] sm:$0xff] %v248
                %v250 = vld [vmem:[%s222 + $0x138] sm:$0xff]
                %251 = vst [vmem:[%s223 + $0x68] sm:$0xff] %v250
                %v252 = vld [vmem:[%s222 + $0x150] sm:$0xff]
                %253 = vst [vmem:[%s223 + $0x70] sm:$0xff] %v252
                %v254 = vld [vmem:[%s222 + $0x168] sm:$0xff]
                %255 = vst [vmem:[%s223 + $0x78] sm:$0xff] %v254
                %v256 = vld [vmem:[%s222 + $0x180] sm:$0xff]
                %257 = vst [vmem:[%s223 + $0x80] sm:$0xff] %v256
                %v258 = vld [vmem:[%s222 + $0x198] sm:$0xff]
                %259 = vst [vmem:[%s223 + $0x88] sm:$0xff] %v258
                %v260 = vld [vmem:[%s222 + $0x1b0] sm:$0xff]
                %261 = vst [vmem:[%s223 + $0x90] sm:$0xff] %v260
                %v262 = vld [vmem:[%s222 + $0x1c8] sm:$0xff]
                %263 = vst [vmem:[%s223 + $0x98] sm:$0xff] %v262
                %v264 = vld [vmem:[%s222 + $0x1e0] sm:$0xff]
                %265 = vst [vmem:[%s223 + $0xa0] sm:$0xff] %v264
                %v266 = vld [vmem:[%s222 + $0x1f8] sm:$0xff]
                %267 = vst [vmem:[%s223 + $0xa8] sm:$0xff] %v266
                %v268 = vld [vmem:[%s222 + $0x210] sm:$0xff]
                %269 = vst [vmem:[%s223 + $0xb0] sm:$0xff] %v268
                %v270 = vld [vmem:[%s222 + $0x228] sm:$0xff]
                %271 = vst [vmem:[%s223 + $0xb8] sm:$0xff] %v270
                %v272 = vld [vmem:[%s222 + $0x240] sm:$0xff]
                %273 = vst [vmem:[%s223 + $0xc0] sm:$0xff] %v272
                %v274 = vld [vmem:[%s222 + $0x258] sm:$0xff]
                %275 = vst [vmem:[%s223 + $0xc8] sm:$0xff] %v274
                %v276 = vld [vmem:[%s222 + $0x270] sm:$0xff]
                %277 = vst [vmem:[%s223 + $0xd0] sm:$0xff] %v276
                %v278 = vld [vmem:[%s222 + $0x288] sm:$0xff]
                %279 = vst [vmem:[%s223 + $0xd8] sm:$0xff] %v278
                %v280 = vld [vmem:[%s222 + $0x2a0] sm:$0xff]
                %281 = vst [vmem:[%s223 + $0xe0] sm:$0xff] %v280
                %v282 = vld [vmem:[%s222 + $0x2b8] sm:$0xff]
                %283 = vst [vmem:[%s223 + $0xe8] sm:$0xff] %v282
                %v284 = vld [vmem:[%s222 + $0x2d0] sm:$0xff]
                %285 = vst [vmem:[%s223 + $0xf0] sm:$0xff] %v284
                %v286 = vld [vmem:[%s222 + $0x2e8] sm:$0xff]
                %287 = vst [vmem:[%s223 + $0xf8] sm:$0xff] %v286
              $region45: #{resnet_forward.4} parent=39 // loop_footer
                %s221 = sadd.s32 1, %s217
              $region46: #{resnet_forward.4} parent=39 // loop_footer_branch
                %216 = sbr.rel target = $region42
              $region47: #{resnet_forward.4} parent=39 // loop_exit
                _
            $region40: #{resnet_forward.4} parent=31 // pred_fallthru
              _
          $region32: #{resnet_forward.4} parent=27 // pred_fallthru
            _
          %364 = vnop
        $region28: #{resnet_forward.4} parent=23 // pred_fallthru
          _
        // Predicated region
        $region63: #{resnet_forward.4} parent=23 // pred_check
          %p365 = pneg %p79
        $region64: #{resnet_forward.4} parent=23 // pred_check_branch
          %367 = sbr.rel (%p365) target = $region66
        $region65: #{resnet_forward.4} parent=23 // pred_region
          %s368 = smul.u32 32, %s19
          %p369 = scmp.lt.s32.totalorder %s368, 95
          %s370 = scalar_select %p369, %s368, 95
          %p371 = scmp.lt.s32.totalorder %s18, 0
          %s372 = scalar_select %p371, %s18, 0
          %s373 = sadd.s32 %s372, %s370
          %s374 = smul.addr %s373, 4
          %s375 = scalar_lea.vmem %s1, %s374
          %s376 = smul.u32 32, %s19
        $region66: #{resnet_forward.4} parent=23 // pred_fallthru
          _
      $region24: #{resnet_forward.4} parent=5 // pred_fallthru
        _
      %p377 = scmp.le.s32.totalorder 1, %s10
      %p378 = scmp.lt.s32.totalorder %s10, 7
      %p379 = pnand %p377, %p378
      %p380 = pneg %p379
      // Predicated region
      $region67: #{resnet_forward.4} parent=5 // pred_check
        _
      $region68: #{resnet_forward.4} parent=5 // pred_check_branch
        %382 = sbr.rel (%p379) target = $region70
      $region69: #{resnet_forward.4} parent=5 // pred_region
        %s383 = ssub.s32 %s10, 1
        %s384 = sand.u32 %s44, 1
        %s385 = sand.u32 %s44, 1
        %s386 = smul.addr %s385, 256
        %s387 = scalar_lea.vmem [#allocation3], %s386
        // Predicated region
        $region71: #{resnet_forward.4} parent=69 // pred_check
          %p388 = pneg %p57
        $region72: #{resnet_forward.4} parent=69 // pred_check_branch
          %390 = sbr.rel (%p388) target = $region74
        $region73: #{resnet_forward.4} parent=69 // pred_region
          _
        $region74: #{resnet_forward.4} parent=69 // pred_fallthru
          _
        %s391 = sand.u32 %s44, 1
        %s392 = sand.u32 %s44, 1
        %s393 = smul.addr %s392, 256
        %s394 = scalar_lea.vmem [#allocation3], %s393
        %p395 = pneg %p57
        %p396 = pneg %p54
        %s397 = smul.u32 32, %s22
        %p398 = scmp.lt.s32.totalorder %s397, 95
        %s399 = scalar_select %p398, %s397, 95
        %p400 = scmp.lt.s32.totalorder %s21, 0
        %s401 = scalar_select %p400, %s21, 0
        %s402 = sadd.s32 %s401, %s399
        %s403 = smul.addr %s402, 4
        %s404 = scalar_lea.vmem %s1, %s403
        %p405 = pneg %p85
        %p406 = pneg %p82
        %p407 = scmp.lt.s32.totalorder %s21, 0
        %s408 = scalar_select %p407, %s21, 0
        %s409 = scalar_lea.vmem %s2, %s408
        %p410 = pneg %p111
        %p411 = pneg %p108
        %p412 = scmp.lt.s32.totalorder %s21, 0
        %s413 = scalar_select %p412, %s21, 0
        %s414 = scalar_lea.vmem %s3, %s413
        %p415 = pneg %p137
        %p416 = pneg %p134
        %p417 = pneg %p165
        %p418 = pneg %p162
        %s419 = smul.u32 32, %s20
        %p420 = scmp.lt.s32.totalorder %s419, 63
        %s421 = scalar_select %p420, %s419, 63
        %p422 = scmp.lt.s32.totalorder %s21, 0
        %s423 = scalar_select %p422, %s21, 0
        %s424 = sadd.s32 %s423, %s421
        %s425 = smul.addr %s424, 4
        %s426 = scalar_lea.vmem %s4, %s425
        %s427 = smul.u32 32, %s20
        %s428 = smul.u32 2, %s22
        %s429 = smul.u32 32, %s22
        %p430 = scmp.lt.s32.totalorder %s429, 95
        %s431 = scalar_select %p430, %s429, 95
        %p432 = scmp.lt.s32.totalorder %s21, 0
        %s433 = scalar_select %p432, %s21, 0
        %s434 = sadd.s32 %s433, %s431
        %s435 = smul.addr %s434, 4
        %s436 = scalar_lea.vmem %s1, %s435
        %s437 = smul.u32 32, %s22
        %p438 = scmp.lt.s32.totalorder %s21, 0
        %s439 = scalar_select %p438, %s21, 0
        %s440 = scalar_lea.vmem %s2, %s439
        %p441 = scmp.lt.s32.totalorder %s21, 0
        %s442 = scalar_select %p441, %s21, 0
        %s443 = scalar_lea.vmem %s3, %s442
        %s444 = smul.u32 32, %s20
        %p445 = scmp.lt.s32.totalorder %s444, 63
        %s446 = scalar_select %p445, %s444, 63
        %p447 = scmp.lt.s32.totalorder %s21, 0
        %s448 = scalar_select %p447, %s21, 0
        %s449 = sadd.s32 %s448, %s446
        %s450 = smul.addr %s449, 4
        %s451 = scalar_lea.vmem %s4, %s450
        %s452 = smul.u32 32, %s20
        %p454 = scmp.eq.s32.totalorder %s22, 0
        // Predicated region
        $region75: #{resnet_forward.4} parent=69 // pred_check
          %p455 = pneg %p454
        $region76: #{resnet_forward.4} parent=69 // pred_check_branch
          %457 = sbr.rel (%p455) target = $region78
        $region77: #{resnet_forward.4} parent=69 // pred_region
          %458 = vst [vmem:[#allocation2] sm:$0xff] 0.0
          %459 = vst [vmem:[#allocation2 + $0x8] sm:$0xff] 0.0
          %460 = vst [vmem:[#allocation2 + $0x10] sm:$0xff] 0.0
          %461 = vst [vmem:[#allocation2 + $0x18] sm:$0xff] 0.0
          %462 = vst [vmem:[#allocation2 + $0x20] sm:$0xff] 0.0
          %463 = vst [vmem:[#allocation2 + $0x28] sm:$0xff] 0.0
          %464 = vst [vmem:[#allocation2 + $0x30] sm:$0xff] 0.0
          %465 = vst [vmem:[#allocation2 + $0x38] sm:$0xff] 0.0
          %466 = vst [vmem:[#allocation2 + $0x40] sm:$0xff] 0.0
          %467 = vst [vmem:[#allocation2 + $0x48] sm:$0xff] 0.0
          %468 = vst [vmem:[#allocation2 + $0x50] sm:$0xff] 0.0
          %469 = vst [vmem:[#allocation2 + $0x58] sm:$0xff] 0.0
          %470 = vst [vmem:[#allocation2 + $0x60] sm:$0xff] 0.0
          %471 = vst [vmem:[#allocation2 + $0x68] sm:$0xff] 0.0
          %472 = vst [vmem:[#allocation2 + $0x70] sm:$0xff] 0.0
          %473 = vst [vmem:[#allocation2 + $0x78] sm:$0xff] 0.0
          %474 = vst [vmem:[#allocation2 + $0x80] sm:$0xff] 0.0
          %475 = vst [vmem:[#allocation2 + $0x88] sm:$0xff] 0.0
          %476 = vst [vmem:[#allocation2 + $0x90] sm:$0xff] 0.0
          %477 = vst [vmem:[#allocation2 + $0x98] sm:$0xff] 0.0
          %478 = vst [vmem:[#allocation2 + $0xa0] sm:$0xff] 0.0
          %479 = vst [vmem:[#allocation2 + $0xa8] sm:$0xff] 0.0
          %480 = vst [vmem:[#allocation2 + $0xb0] sm:$0xff] 0.0
          %481 = vst [vmem:[#allocation2 + $0xb8] sm:$0xff] 0.0
          %482 = vst [vmem:[#allocation2 + $0xc0] sm:$0xff] 0.0
          %483 = vst [vmem:[#allocation2 + $0xc8] sm:$0xff] 0.0
          %484 = vst [vmem:[#allocation2 + $0xd0] sm:$0xff] 0.0
          %485 = vst [vmem:[#allocation2 + $0xd8] sm:$0xff] 0.0
          %486 = vst [vmem:[#allocation2 + $0xe0] sm:$0xff] 0.0
          %487 = vst [vmem:[#allocation2 + $0xe8] sm:$0xff] 0.0
          %488 = vst [vmem:[#allocation2 + $0xf0] sm:$0xff] 0.0
          %489 = vst [vmem:[#allocation2 + $0xf8] sm:$0xff] 0.0
        $region78: #{resnet_forward.4} parent=69 // pred_fallthru
          _
        %v490 = vld [vmem:[#allocation2] sm:$0xff]
        %v491 = vld [vmem:[#allocation2 + $0x8] sm:$0xff]
        %v492 = vld [vmem:[#allocation2 + $0x10] sm:$0xff]
        %v493 = vld [vmem:[#allocation2 + $0x18] sm:$0xff]
        %v494 = vld [vmem:[#allocation2 + $0x20] sm:$0xff]
        %v495 = vld [vmem:[#allocation2 + $0x28] sm:$0xff]
        %v496 = vld [vmem:[#allocation2 + $0x30] sm:$0xff]
        %v497 = vld [vmem:[#allocation2 + $0x38] sm:$0xff]
        %v498 = vld [vmem:[#allocation2 + $0x40] sm:$0xff]
        %v499 = vld [vmem:[#allocation2 + $0x48] sm:$0xff]
        %v500 = vld [vmem:[#allocation2 + $0x50] sm:$0xff]
        %v501 = vld [vmem:[#allocation2 + $0x58] sm:$0xff]
        %v502 = vld [vmem:[#allocation2 + $0x60] sm:$0xff]
        %v503 = vld [vmem:[#allocation2 + $0x68] sm:$0xff]
        %v504 = vld [vmem:[#allocation2 + $0x70] sm:$0xff]
        %v505 = vld [vmem:[#allocation2 + $0x78] sm:$0xff]
        %v506 = vld [vmem:[#allocation2 + $0x80] sm:$0xff]
        %v507 = vld [vmem:[#allocation2 + $0x88] sm:$0xff]
        %v508 = vld [vmem:[#allocation2 + $0x90] sm:$0xff]
        %v509 = vld [vmem:[#allocation2 + $0x98] sm:$0xff]
        %v510 = vld [vmem:[#allocation2 + $0xa0] sm:$0xff]
        %v511 = vld [vmem:[#allocation2 + $0xa8] sm:$0xff]
        %v512 = vld [vmem:[#allocation2 + $0xb0] sm:$0xff]
        %v513 = vld [vmem:[#allocation2 + $0xb8] sm:$0xff]
        %v514 = vld [vmem:[#allocation2 + $0xc0] sm:$0xff]
        %v515 = vld [vmem:[#allocation2 + $0xc8] sm:$0xff]
        %v516 = vld [vmem:[#allocation2 + $0xd0] sm:$0xff]
        %v517 = vld [vmem:[#allocation2 + $0xd8] sm:$0xff]
        %v518 = vld [vmem:[#allocation2 + $0xe0] sm:$0xff]
        %v519 = vld [vmem:[#allocation2 + $0xe8] sm:$0xff]
        %v520 = vld [vmem:[#allocation2 + $0xf0] sm:$0xff]
        %v521 = vld [vmem:[#allocation2 + $0xf8] sm:$0xff]
        %v522 = vld [vmem:[%s387] sm:$0xff]
        %v523 = vld [vmem:[%s387 + $0x8] sm:$0xff]
        %v524 = vld [vmem:[%s387 + $0x10] sm:$0xff]
        %v525 = vld [vmem:[%s387 + $0x18] sm:$0xff]
        %v526 = vld [vmem:[%s387 + $0x20] sm:$0xff]
        %v527 = vld [vmem:[%s387 + $0x28] sm:$0xff]
        %v528 = vld [vmem:[%s387 + $0x30] sm:$0xff]
        %v529 = vld [vmem:[%s387 + $0x38] sm:$0xff]
        %v530 = vld [vmem:[%s387 + $0x40] sm:$0xff]
        %v531 = vld [vmem:[%s387 + $0x48] sm:$0xff]
        %v532 = vld [vmem:[%s387 + $0x50] sm:$0xff]
        %v533 = vld [vmem:[%s387 + $0x58] sm:$0xff]
        %v534 = vld [vmem:[%s387 + $0x60] sm:$0xff]
        %v535 = vld [vmem:[%s387 + $0x68] sm:$0xff]
        %v536 = vld [vmem:[%s387 + $0x70] sm:$0xff]
        %v537 = vld [vmem:[%s387 + $0x78] sm:$0xff]
        %v538 = vld [vmem:[%s387 + $0x80] sm:$0xff]
        %v539 = vld [vmem:[%s387 + $0x88] sm:$0xff]
        %v540 = vld [vmem:[%s387 + $0x90] sm:$0xff]
        %v541 = vld [vmem:[%s387 + $0x98] sm:$0xff]
        %v542 = vld [vmem:[%s387 + $0xa0] sm:$0xff]
        %v543 = vld [vmem:[%s387 + $0xa8] sm:$0xff]
        %v544 = vld [vmem:[%s387 + $0xb0] sm:$0xff]
        %v545 = vld [vmem:[%s387 + $0xb8] sm:$0xff]
        %v546 = vld [vmem:[%s387 + $0xc0] sm:$0xff]
        %v547 = vld [vmem:[%s387 + $0xc8] sm:$0xff]
        %v548 = vld [vmem:[%s387 + $0xd0] sm:$0xff]
        %v549 = vld [vmem:[%s387 + $0xd8] sm:$0xff]
        %v550 = vld [vmem:[%s387 + $0xe0] sm:$0xff]
        %v551 = vld [vmem:[%s387 + $0xe8] sm:$0xff]
        %v552 = vld [vmem:[%s387 + $0xf0] sm:$0xff]
        %v553 = vld [vmem:[%s387 + $0xf8] sm:$0xff]
        %v554 = vld [vmem:[%s436] sm:$0xf]
        %v555 = vld [vmem:[%s436 + $0x4] sm:$0xf]
        %v556 = vld [vmem:[%s436 + $0x8] sm:$0xf]
        %v557 = vld [vmem:[%s436 + $0xc] sm:$0xf]
        %v558 = vld [vmem:[%s436 + $0x10] sm:$0xf]
        %v559 = vld [vmem:[%s436 + $0x14] sm:$0xf]
        %v560 = vld [vmem:[%s436 + $0x18] sm:$0xf]
        %v561 = vld [vmem:[%s436 + $0x1c] sm:$0xf]
        %v562 = vld [vmem:[%s436 + $0x20] sm:$0xf]
        %v563 = vld [vmem:[%s436 + $0x24] sm:$0xf]
        %v564 = vld [vmem:[%s436 + $0x28] sm:$0xf]
        %v565 = vld [vmem:[%s436 + $0x2c] sm:$0xf]
        %v566 = vld [vmem:[%s436 + $0x30] sm:$0xf]
        %v567 = vld [vmem:[%s436 + $0x34] sm:$0xf]
        %v568 = vld [vmem:[%s436 + $0x38] sm:$0xf]
        %v569 = vld [vmem:[%s436 + $0x3c] sm:$0xf]
        %v570 = vld [vmem:[%s436 + $0x40] sm:$0xf]
        %v571 = vld [vmem:[%s436 + $0x44] sm:$0xf]
        %v572 = vld [vmem:[%s436 + $0x48] sm:$0xf]
        %v573 = vld [vmem:[%s436 + $0x4c] sm:$0xf]
        %v574 = vld [vmem:[%s436 + $0x50] sm:$0xf]
        %v575 = vld [vmem:[%s436 + $0x54] sm:$0xf]
        %v576 = vld [vmem:[%s436 + $0x58] sm:$0xf]
        %v577 = vld [vmem:[%s436 + $0x5c] sm:$0xf]
        %v578 = vld [vmem:[%s436 + $0x60] sm:$0xf]
        %v579 = vld [vmem:[%s436 + $0x64] sm:$0xf]
        %v580 = vld [vmem:[%s436 + $0x68] sm:$0xf]
        %v581 = vld [vmem:[%s436 + $0x6c] sm:$0xf]
        %v582 = vld [vmem:[%s436 + $0x70] sm:$0xf]
        %v583 = vld [vmem:[%s436 + $0x74] sm:$0xf]
        %v584 = vld [vmem:[%s436 + $0x78] sm:$0xf]
        %v585 = vld [vmem:[%s436 + $0x7c] sm:$0xf]
        %v618 = vunpack.c.l.b16 %v522
        %v619 = vunpack.c.h.b16 %v522
        %v620 = vunpack.c.l.b16 %v523
        %v621 = vunpack.c.h.b16 %v523
        %v622 = vunpack.c.l.b16 %v524
        %v623 = vunpack.c.h.b16 %v524
        %v624 = vunpack.c.l.b16 %v525
        %v625 = vunpack.c.h.b16 %v525
        %v626 = vunpack.c.l.b16 %v526
        %v627 = vunpack.c.h.b16 %v526
        %v628 = vunpack.c.l.b16 %v527
        %v629 = vunpack.c.h.b16 %v527
        %v630 = vunpack.c.l.b16 %v528
        %v631 = vunpack.c.h.b16 %v528
        %v632 = vunpack.c.l.b16 %v529
        %v633 = vunpack.c.h.b16 %v529
        %v634 = vunpack.c.l.b16 %v530
        %v635 = vunpack.c.h.b16 %v530
        %v636 = vunpack.c.l.b16 %v531
        %v637 = vunpack.c.h.b16 %v531
        %v638 = vunpack.c.l.b16 %v532
        %v639 = vunpack.c.h.b16 %v532
        %v640 = vunpack.c.l.b16 %v533
        %v641 = vunpack.c.h.b16 %v533
        %v642 = vunpack.c.l.b16 %v534
        %v643 = vunpack.c.h.b16 %v534
        %v644 = vunpack.c.l.b16 %v535
        %v645 = vunpack.c.h.b16 %v535
        %v646 = vunpack.c.l.b16 %v536
        %v647 = vunpack.c.h.b16 %v536
        %v648 = vunpack.c.l.b16 %v537
        %v649 = vunpack.c.h.b16 %v537
        %v650 = vunpack.c.l.b16 %v538
        %v651 = vunpack.c.h.b16 %v538
        %v652 = vunpack.c.l.b16 %v539
        %v653 = vunpack.c.h.b16 %v539
        %v654 = vunpack.c.l.b16 %v540
        %v655 = vunpack.c.h.b16 %v540
        %v656 = vunpack.c.l.b16 %v541
        %v657 = vunpack.c.h.b16 %v541
        %v658 = vunpack.c.l.b16 %v542
        %v659 = vunpack.c.h.b16 %v542
        %v660 = vunpack.c.l.b16 %v543
        %v661 = vunpack.c.h.b16 %v543
        %v662 = vunpack.c.l.b16 %v544
        %v663 = vunpack.c.h.b16 %v544
        %v664 = vunpack.c.l.b16 %v545
        %v665 = vunpack.c.h.b16 %v545
        %v666 = vunpack.c.l.b16 %v546
        %v667 = vunpack.c.h.b16 %v546
        %v668 = vunpack.c.l.b16 %v547
        %v669 = vunpack.c.h.b16 %v547
        %v670 = vunpack.c.l.b16 %v548
        %v671 = vunpack.c.h.b16 %v548
        %v672 = vunpack.c.l.b16 %v549
        %v673 = vunpack.c.h.b16 %v549
        %v674 = vunpack.c.l.b16 %v550
        %v675 = vunpack.c.h.b16 %v550
        %v676 = vunpack.c.l.b16 %v551
        %v677 = vunpack.c.h.b16 %v551
        %v678 = vunpack.c.l.b16 %v552
        %v679 = vunpack.c.h.b16 %v552
        %v680 = vunpack.c.l.b16 %v553
        %v681 = vunpack.c.h.b16 %v553
        %v682 = vpack.c.b16 %v620, %v618
        %v683 = vpack.c.b16 %v621, %v619
        %v684 = vpack.c.b16 %v624, %v622
        %v685 = vpack.c.b16 %v625, %v623
        %v686 = vpack.c.b16 %v628, %v626
        %v687 = vpack.c.b16 %v629, %v627
        %v688 = vpack.c.b16 %v632, %v630
        %v689 = vpack.c.b16 %v633, %v631
        %v690 = vpack.c.b16 %v636, %v634
        %v691 = vpack.c.b16 %v637, %v635
        %v692 = vpack.c.b16 %v640, %v638
        %v693 = vpack.c.b16 %v641, %v639
        %v694 = vpack.c.b16 %v644, %v642
        %v695 = vpack.c.b16 %v645, %v643
        %v696 = vpack.c.b16 %v648, %v646
        %v697 = vpack.c.b16 %v649, %v647
        %v698 = vpack.c.b16 %v652, %v650
        %v699 = vpack.c.b16 %v653, %v651
        %v700 = vpack.c.b16 %v656, %v654
        %v701 = vpack.c.b16 %v657, %v655
        %v702 = vpack.c.b16 %v660, %v658
        %v703 = vpack.c.b16 %v661, %v659
        %v704 = vpack.c.b16 %v664, %v662
        %v705 = vpack.c.b16 %v665, %v663
        %v706 = vpack.c.b16 %v668, %v666
        %v707 = vpack.c.b16 %v669, %v667
        %v708 = vpack.c.b16 %v672, %v670
        %v709 = vpack.c.b16 %v673, %v671
        %v710 = vpack.c.b16 %v676, %v674
        %v711 = vpack.c.b16 %v677, %v675
        %v712 = vpack.c.b16 %v680, %v678
        %v713 = vpack.c.b16 %v681, %v679
        %v778 = vunpack.c.l.b16 %v554
        %v779 = vunpack.c.l.b16 %v555
        %v780 = vunpack.c.l.b16 %v556
        %v781 = vunpack.c.l.b16 %v557
        %v782 = vunpack.c.l.b16 %v558
        %v783 = vunpack.c.l.b16 %v559
        %v784 = vunpack.c.l.b16 %v560
        %v785 = vunpack.c.l.b16 %v561
        %v786 = vunpack.c.l.b16 %v562
        %v787 = vunpack.c.l.b16 %v563
        %v788 = vunpack.c.l.b16 %v564
        %v789 = vunpack.c.l.b16 %v565
        %v790 = vunpack.c.l.b16 %v566
        %v791 = vunpack.c.l.b16 %v567
        %v792 = vunpack.c.l.b16 %v568
        %v793 = vunpack.c.l.b16 %v569
        %v794 = vunpack.c.l.b16 %v570
        %v795 = vunpack.c.l.b16 %v571
        %v796 = vunpack.c.l.b16 %v572
        %v797 = vunpack.c.l.b16 %v573
        %v798 = vunpack.c.l.b16 %v574
        %v799 = vunpack.c.l.b16 %v575
        %v800 = vunpack.c.l.b16 %v576
        %v801 = vunpack.c.l.b16 %v577
        %v802 = vunpack.c.l.b16 %v578
        %v803 = vunpack.c.l.b16 %v579
        %v804 = vunpack.c.l.b16 %v580
        %v805 = vunpack.c.l.b16 %v581
        %v806 = vunpack.c.l.b16 %v582
        %v807 = vunpack.c.l.b16 %v583
        %v808 = vunpack.c.l.b16 %v584
        %v809 = vunpack.c.l.b16 %v585
        %v810 = vpack.c.b16 %v779, %v778
        %v811 = vpack.c.b16 %v781, %v780
        %v812 = vpack.c.b16 %v783, %v782
        %v813 = vpack.c.b16 %v785, %v784
        %v814 = vpack.c.b16 %v787, %v786
        %v815 = vpack.c.b16 %v789, %v788
        %v816 = vpack.c.b16 %v791, %v790
        %v817 = vpack.c.b16 %v793, %v792
        %v818 = vpack.c.b16 %v795, %v794
        %v819 = vpack.c.b16 %v797, %v796
        %v820 = vpack.c.b16 %v799, %v798
        %v821 = vpack.c.b16 %v801, %v800
        %v822 = vpack.c.b16 %v803, %v802
        %v823 = vpack.c.b16 %v805, %v804
        %v824 = vpack.c.b16 %v807, %v806
        %v825 = vpack.c.b16 %v809, %v808
        %842 = vmatprep.subr.bf16.mxu0 0
        %843 = vmatpush1.bf16.msra.mxu0 %v810
        %844 = vmatprep.subr.bf16.mxu0 0
        %845 = vmatpush1.bf16.msra.mxu0 %v811
        %846 = vmatprep.subr.bf16.mxu0 0
        %847 = vmatpush1.bf16.msra.mxu0 %v812
        %848 = vmatprep.subr.bf16.mxu0 0
        %849 = vmatpush1.bf16.msra.mxu0 %v813
        %850 = vmatprep.subr.bf16.mxu0 0
        %851 = vmatpush1.bf16.msra.mxu0 %v814
        %852 = vmatprep.subr.bf16.mxu0 0
        %853 = vmatpush1.bf16.msra.mxu0 %v815
        %854 = vmatprep.subr.bf16.mxu0 0
        %855 = vmatpush1.bf16.msra.mxu0 %v816
        %856 = vmatprep.subr.bf16.mxu0 0
        %857 = vmatpush1.bf16.msra.mxu0 %v817
        %858 = vmatprep.subr.bf16.mxu0 0
        %859 = vmatpush1.bf16.msra.mxu0 %v818
        %860 = vmatprep.subr.bf16.mxu0 0
        %861 = vmatpush1.bf16.msra.mxu0 %v819
        %862 = vmatprep.subr.bf16.mxu0 0
        %863 = vmatpush1.bf16.msra.mxu0 %v820
        %864 = vmatprep.subr.bf16.mxu0 0
        %865 = vmatpush1.bf16.msra.mxu0 %v821
        %866 = vmatprep.subr.bf16.mxu0 0
        %867 = vmatpush1.bf16.msra.mxu0 %v822
        %868 = vmatprep.subr.bf16.mxu0 0
        %869 = vmatpush1.bf16.msra.mxu0 %v823
        %870 = vmatprep.subr.bf16.mxu0 0
        %871 = vmatpush1.bf16.msra.mxu0 %v824
        %872 = vmatprep.subr.bf16.mxu0 0
        %873 = vmatpush1.bf16.msra.mxu0 %v825
        %874 = vmatprep.mubr.bf16.mxu0 %v683
        %875 = vmatmul.mubr.bf16.gmra.mrb[0].mxu0 %v682
        %v876 = vpop.f32.mrb[0].mxu0
        %v877 = vadd.f32 0.0, %v876
        %v878 = vpop.f32.mrb[0].mxu0
        %v879 = vpop.f32.mrb[0].mxu0
        %v880 = vadd.f32 0.0, %v879
        %v881 = vpop.f32.mrb[0].mxu0
        %882 = vmatprep.mubr.bf16.mxu0 %v685
        %883 = vmatmul.mubr.bf16.gmra.mrb[0].mxu0 %v684
        %v884 = vpop.f32.mrb[0].mxu0
        %v885 = vadd.f32 0.0, %v884
        %v886 = vpop.f32.mrb[0].mxu0
        %v887 = vpop.f32.mrb[0].mxu0
        %v888 = vadd.f32 0.0, %v887
        %v889 = vpop.f32.mrb[0].mxu0
        %890 = vmatprep.mubr.bf16.mxu0 %v687
        %891 = vmatmul.mubr.bf16.gmra.mrb[0].mxu0 %v686
        %v892 = vpop.f32.mrb[0].mxu0
        %v893 = vadd.f32 0.0, %v892
        %v894 = vpop.f32.mrb[0].mxu0
        %v895 = vpop.f32.mrb[0].mxu0
        %v896 = vadd.f32 0.0, %v895
        %v897 = vpop.f32.mrb[0].mxu0
        %898 = vmatprep.mubr.bf16.mxu0 %v689
        %899 = vmatmul.mubr.bf16.gmra.mrb[0].mxu0 %v688
        %v900 = vpop.f32.mrb[0].mxu0
        %v901 = vadd.f32 0.0, %v900
        %v902 = vpop.f32.mrb[0].mxu0
        %v903 = vpop.f32.mrb[0].mxu0
        %v904 = vadd.f32 0.0, %v903
        %v905 = vpop.f32.mrb[0].mxu0
        %906 = vmatprep.mubr.bf16.mxu0 %v691
        %907 = vmatmul.mubr.bf16.gmra.mrb[0].mxu0 %v690
        %v908 = vpop.f32.mrb[0].mxu0
        %v909 = vadd.f32 0.0, %v908
        %v910 = vpop.f32.mrb[0].mxu0
        %v911 = vpop.f32.mrb[0].mxu0
        %v912 = vadd.f32 0.0, %v911
        %v913 = vpop.f32.mrb[0].mxu0
        %914 = vmatprep.mubr.bf16.mxu0 %v693
        %915 = vmatmul.mubr.bf16.gmra.mrb[0].mxu0 %v692
        %v916 = vpop.f32.mrb[0].mxu0
        %v917 = vadd.f32 0.0, %v916
        %v918 = vpop.f32.mrb[0].mxu0
        %v919 = vpop.f32.mrb[0].mxu0
        %v920 = vadd.f32 0.0, %v919
        %v921 = vpop.f32.mrb[0].mxu0
        %922 = vmatprep.mubr.bf16.mxu0 %v695
        %923 = vmatmul.mubr.bf16.gmra.mrb[0].mxu0 %v694
        %v924 = vpop.f32.mrb[0].mxu0
        %v925 = vadd.f32 0.0, %v924
        %v926 = vpop.f32.mrb[0].mxu0
        %v927 = vpop.f32.mrb[0].mxu0
        %v928 = vadd.f32 0.0, %v927
        %v929 = vpop.f32.mrb[0].mxu0
        %930 = vmatprep.mubr.bf16.mxu0 %v697
        %931 = vmatmul.mubr.bf16.gmra.mrb[0].mxu0 %v696
        %v932 = vpop.f32.mrb[0].mxu0
        %v933 = vadd.f32 0.0, %v932
        %v934 = vpop.f32.mrb[0].mxu0
        %v935 = vpop.f32.mrb[0].mxu0
        %v936 = vadd.f32 0.0, %v935
        %v937 = vpop.f32.mrb[0].mxu0
        %938 = vmatprep.mubr.bf16.mxu0 %v699
        %939 = vmatmul.mubr.bf16.gmra.mrb[0].mxu0 %v698
        %v940 = vpop.f32.mrb[0].mxu0
        %v941 = vadd.f32 0.0, %v940
        %v942 = vpop.f32.mrb[0].mxu0
        %v943 = vpop.f32.mrb[0].mxu0
        %v944 = vadd.f32 0.0, %v943
        %v945 = vpop.f32.mrb[0].mxu0
        %946 = vmatprep.mubr.bf16.mxu0 %v701
        %947 = vmatmul.mubr.bf16.gmra.mrb[0].mxu0 %v700
        %v948 = vpop.f32.mrb[0].mxu0
        %v949 = vadd.f32 0.0, %v948
        %v950 = vpop.f32.mrb[0].mxu0
        %v951 = vpop.f32.mrb[0].mxu0
        %v952 = vadd.f32 0.0, %v951
        %v953 = vpop.f32.mrb[0].mxu0
        %954 = vmatprep.mubr.bf16.mxu0 %v703
        %955 = vmatmul.mubr.bf16.gmra.mrb[0].mxu0 %v702
        %v956 = vpop.f32.mrb[0].mxu0
        %v957 = vadd.f32 0.0, %v956
        %v958 = vpop.f32.mrb[0].mxu0
        %v959 = vpop.f32.mrb[0].mxu0
        %v960 = vadd.f32 0.0, %v959
        %v961 = vpop.f32.mrb[0].mxu0
        %962 = vmatprep.mubr.bf16.mxu0 %v705
        %963 = vmatmul.mubr.bf16.gmra.mrb[0].mxu0 %v704
        %v964 = vpop.f32.mrb[0].mxu0
        %v965 = vadd.f32 0.0, %v964
        %v966 = vpop.f32.mrb[0].mxu0
        %v967 = vpop.f32.mrb[0].mxu0
        %v968 = vadd.f32 0.0, %v967
        %v969 = vpop.f32.mrb[0].mxu0
        %970 = vmatprep.mubr.bf16.mxu0 %v707
        %971 = vmatmul.mubr.bf16.gmra.mrb[0].mxu0 %v706
        %v972 = vpop.f32.mrb[0].mxu0
        %v973 = vadd.f32 0.0, %v972
        %v974 = vpop.f32.mrb[0].mxu0
        %v975 = vpop.f32.mrb[0].mxu0
        %v976 = vadd.f32 0.0, %v975
        %v977 = vpop.f32.mrb[0].mxu0
        %978 = vmatprep.mubr.bf16.mxu0 %v709
        %979 = vmatmul.mubr.bf16.gmra.mrb[0].mxu0 %v708
        %v980 = vpop.f32.mrb[0].mxu0
        %v981 = vadd.f32 0.0, %v980
        %v982 = vpop.f32.mrb[0].mxu0
        %v983 = vpop.f32.mrb[0].mxu0
        %v984 = vadd.f32 0.0, %v983
        %v985 = vpop.f32.mrb[0].mxu0
        %986 = vmatprep.mubr.bf16.mxu0 %v711
        %987 = vmatmul.mubr.bf16.gmra.mrb[0].mxu0 %v710
        %v988 = vpop.f32.mrb[0].mxu0
        %v989 = vadd.f32 0.0, %v988
        %v990 = vpop.f32.mrb[0].mxu0
        %v991 = vpop.f32.mrb[0].mxu0
        %v992 = vadd.f32 0.0, %v991
        %v993 = vpop.f32.mrb[0].mxu0
        %994 = vmatprep.mubr.bf16.mxu0 %v713
        %995 = vmatmul.mubr.bf16.gmra.mrb[0].mxu0 %v712
        %v996 = vpop.f32.mrb[0].mxu0
        %v997 = vadd.f32 0.0, %v996
        %v998 = vpop.f32.mrb[0].mxu0
        %v999 = vpop.f32.mrb[0].mxu0
        %v1000 = vadd.f32 0.0, %v999
        %v1001 = vpop.f32.mrb[0].mxu0
        %1002 = vdwg.mxu0
        %v1003 = vadd.f32 %v490, %v877
        %v1004 = vadd.f32 %v491, %v880
        %v1005 = vadd.f32 %v492, %v885
        %v1006 = vadd.f32 %v493, %v888
        %v1007 = vadd.f32 %v494, %v893
        %v1008 = vadd.f32 %v495, %v896
        %v1009 = vadd.f32 %v496, %v901
        %v1010 = vadd.f32 %v497, %v904
        %v1011 = vadd.f32 %v498, %v909
        %v1012 = vadd.f32 %v499, %v912
        %v1013 = vadd.f32 %v500, %v917
        %v1014 = vadd.f32 %v501, %v920
        %v1015 = vadd.f32 %v502, %v925
        %v1016 = vadd.f32 %v503, %v928
        %v1017 = vadd.f32 %v504, %v933
        %v1018 = vadd.f32 %v505, %v936
        %v1019 = vadd.f32 %v506, %v941
        %v1020 = vadd.f32 %v507, %v944
        %v1021 = vadd.f32 %v508, %v949
        %v1022 = vadd.f32 %v509, %v952
        %v1023 = vadd.f32 %v510, %v957
        %v1024 = vadd.f32 %v511, %v960
        %v1025 = vadd.f32 %v512, %v965
        %v1026 = vadd.f32 %v513, %v968
        %v1027 = vadd.f32 %v514, %v973
        %v1028 = vadd.f32 %v515, %v976
        %v1029 = vadd.f32 %v516, %v981
        %v1030 = vadd.f32 %v517, %v984
        %v1031 = vadd.f32 %v518, %v989
        %v1032 = vadd.f32 %v519, %v992
        %v1033 = vadd.f32 %v520, %v997
        %v1034 = vadd.f32 %v521, %v1000
        %1035 = vst [vmem:[#allocation2] sm:$0xff] %v1003
        %1036 = vst [vmem:[#allocation2 + $0x8] sm:$0xff] %v1004
        %1037 = vst [vmem:[#allocation2 + $0x10] sm:$0xff] %v1005
        %1038 = vst [vmem:[#allocation2 + $0x18] sm:$0xff] %v1006
        %1039 = vst [vmem:[#allocation2 + $0x20] sm:$0xff] %v1007
        %1040 = vst [vmem:[#allocation2 + $0x28] sm:$0xff] %v1008
        %1041 = vst [vmem:[#allocation2 + $0x30] sm:$0xff] %v1009
        %1042 = vst [vmem:[#allocation2 + $0x38] sm:$0xff] %v1010
        %1043 = vst [vmem:[#allocation2 + $0x40] sm:$0xff] %v1011
        %1044 = vst [vmem:[#allocation2 + $0x48] sm:$0xff] %v1012
        %1045 = vst [vmem:[#allocation2 + $0x50] sm:$0xff] %v1013
        %1046 = vst [vmem:[#allocation2 + $0x58] sm:$0xff] %v1014
        %1047 = vst [vmem:[#allocation2 + $0x60] sm:$0xff] %v1015
        %1048 = vst [vmem:[#allocation2 + $0x68] sm:$0xff] %v1016
        %1049 = vst [vmem:[#allocation2 + $0x70] sm:$0xff] %v1017
        %1050 = vst [vmem:[#allocation2 + $0x78] sm:$0xff] %v1018
        %1051 = vst [vmem:[#allocation2 + $0x80] sm:$0xff] %v1019
        %1052 = vst [vmem:[#allocation2 + $0x88] sm:$0xff] %v1020
        %1053 = vst [vmem:[#allocation2 + $0x90] sm:$0xff] %v1021
        %1054 = vst [vmem:[#allocation2 + $0x98] sm:$0xff] %v1022
        %1055 = vst [vmem:[#allocation2 + $0xa0] sm:$0xff] %v1023
        %1056 = vst [vmem:[#allocation2 + $0xa8] sm:$0xff] %v1024
        %1057 = vst [vmem:[#allocation2 + $0xb0] sm:$0xff] %v1025
        %1058 = vst [vmem:[#allocation2 + $0xb8] sm:$0xff] %v1026
        %1059 = vst [vmem:[#allocation2 + $0xc0] sm:$0xff] %v1027
        %1060 = vst [vmem:[#allocation2 + $0xc8] sm:$0xff] %v1028
        %1061 = vst [vmem:[#allocation2 + $0xd0] sm:$0xff] %v1029
        %1062 = vst [vmem:[#allocation2 + $0xd8] sm:$0xff] %v1030
        %1063 = vst [vmem:[#allocation2 + $0xe0] sm:$0xff] %v1031
        %1064 = vst [vmem:[#allocation2 + $0xe8] sm:$0xff] %v1032
        %1065 = vst [vmem:[#allocation2 + $0xf0] sm:$0xff] %v1033
        %1066 = vst [vmem:[#allocation2 + $0xf8] sm:$0xff] %v1034
        %p1067 = scmp.eq.s32.totalorder %s22, 2
        // Predicated region
        $region79: #{resnet_forward.4} parent=69 // pred_check
          %p1068 = pneg %p1067
        $region80: #{resnet_forward.4} parent=69 // pred_check_branch
          %1070 = sbr.rel (%p1068) target = $region82
        $region81: #{resnet_forward.4} parent=69 // pred_region
          %v1071 = vld [vmem:[#allocation2] sm:$0xff]
          %v1072 = vld [vmem:[#allocation2 + $0x8] sm:$0xff]
          %v1073 = vld [vmem:[#allocation2 + $0x10] sm:$0xff]
          %v1074 = vld [vmem:[#allocation2 + $0x18] sm:$0xff]
          %v1075 = vld [vmem:[#allocation2 + $0x20] sm:$0xff]
          %v1076 = vld [vmem:[#allocation2 + $0x28] sm:$0xff]
          %v1077 = vld [vmem:[#allocation2 + $0x30] sm:$0xff]
          %v1078 = vld [vmem:[#allocation2 + $0x38] sm:$0xff]
          %v1079 = vld [vmem:[#allocation2 + $0x40] sm:$0xff]
          %v1080 = vld [vmem:[#allocation2 + $0x48] sm:$0xff]
          %v1081 = vld [vmem:[#allocation2 + $0x50] sm:$0xff]
          %v1082 = vld [vmem:[#allocation2 + $0x58] sm:$0xff]
          %v1083 = vld [vmem:[#allocation2 + $0x60] sm:$0xff]
          %v1084 = vld [vmem:[#allocation2 + $0x68] sm:$0xff]
          %v1085 = vld [vmem:[#allocation2 + $0x70] sm:$0xff]
          %v1086 = vld [vmem:[#allocation2 + $0x78] sm:$0xff]
          %v1087 = vld [vmem:[#allocation2 + $0x80] sm:$0xff]
          %v1088 = vld [vmem:[#allocation2 + $0x88] sm:$0xff]
          %v1089 = vld [vmem:[#allocation2 + $0x90] sm:$0xff]
          %v1090 = vld [vmem:[#allocation2 + $0x98] sm:$0xff]
          %v1091 = vld [vmem:[#allocation2 + $0xa0] sm:$0xff]
          %v1092 = vld [vmem:[#allocation2 + $0xa8] sm:$0xff]
          %v1093 = vld [vmem:[#allocation2 + $0xb0] sm:$0xff]
          %v1094 = vld [vmem:[#allocation2 + $0xb8] sm:$0xff]
          %v1095 = vld [vmem:[#allocation2 + $0xc0] sm:$0xff]
          %v1096 = vld [vmem:[#allocation2 + $0xc8] sm:$0xff]
          %v1097 = vld [vmem:[#allocation2 + $0xd0] sm:$0xff]
          %v1098 = vld [vmem:[#allocation2 + $0xd8] sm:$0xff]
          %v1099 = vld [vmem:[#allocation2 + $0xe0] sm:$0xff]
          %v1100 = vld [vmem:[#allocation2 + $0xe8] sm:$0xff]
          %v1101 = vld [vmem:[#allocation2 + $0xf0] sm:$0xff]
          %v1102 = vld [vmem:[#allocation2 + $0xf8] sm:$0xff]
          %v1103 = vld [vmem:[%s440] sm:$0x1]
          %v1105 = vlaneseq
          %v1106 = vshrl.u32 %v1105, 7
          %v1107 = vsub.s32 0, %v1106
          %v1108 = vrot.slane %v1103, %v1107
          %v1110 = vmul.f32 %v1071, %v1108
          %v1111 = vmul.f32 %v1072, %v1108
          %v1112 = vmul.f32 %v1073, %v1108
          %v1113 = vmul.f32 %v1074, %v1108
          %v1114 = vmul.f32 %v1075, %v1108
          %v1115 = vmul.f32 %v1076, %v1108
          %v1116 = vmul.f32 %v1077, %v1108
          %v1117 = vmul.f32 %v1078, %v1108
          %v1118 = vmul.f32 %v1079, %v1108
          %v1119 = vmul.f32 %v1080, %v1108
          %v1120 = vmul.f32 %v1081, %v1108
          %v1121 = vmul.f32 %v1082, %v1108
          %v1122 = vmul.f32 %v1083, %v1108
          %v1123 = vmul.f32 %v1084, %v1108
          %v1124 = vmul.f32 %v1085, %v1108
          %v1125 = vmul.f32 %v1086, %v1108
          %v1126 = vmul.f32 %v1087, %v1108
          %v1127 = vmul.f32 %v1088, %v1108
          %v1128 = vmul.f32 %v1089, %v1108
          %v1129 = vmul.f32 %v1090, %v1108
          %v1130 = vmul.f32 %v1091, %v1108
          %v1131 = vmul.f32 %v1092, %v1108
          %v1132 = vmul.f32 %v1093, %v1108
          %v1133 = vmul.f32 %v1094, %v1108
          %v1134 = vmul.f32 %v1095, %v1108
          %v1135 = vmul.f32 %v1096, %v1108
          %v1136 = vmul.f32 %v1097, %v1108
          %v1137 = vmul.f32 %v1098, %v1108
          %v1138 = vmul.f32 %v1099, %v1108
          %v1139 = vmul.f32 %v1100, %v1108
          %v1140 = vmul.f32 %v1101, %v1108
          %v1141 = vmul.f32 %v1102, %v1108
          %v1142 = vld [vmem:[%s443] sm:$0x1]
          %v1144 = vlaneseq
          %v1145 = vshrl.u32 %v1144, 7
          %v1146 = vsub.s32 0, %v1145
          %v1147 = vrot.slane %v1142, %v1146
          %v1149 = vadd.f32 %v1110, %v1147
          %v1150 = vadd.f32 %v1111, %v1147
          %v1151 = vadd.f32 %v1112, %v1147
          %v1152 = vadd.f32 %v1113, %v1147
          %v1153 = vadd.f32 %v1114, %v1147
          %v1154 = vadd.f32 %v1115, %v1147
          %v1155 = vadd.f32 %v1116, %v1147
          %v1156 = vadd.f32 %v1117, %v1147
          %v1157 = vadd.f32 %v1118, %v1147
          %v1158 = vadd.f32 %v1119, %v1147
          %v1159 = vadd.f32 %v1120, %v1147
          %v1160 = vadd.f32 %v1121, %v1147
          %v1161 = vadd.f32 %v1122, %v1147
          %v1162 = vadd.f32 %v1123, %v1147
          %v1163 = vadd.f32 %v1124, %v1147
          %v1164 = vadd.f32 %v1125, %v1147
          %v1165 = vadd.f32 %v1126, %v1147
          %v1166 = vadd.f32 %v1127, %v1147
          %v1167 = vadd.f32 %v1128, %v1147
          %v1168 = vadd.f32 %v1129, %v1147
          %v1169 = vadd.f32 %v1130, %v1147
          %v1170 = vadd.f32 %v1131, %v1147
          %v1171 = vadd.f32 %v1132, %v1147
          %v1172 = vadd.f32 %v1133, %v1147
          %v1173 = vadd.f32 %v1134, %v1147
          %v1174 = vadd.f32 %v1135, %v1147
          %v1175 = vadd.f32 %v1136, %v1147
          %v1176 = vadd.f32 %v1137, %v1147
          %v1177 = vadd.f32 %v1138, %v1147
          %v1178 = vadd.f32 %v1139, %v1147
          %v1179 = vadd.f32 %v1140, %v1147
          %v1180 = vadd.f32 %v1141, %v1147
          %v1181 = vmax.f32 %v1149, 0.0
          %v1182 = vmax.f32 %v1150, 0.0
          %v1183 = vmax.f32 %v1151, 0.0
          %v1184 = vmax.f32 %v1152, 0.0
          %v1185 = vmax.f32 %v1153, 0.0
          %v1186 = vmax.f32 %v1154, 0.0
          %v1187 = vmax.f32 %v1155, 0.0
          %v1188 = vmax.f32 %v1156, 0.0
          %v1189 = vmax.f32 %v1157, 0.0
          %v1190 = vmax.f32 %v1158, 0.0
          %v1191 = vmax.f32 %v1159, 0.0
          %v1192 = vmax.f32 %v1160, 0.0
          %v1193 = vmax.f32 %v1161, 0.0
          %v1194 = vmax.f32 %v1162, 0.0
          %v1195 = vmax.f32 %v1163, 0.0
          %v1196 = vmax.f32 %v1164, 0.0
          %v1197 = vmax.f32 %v1165, 0.0
          %v1198 = vmax.f32 %v1166, 0.0
          %v1199 = vmax.f32 %v1167, 0.0
          %v1200 = vmax.f32 %v1168, 0.0
          %v1201 = vmax.f32 %v1169, 0.0
          %v1202 = vmax.f32 %v1170, 0.0
          %v1203 = vmax.f32 %v1171, 0.0
          %v1204 = vmax.f32 %v1172, 0.0
          %v1205 = vmax.f32 %v1173, 0.0
          %v1206 = vmax.f32 %v1174, 0.0
          %v1207 = vmax.f32 %v1175, 0.0
          %v1208 = vmax.f32 %v1176, 0.0
          %v1209 = vmax.f32 %v1177, 0.0
          %v1210 = vmax.f32 %v1178, 0.0
          %v1211 = vmax.f32 %v1179, 0.0
          %v1212 = vmax.f32 %v1180, 0.0
          %v1213 = vpack.c.bf16 %v1182, %v1181
          %v1214 = vpack.c.bf16 %v1184, %v1183
          %v1215 = vpack.c.bf16 %v1186, %v1185
          %v1216 = vpack.c.bf16 %v1188, %v1187
          %v1217 = vpack.c.bf16 %v1190, %v1189
          %v1218 = vpack.c.bf16 %v1192, %v1191
          %v1219 = vpack.c.bf16 %v1194, %v1193
          %v1220 = vpack.c.bf16 %v1196, %v1195
          %v1221 = vpack.c.bf16 %v1198, %v1197
          %v1222 = vpack.c.bf16 %v1200, %v1199
          %v1223 = vpack.c.bf16 %v1202, %v1201
          %v1224 = vpack.c.bf16 %v1204, %v1203
          %v1225 = vpack.c.bf16 %v1206, %v1205
          %v1226 = vpack.c.bf16 %v1208, %v1207
          %v1227 = vpack.c.bf16 %v1210, %v1209
          %v1228 = vpack.c.bf16 %v1212, %v1211
          %v1245 = vunpack.c.l.b16 %v1213
          %v1246 = vunpack.c.h.b16 %v1213
          %v1247 = vunpack.c.l.b16 %v1214
          %v1248 = vunpack.c.h.b16 %v1214
          %v1249 = vunpack.c.l.b16 %v1215
          %v1250 = vunpack.c.h.b16 %v1215
          %v1251 = vunpack.c.l.b16 %v1216
          %v1252 = vunpack.c.h.b16 %v1216
          %v1253 = vunpack.c.l.b16 %v1217
          %v1254 = vunpack.c.h.b16 %v1217
          %v1255 = vunpack.c.l.b16 %v1218
          %v1256 = vunpack.c.h.b16 %v1218
          %v1257 = vunpack.c.l.b16 %v1219
          %v1258 = vunpack.c.h.b16 %v1219
          %v1259 = vunpack.c.l.b16 %v1220
          %v1260 = vunpack.c.h.b16 %v1220
          %v1261 = vunpack.c.l.b16 %v1221
          %v1262 = vunpack.c.h.b16 %v1221
          %v1263 = vunpack.c.l.b16 %v1222
          %v1264 = vunpack.c.h.b16 %v1222
          %v1265 = vunpack.c.l.b16 %v1223
          %v1266 = vunpack.c.h.b16 %v1223
          %v1267 = vunpack.c.l.b16 %v1224
          %v1268 = vunpack.c.h.b16 %v1224
          %v1269 = vunpack.c.l.b16 %v1225
          %v1270 = vunpack.c.h.b16 %v1225
          %v1271 = vunpack.c.l.b16 %v1226
          %v1272 = vunpack.c.h.b16 %v1226
          %v1273 = vunpack.c.l.b16 %v1227
          %v1274 = vunpack.c.h.b16 %v1227
          %v1275 = vunpack.c.l.b16 %v1228
          %v1276 = vunpack.c.h.b16 %v1228
          %v1277 = vpack.c.b16 %v1245, %v1245
          %v1278 = vpack.c.b16 %v1246, %v1246
          %v1279 = vpack.c.b16 %v1247, %v1247
          %v1280 = vpack.c.b16 %v1248, %v1248
          %v1281 = vpack.c.b16 %v1249, %v1249
          %v1282 = vpack.c.b16 %v1250, %v1250
          %v1283 = vpack.c.b16 %v1251, %v1251
          %v1284 = vpack.c.b16 %v1252, %v1252
          %v1285 = vpack.c.b16 %v1253, %v1253
          %v1286 = vpack.c.b16 %v1254, %v1254
          %v1287 = vpack.c.b16 %v1255, %v1255
          %v1288 = vpack.c.b16 %v1256, %v1256
          %v1289 = vpack.c.b16 %v1257, %v1257
          %v1290 = vpack.c.b16 %v1258, %v1258
          %v1291 = vpack.c.b16 %v1259, %v1259
          %v1292 = vpack.c.b16 %v1260, %v1260
          %v1293 = vpack.c.b16 %v1261, %v1261
          %v1294 = vpack.c.b16 %v1262, %v1262
          %v1295 = vpack.c.b16 %v1263, %v1263
          %v1296 = vpack.c.b16 %v1264, %v1264
          %v1297 = vpack.c.b16 %v1265, %v1265
          %v1298 = vpack.c.b16 %v1266, %v1266
          %v1299 = vpack.c.b16 %v1267, %v1267
          %v1300 = vpack.c.b16 %v1268, %v1268
          %v1301 = vpack.c.b16 %v1269, %v1269
          %v1302 = vpack.c.b16 %v1270, %v1270
          %v1303 = vpack.c.b16 %v1271, %v1271
          %v1304 = vpack.c.b16 %v1272, %v1272
          %v1305 = vpack.c.b16 %v1273, %v1273
          %v1306 = vpack.c.b16 %v1274, %v1274
          %v1307 = vpack.c.b16 %v1275, %v1275
          %v1308 = vpack.c.b16 %v1276, %v1276
          %1341 = vst [vmem:[%s451] sm:$0xf] %v1277
          %1342 = vst [vmem:[%s451 + $0x4] sm:$0xf] %v1278
          %1343 = vst [vmem:[%s451 + $0x8] sm:$0xf] %v1279
          %1344 = vst [vmem:[%s451 + $0xc] sm:$0xf] %v1280
          %1345 = vst [vmem:[%s451 + $0x10] sm:$0xf] %v1281
          %1346 = vst [vmem:[%s451 + $0x14] sm:$0xf] %v1282
          %1347 = vst [vmem:[%s451 + $0x18] sm:$0xf] %v1283
          %1348 = vst [vmem:[%s451 + $0x1c] sm:$0xf] %v1284
          %1349 = vst [vmem:[%s451 + $0x20] sm:$0xf] %v1285
          %1350 = vst [vmem:[%s451 + $0x24] sm:$0xf] %v1286
          %1351 = vst [vmem:[%s451 + $0x28] sm:$0xf] %v1287
          %1352 = vst [vmem:[%s451 + $0x2c] sm:$0xf] %v1288
          %1353 = vst [vmem:[%s451 + $0x30] sm:$0xf] %v1289
          %1354 = vst [vmem:[%s451 + $0x34] sm:$0xf] %v1290
          %1355 = vst [vmem:[%s451 + $0x38] sm:$0xf] %v1291
          %1356 = vst [vmem:[%s451 + $0x3c] sm:$0xf] %v1292
          %1357 = vst [vmem:[%s451 + $0x40] sm:$0xf] %v1293
          %1358 = vst [vmem:[%s451 + $0x44] sm:$0xf] %v1294
          %1359 = vst [vmem:[%s451 + $0x48] sm:$0xf] %v1295
          %1360 = vst [vmem:[%s451 + $0x4c] sm:$0xf] %v1296
          %1361 = vst [vmem:[%s451 + $0x50] sm:$0xf] %v1297
          %1362 = vst [vmem:[%s451 + $0x54] sm:$0xf] %v1298
          %1363 = vst [vmem:[%s451 + $0x58] sm:$0xf] %v1299
          %1364 = vst [vmem:[%s451 + $0x5c] sm:$0xf] %v1300
          %1365 = vst [vmem:[%s451 + $0x60] sm:$0xf] %v1301
          %1366 = vst [vmem:[%s451 + $0x64] sm:$0xf] %v1302
          %1367 = vst [vmem:[%s451 + $0x68] sm:$0xf] %v1303
          %1368 = vst [vmem:[%s451 + $0x6c] sm:$0xf] %v1304
          %1369 = vst [vmem:[%s451 + $0x70] sm:$0xf] %v1305
          %1370 = vst [vmem:[%s451 + $0x74] sm:$0xf] %v1306
          %1371 = vst [vmem:[%s451 + $0x78] sm:$0xf] %v1307
          %1372 = vst [vmem:[%s451 + $0x7c] sm:$0xf] %v1308
        $region82: #{resnet_forward.4} parent=69 // pred_fallthru
          _
        %s1373 = smul.u32 32, %s20
        %p1374 = scmp.lt.s32.totalorder %s1373, 63
        %s1375 = scalar_select %p1374, %s1373, 63
        %p1376 = scmp.lt.s32.totalorder %s21, 0
        %s1377 = scalar_select %p1376, %s21, 0
        %s1378 = sadd.s32 %s1377, %s1375
        %s1379 = smul.addr %s1378, 4
        %s1380 = scalar_lea.vmem %s4, %s1379
        // Predicated region
        $region83: #{resnet_forward.4} parent=69 // pred_check
          %p1381 = pneg %p162
        $region84: #{resnet_forward.4} parent=69 // pred_check_branch
          %1383 = sbr.rel (%p1381) target = $region86
        $region85: #{resnet_forward.4} parent=69 // pred_region
          %s1384 = smul.u32 32, %s20
        $region86: #{resnet_forward.4} parent=69 // pred_fallthru
          _
      $region70: #{resnet_forward.4} parent=5 // pred_fallthru
        _
      %p1385 = scmp.le.s32.totalorder 2, %s10
      // Predicated region
      $region87: #{resnet_forward.4} parent=5 // pred_check
        %p1386 = pneg %p1385
      $region88: #{resnet_forward.4} parent=5 // pred_check_branch
        %1388 = sbr.rel (%p1386) target = $region90
      $region89: #{resnet_forward.4} parent=5 // pred_region
        %s1389 = ssub.s32 %s10, 2
        // Predicated region
        $region91: #{resnet_forward.4} parent=89 // pred_check
          %p1390 = pneg %p168
        $region92: #{resnet_forward.4} parent=89 // pred_check_branch
          %1392 = sbr.rel (%p1390) target = $region94
        $region93: #{resnet_forward.4} parent=89 // pred_region
          %s1393 = smul.u32 32, %s23
          %p1394 = scmp.lt.s32.totalorder %s1393, 63
          %s1395 = scalar_select %p1394, %s1393, 63
          %p1396 = scmp.lt.s32.totalorder %s24, 0
          %s1397 = scalar_select %p1396, %s24, 0
          %s1398 = sadd.s32 %s1397, %s1395
          %s1399 = smul.addr %s1398, 4
          %s1400 = scalar_lea.vmem %s4, %s1399
        $region94: #{resnet_forward.4} parent=89 // pred_fallthru
          _
      $region90: #{resnet_forward.4} parent=5 // pred_fallthru
        _
    $region6: #{resnet_forward.4} parent=1 // loop_footer
      %s14 = sadd.s32 1, %s10
    $region7: #{resnet_forward.4} parent=1 // loop_footer_branch
      %9 = sbr.rel target = $region3
    $region8: #{resnet_forward.4} parent=1 // loop_exit
      _

</llo_original>
